<compile_context>
chip_gen: v5e
topology: v5e:2x2
jax: 0.10.0
libtpu: 0.0.40
codegen_flags: <defaults>
</compile_context>

<pallas_src>
import jax
import jax.numpy as jnp
from jax.experimental import pallas as pl
from jax.experimental.pallas import tpu as pltpu


# ----------------------------- in-kernel helpers -----------------------------

def _erf(x):
    # Abramowitz & Stegun 7.1.26 rational approximation, |error| <= 1.5e-7.
    # Matches torch nn.GELU's exact erf formulation to well below f32 tolerance.
    # The exp lands on the EUP; the polynomial is a handful of VPU FMAs.
    a1, a2, a3, a4, a5 = (0.254829592, -0.284496736, 1.421413741,
                          -1.453152027, 1.061405429)
    p = 0.3275911
    ax = jnp.abs(x)
    t = 1.0 / (1.0 + p * ax)
    poly = ((((a5 * t + a4) * t + a3) * t + a2) * t + a1) * t
    y = 1.0 - poly * jnp.exp(-ax * ax)
    return jnp.where(x < 0.0, -y, y)


def _gelu_exact(x):
    # GELU(x) = 0.5 * x * (1 + erf(x / sqrt(2)))  -- torch nn.GELU default.
    return 0.5 * x * (1.0 + _erf(x * 0.7071067811865476))


# --------------------------------- kernel ------------------------------------

def _mlp_kernel(x_ref, w1_ref, b1_ref, w2_ref, b2_ref, o_ref, acc_ref):
    """One (M-tile, hidden-chunk) step of the fused MLP.

    x_ref  : (tm, C_in)          input rows (resident across the hidden sweep)
    w1_ref : (C_in, th)          fc1 weight chunk (pre-transposed, NN layout)
    b1_ref : (1, H_pad)          full fc1 bias (resident; sliced per chunk)
    w2_ref : (th, C_out)         fc2 weight chunk (pre-transposed, NN layout)
    b2_ref : (1, C_out)          fc2 bias
    o_ref  : (tm, C_out)         output tile (written once, at last hidden chunk)
    acc_ref: (tm, C_out) f32     running fc2 accumulator (VMEM scratch)
    """
    h_step = pl.program_id(1)
    th = w1_ref.shape[1]

    @pl.when(h_step == 0)
    def _init():
        acc_ref[...] = jnp.zeros_like(acc_ref)

    # fc1 chunk: (tm, th) = x (tm, C_in) @ w1 (C_in, th)  -- plain NN matmul on the MXU.
    h = jnp.dot(x_ref[...], w1_ref[...], preferred_element_type=jnp.float32)

    # fc1 bias for this chunk, sliced from the resident full-width bias row.
    b1 = b1_ref[0, pl.ds(pl.multiple_of(h_step * th, 128), th)]
    h = h + b1.astype(jnp.float32)
    h = _gelu_exact(h)                      # GELU in f32 on the VPU/EUP
    # drop1: p = 0.0 -> identity

    # fc2 partial: acc (tm, C_out) += h (tm, th) @ w2 (th, C_out).
    acc_ref[...] += jnp.dot(h.astype(w2_ref.dtype), w2_ref[...],
                            preferred_element_type=jnp.float32)

    @pl.when(h_step == pl.num_programs(1) - 1)
    def _finalize():
        # fc2 bias added exactly once, at the last hidden chunk; drop2 is identity.
        o_ref[...] = (acc_ref[...] + b2_ref[...].astype(jnp.float32)).astype(o_ref.dtype)


# -------------------------------- wrapper -------------------------------------

def _round_up(x, m):
    return ((x + m - 1) // m) * m


def _vmem_estimate(tm, th, c_in, c_out, h_pad, op_size, io_size):
    """Live VMEM bytes: double-buffered in/out blocks + f32 accumulator."""
    return (2 * tm * c_in * op_size          # x block
            + 2 * c_in * th * op_size        # fc1 weight chunk
            + 2 * th * c_out * op_size       # fc2 weight chunk
            + 2 * tm * c_out * io_size       # output block
            + tm * c_out * 4                 # f32 accumulator scratch
            + 2 * h_pad * 4 + 2 * c_out * 4)  # biases


def _choose_tiles(m, hdim, c_in, c_out, block_m, block_h, op_size, io_size):
    m_align = 128 if m >= 128 else 8
    h_align = 128

    tm = min(_round_up(block_m, m_align), _round_up(m, m_align))
    th = min(_round_up(block_h, h_align), _round_up(hdim, h_align))

    # Megacore (v7x has 2 TCs): prefer >= 2 M-tiles when M is big enough to split.
    if _round_up(m, tm) // tm < 2 and m > m_align:
        tm = _round_up(-(-m // 2), m_align)

    # Keep live VMEM under ~48 MiB: safe on every generation (v7x physical = 64 MiB).
    budget = 48 << 20
    while (_vmem_estimate(tm, th, c_in, c_out, _round_up(hdim, th), op_size, io_size)
           > budget) and (tm > m_align or th > h_align):
        if tm >= th and tm > m_align:
            tm = max(m_align, _round_up(tm // 2, m_align))
        elif th > h_align:
            th = max(h_align, _round_up(th // 2, h_align))
        else:
            tm = max(m_align, _round_up(tm // 2, m_align))
    return tm, th


def mlp_forward(x, params, *, block_m=512, block_h=512, mxu_dtype=None):
    """Pallas equivalent of Mlp.forward(x) (eval mode).

    params use torch nn.Linear layout:
      w_fc1: (hidden, in), b_fc1: (hidden,), w_fc2: (out, hidden), b_fc2: (out,)
    x may have any leading dims; the channel axis is last.
    mxu_dtype: optional dtype for matmul operands (e.g. jnp.bfloat16 on v6e/v7x);
      bias/GELU/accumulation stay f32, output keeps x.dtype.
    """
    w1, b1 = params["w_fc1"], params["b_fc1"]
    w2, b2 = params["w_fc2"], params["b_fc2"]

    *lead, c_in = x.shape
    x2d = x.reshape(-1, c_in)
    m = x2d.shape[0]
    hdim = w1.shape[0]
    c_out = w2.shape[0]

    op_dtype = jnp.dtype(mxu_dtype) if mxu_dtype is not None else jnp.dtype(x.dtype)
    op_size = op_dtype.itemsize
    io_size = jnp.dtype(x.dtype).itemsize

    tm, th = _choose_tiles(m, hdim, c_in, c_out, block_m, block_h, op_size, io_size)
    m_pad = _round_up(m, tm)
    h_pad = _round_up(hdim, th)
    grid = (m_pad // tm, h_pad // th)      # reduction (hidden) axis last

    # One-time HBM-side layout prep: pad + pre-transpose weights to NN layout.
    if m_pad != m:
        x2d = jnp.pad(x2d, ((0, m_pad - m), (0, 0)))
    w1t = w1.T                              # (C_in, hidden)
    w2t = w2.T                              # (hidden, C_out)
    b1p = b1
    if h_pad != hdim:
        w1t = jnp.pad(w1t, ((0, 0), (0, h_pad - hdim)))
        w2t = jnp.pad(w2t, ((0, h_pad - hdim), (0, 0)))
        b1p = jnp.pad(b1, ((0, h_pad - hdim),))
    if mxu_dtype is not None:
        x2d = x2d.astype(op_dtype)
        w1t = w1t.astype(op_dtype)
        w2t = w2t.astype(op_dtype)

    est = _vmem_estimate(tm, th, c_in, c_out, h_pad, op_size, io_size)
    vmem_limit = int(min(max(est * 13 // 10 + (2 << 20), 32 << 20), 56 << 20))

    weight_bytes = (w1t.size * w1t.dtype.itemsize + w2t.size * w2t.dtype.itemsize)
    cost = pl.CostEstimate(
        flops=2 * m_pad * h_pad * (c_in + c_out),
        transcendentals=m_pad * h_pad,
        bytes_accessed=int(x2d.size * x2d.dtype.itemsize
                           + m_pad * c_out * io_size
                           + (m_pad // tm) * weight_bytes
                           + (h_pad + c_out) * 4),
    )

    out2d = pl.pallas_call(
        _mlp_kernel,
        grid=grid,
        in_specs=[
            pl.BlockSpec((tm, c_in), lambda i, h: (i, 0)),      # x rows (resident over h)
            pl.BlockSpec((c_in, th), lambda i, h: (0, h)),      # fc1 weight chunk (NN)
            pl.BlockSpec((1, h_pad), lambda i, h: (0, 0)),      # full fc1 bias (resident)
            pl.BlockSpec((th, c_out), lambda i, h: (h, 0)),     # fc2 weight chunk (NN)
            pl.BlockSpec((1, c_out), lambda i, h: (0, 0)),      # fc2 bias
        ],
        out_specs=pl.BlockSpec((tm, c_out), lambda i, h: (i, 0)),
        out_shape=jax.ShapeDtypeStruct((m_pad, c_out), x.dtype),
        scratch_shapes=[pltpu.VMEM((tm, c_out), jnp.float32)],
        compiler_params=pltpu.CompilerParams(
            dimension_semantics=("parallel", "arbitrary"),
            vmem_limit_bytes=vmem_limit,
        ),
        cost_estimate=cost,
    )(x2d, w1t, b1p.reshape(1, h_pad), w2t, b2.reshape(1, c_out))

    return out2d[:m].reshape(*lead, c_out)


# ---------------------------- plain-JAX reference -----------------------------

def mlp_reference(x, params):
    h = x @ params["w_fc1"].T + params["b_fc1"]
    h = jax.nn.gelu(h, approximate=False)    # torch nn.GELU default (exact erf)
    return h @ params["w_fc2"].T + params["b_fc2"]


# ----------------------------------- main --------------------------------------

if __name__ == "__main__":
    key = jax.random.PRNGKey(0)

    def make_case(b, n, c_in, hid, c_out, k):
        kx, k1, kb1, k2, kb2 = jax.random.split(k, 5)
        x = jax.random.normal(kx, (b, n, c_in), dtype=jnp.float32)
        params = {
            # torch nn.Linear layout: (out_features, in_features)
            "w_fc1": 0.02 * jax.random.normal(k1, (hid, c_in), dtype=jnp.float32),
            "b_fc1": 0.01 * jax.random.normal(kb1, (hid,), dtype=jnp.float32),
            "w_fc2": 0.02 * jax.random.normal(k2, (c_out, hid), dtype=jnp.float32),
            "b_fc2": 0.01 * jax.random.normal(kb2, (c_out,), dtype=jnp.float32),
        }
        return x, params

    k0, k1 = jax.random.split(key)

    # Case 1: aligned shapes; 2 M-tiles x 2 hidden-chunks exercises the accumulator
    # init / finalize paths and the reduction. Full-f32 MXU path, tight tolerance.
    x, params = make_case(2, 256, 128, 512, 128, k0)
    out = jax.block_until_ready(mlp_forward(x, params, block_h=256))
    ref = mlp_reference(x, params)
    assert out.shape == ref.shape
    assert jnp.allclose(out, ref, atol=1e-4, rtol=1e-4), "f32 path mismatch"

    # Case 2: ragged M (=200) and hidden (=384): exercises zero-padding of rows and
    # hidden units plus the output slice.
    x2, params2 = make_case(2, 100, 128, 384, 128, k1)
    out2 = jax.block_until_ready(mlp_forward(x2, params2, block_h=256))
    ref2 = mlp_reference(x2, params2)
    assert out2.shape == ref2.shape
    assert jnp.allclose(out2, ref2, atol=1e-4, rtol=1e-4), "padded path mismatch"

    # Case 3: bf16 MXU operands with f32 accumulation (fast path for v6e/v7x MXUs).
    out3 = jax.block_until_ready(mlp_forward(x, params, mxu_dtype=jnp.bfloat16))
    assert jnp.allclose(out3, ref, atol=2e-2, rtol=2e-2), "bf16 path mismatch"

    print("KERNEL_OK")
</pallas_src>

<mosaic_0001>
module attributes {stable_mosaic.version = 11 : i64} {
  func.func @_mlp_kernel(%arg0: i32, %arg1: i32, %arg2: memref<256x128xf32, #tpu.memory_space<vmem>>, %arg3: memref<128x256xf32, #tpu.memory_space<vmem>>, %arg4: memref<1x512xf32, #tpu.memory_space<vmem>>, %arg5: memref<256x128xf32, #tpu.memory_space<vmem>>, %arg6: memref<1x128xf32, #tpu.memory_space<vmem>>, %arg7: memref<256x128xf32, #tpu.memory_space<vmem>>, %arg8: memref<256x128xf32, #tpu.memory_space<vmem>>) attributes {dimension_semantics = [#tpu.dimension_semantics<parallel>, #tpu.dimension_semantics<arbitrary>], iteration_bounds = array<i64: 2, 2>, scalar_prefetch = 0 : i64, scratch_operands = 1 : i64, tpu.core_type = #tpu.core_type<tc>, window_params = [{transform_indices = @transform_0, window_bounds = array<i64: 256, 128>}, {transform_indices = @transform_1, window_bounds = array<i64: 128, 256>}, {pipeline_mode = #tpu.pipeline_mode<synchronous>, transform_indices = @transform_2, window_bounds = array<i64: 1, 512>}, {transform_indices = @transform_3, window_bounds = array<i64: 256, 128>}, {pipeline_mode = #tpu.pipeline_mode<synchronous>, transform_indices = @transform_4, window_bounds = array<i64: 1, 128>}, {transform_indices = @transform_5, window_bounds = array<i64: 256, 128>}]} {
    %c0_i32 = arith.constant 0 : i32
    %0 = arith.cmpi eq, %arg1, %c0_i32 : i32
    %1 = arith.extui %0 : i1 to i32
    %c0_i32_0 = arith.constant 0 : i32
    %2 = arith.cmpi ne, %1, %c0_i32_0 : i32
    scf.if %2 {
      %cst_28 = arith.constant 0.000000e+00 : f32
      %62 = vector.broadcast %cst_28 : f32 to vector<256x128xf32>
      %c0_29 = arith.constant 0 : index
      %c0_30 = arith.constant 0 : index
      %63 = vector.load %arg8[%c0_29, %c0_30] : memref<256x128xf32, #tpu.memory_space<vmem>>, vector<256x128xf32>
      tpu.vector_store %arg8[%c0_29, %c0_30], %62 {strides = array<i32>} : memref<256x128xf32, #tpu.memory_space<vmem>>, vector<256x128xf32>,
    } else {
    }
    %c0 = arith.constant 0 : index
    %c0_1 = arith.constant 0 : index
    %3 = vector.load %arg2[%c0, %c0_1] : memref<256x128xf32, #tpu.memory_space<vmem>>, vector<256x128xf32>
    %c0_2 = arith.constant 0 : index
    %c0_3 = arith.constant 0 : index
    %4 = vector.load %arg3[%c0_2, %c0_3] : memref<128x256xf32, #tpu.memory_space<vmem>>, vector<128x256xf32>
    %cst = arith.constant dense<0.000000e+00> : vector<256x256xf32>
    %5 = tpu.matmul %3, %4, %cst {dimension_numbers = #tpu.dot_dimension_numbers<[1], [0], [0], [1], [0, 0, 1, 1], [], []>} : vector<256x128xf32>, vector<128x256xf32>, vector<256x256xf32> -> vector<256x256xf32>
    %c256_i32 = arith.constant 256 : i32
    %6 = arith.muli %arg1, %c256_i32 : i32
    %7 = tpu.assume_multiple %6, 128 : i32
    %c0_4 = arith.constant 0 : index
    %8 = arith.index_cast %7 : i32 to index
    %9 = vector.load %arg4[%c0_4, %8] : memref<1x512xf32, #tpu.memory_space<vmem>>, vector<1x256xf32>
    %10 = vector.shape_cast %9 : vector<1x256xf32> to vector<256xf32>
    %11 = vector.shape_cast %10 : vector<256xf32> to vector<1x256xf32>
    %12 = vector.broadcast %11 : vector<1x256xf32> to vector<256x256xf32>
    %13 = arith.addf %5, %12 : vector<256x256xf32>
    %cst_5 = arith.constant 5.000000e-01 : f32
    %14 = vector.broadcast %cst_5 : f32 to vector<256x256xf32>
    %15 = arith.mulf %14, %13 : vector<256x256xf32>
    %cst_6 = arith.constant 0.707106769 : f32
    %16 = vector.broadcast %cst_6 : f32 to vector<256x256xf32>
    %17 = arith.mulf %13, %16 : vector<256x256xf32>
    %18 = math.absf %17 : vector<256x256xf32>
    %cst_7 = arith.constant 0.327591091 : f32
    %19 = vector.broadcast %cst_7 : f32 to vector<256x256xf32>
    %20 = arith.mulf %19, %18 : vector<256x256xf32>
    %cst_8 = arith.constant 1.000000e+00 : f32
    %21 = vector.broadcast %cst_8 : f32 to vector<256x256xf32>
    %22 = arith.addf %21, %20 : vector<256x256xf32>
    %cst_9 = arith.constant 1.000000e+00 : f32
    %23 = vector.broadcast %cst_9 : f32 to vector<256x256xf32>
    %24 = arith.divf %23, %22 : vector<256x256xf32>
    %cst_10 = arith.constant 1.06140542 : f32
    %25 = vector.broadcast %cst_10 : f32 to vector<256x256xf32>
    %26 = arith.mulf %25, %24 : vector<256x256xf32>
    %cst_11 = arith.constant -1.45315206 : f32
    %27 = vector.broadcast %cst_11 : f32 to vector<256x256xf32>
    %28 = arith.addf %26, %27 : vector<256x256xf32>
    %29 = arith.mulf %28, %24 : vector<256x256xf32>
    %cst_12 = arith.constant 1.42141378 : f32
    %30 = vector.broadcast %cst_12 : f32 to vector<256x256xf32>
    %31 = arith.addf %29, %30 : vector<256x256xf32>
    %32 = arith.mulf %31, %24 : vector<256x256xf32>
    %cst_13 = arith.constant -0.284496725 : f32
    %33 = vector.broadcast %cst_13 : f32 to vector<256x256xf32>
    %34 = arith.addf %32, %33 : vector<256x256xf32>
    %35 = arith.mulf %34, %24 : vector<256x256xf32>
    %cst_14 = arith.constant 0.254829586 : f32
    %36 = vector.broadcast %cst_14 : f32 to vector<256x256xf32>
    %37 = arith.addf %35, %36 : vector<256x256xf32>
    %38 = arith.mulf %37, %24 : vector<256x256xf32>
    %cst_15 = arith.constant 0.000000e+00 : f32
    %39 = vector.broadcast %cst_15 : f32 to vector<256x256xf32>
    %40 = arith.subf %39, %18 : vector<256x256xf32>
    %41 = arith.mulf %40, %18 : vector<256x256xf32>
    %42 = math.exp %41 : vector<256x256xf32>
    %43 = arith.mulf %38, %42 : vector<256x256xf32>
    %cst_16 = arith.constant 1.000000e+00 : f32
    %44 = vector.broadcast %cst_16 : f32 to vector<256x256xf32>
    %45 = arith.subf %44, %43 : vector<256x256xf32>
    %cst_17 = arith.constant 0.000000e+00 : f32
    %46 = vector.broadcast %cst_17 : f32 to vector<256x256xf32>
    %47 = arith.cmpf olt, %17, %46 : vector<256x256xf32>
    %cst_18 = arith.constant 0.000000e+00 : f32
    %48 = vector.broadcast %cst_18 : f32 to vector<256x256xf32>
    %49 = arith.subf %48, %45 : vector<256x256xf32>
    %50 = arith.select %47, %49, %45 : vector<256x256xi1>, vector<256x256xf32>
    %cst_19 = arith.constant 1.000000e+00 : f32
    %51 = vector.broadcast %cst_19 : f32 to vector<256x256xf32>
    %52 = arith.addf %51, %50 : vector<256x256xf32>
    %53 = arith.mulf %15, %52 : vector<256x256xf32>
    %c0_20 = arith.constant 0 : index
    %c0_21 = arith.constant 0 : index
    %54 = vector.load %arg8[%c0_20, %c0_21] : memref<256x128xf32, #tpu.memory_space<vmem>>, vector<256x128xf32>
    %c0_22 = arith.constant 0 : index
    %c0_23 = arith.constant 0 : index
    %55 = vector.load %arg5[%c0_22, %c0_23] : memref<256x128xf32, #tpu.memory_space<vmem>>, vector<256x128xf32>
    %cst_24 = arith.constant dense<0.000000e+00> : vector<256x128xf32>
    %56 = tpu.matmul %53, %55, %cst_24 {dimension_numbers = #tpu.dot_dimension_numbers<[1], [0], [0], [1], [0, 0, 1, 1], [], []>} : vector<256x256xf32>, vector<256x128xf32>, vector<256x128xf32> -> vector<256x128xf32>
    %57 = arith.addf %54, %56 : vector<256x128xf32>
    %c0_25 = arith.constant 0 : index
    %c0_26 = arith.constant 0 : index
    %58 = vector.load %arg8[%c0_25, %c0_26] : memref<256x128xf32, #tpu.memory_space<vmem>>, vector<256x128xf32>
    tpu.vector_store %arg8[%c0_25, %c0_26], %57 {strides = array<i32>} : memref<256x128xf32, #tpu.memory_space<vmem>>, vector<256x128xf32>,
    %c1_i32 = arith.constant 1 : i32
    %59 = arith.cmpi eq, %arg1, %c1_i32 : i32
    %60 = arith.extui %59 : i1 to i32
    %c0_i32_27 = arith.constant 0 : i32
    %61 = arith.cmpi ne, %60, %c0_i32_27 : i32
    scf.if %61 {
      %c0_28 = arith.constant 0 : index
      %c0_29 = arith.constant 0 : index
      %62 = vector.load %arg8[%c0_28, %c0_29] : memref<256x128xf32, #tpu.memory_space<vmem>>, vector<256x128xf32>
      %c0_30 = arith.constant 0 : index
      %c0_31 = arith.constant 0 : index
      %63 = vector.load %arg6[%c0_30, %c0_31] : memref<1x128xf32, #tpu.memory_space<vmem>>, vector<1x128xf32>
      %64 = vector.broadcast %63 : vector<1x128xf32> to vector<256x128xf32>
      %65 = arith.addf %62, %64 : vector<256x128xf32>
      %c0_32 = arith.constant 0 : index
      %c0_33 = arith.constant 0 : index
      %66 = vector.load %arg7[%c0_32, %c0_33] : memref<256x128xf32, #tpu.memory_space<vmem>>, vector<256x128xf32>
      tpu.vector_store %arg7[%c0_32, %c0_33], %65 {strides = array<i32>} : memref<256x128xf32, #tpu.memory_space<vmem>>, vector<256x128xf32>,
    } else {
    }
    return
  }
  func.func @transform_0(%arg0: i32, %arg1: i32) -> (i32, i32) {
    %c0_i32 = arith.constant 0 : i32
    %c0_i32_0 = arith.constant 0 : i32
    return %arg0, %c0_i32 : i32, i32
  }
  func.func @transform_1(%arg0: i32, %arg1: i32) -> (i32, i32) {
    %c0_i32 = arith.constant 0 : i32
    %c0_i32_0 = arith.constant 0 : i32
    return %c0_i32, %arg1 : i32, i32
  }
  func.func @transform_2(%arg0: i32, %arg1: i32) -> (i32, i32) {
    %c0_i32 = arith.constant 0 : i32
    %c0_i32_0 = arith.constant 0 : i32
    %c0_i32_1 = arith.constant 0 : i32
    return %c0_i32, %c0_i32_0 : i32, i32
  }
  func.func @transform_3(%arg0: i32, %arg1: i32) -> (i32, i32) {
    %c0_i32 = arith.constant 0 : i32
    %c0_i32_0 = arith.constant 0 : i32
    return %arg1, %c0_i32 : i32, i32
  }
  func.func @transform_4(%arg0: i32, %arg1: i32) -> (i32, i32) {
    %c0_i32 = arith.constant 0 : i32
    %c0_i32_0 = arith.constant 0 : i32
    %c0_i32_1 = arith.constant 0 : i32
    return %c0_i32, %c0_i32_0 : i32, i32
  }
  func.func @transform_5(%arg0: i32, %arg1: i32) -> (i32, i32) {
    %c0_i32 = arith.constant 0 : i32
    %c0_i32_0 = arith.constant 0 : i32
    return %arg0, %c0_i32 : i32, i32
  }
}

</mosaic_0001>

<llo_original>
// kernel: tpu_custom_call.1
$region0: #{tpu_custom_call.1}
  #allocation0 [shape = 'u32[]', space=smem, size = 0x4, offset = 0x4, fixed_abs, tag = 'smem constant byte address 0x4 - core index']
  #allocation1 [shape = 'u32[72,128]{1,0:T(1,128)}', space=vmem, size = 0x9000, scoped, tag = 'internal scratch']
  #allocation2 [shape = 'f32[256,128]{1,0:T(8,128)}', space=vmem, size = 0x20000, scoped, tag = 'scratch operand']
  %s0 = inlined_call_operand.hbm [shape: f32[512,128], index: 0, kind: input, shape index: {}]
  %s1 = inlined_call_operand.hbm [shape: f32[128,512], index: 1, kind: input, shape index: {}]
  %s2 = inlined_call_operand.hbm [shape: f32[1,512], index: 2, kind: input, shape index: {}]
  %s3 = inlined_call_operand.hbm [shape: f32[512,128], index: 3, kind: input, shape index: {}]
  %s4 = inlined_call_operand.vmem [shape: f32[1,128], index: 4, kind: input, shape index: {}]
  %s5 = inlined_call_operand.hbm [shape: f32[512,128], index: 5, kind: output, shape index: {}]
  %s6 = sld [smem:[#allocation0]]
  $region77: #{tpu_custom_call.1} parent=0
    _
  %s8 = ssub.s32 1, %s6
  %s9 = scalar_select 0, %s8, %s6
  $region1: #{tpu_custom_call.1} parent=0
    #allocation3 [shape = 'u8[262144]{0}', space=vmem, size = 0x40000, scoped, tag = 'input window, operand 0']
    #allocation4 [shape = 's32[2]{0}', space=sflag, size = 0x8, scoped, tag = 'scoped memory for tpu_custom_call.1']
    #allocation5 [shape = 's32[2]{0}', space=sflag, size = 0x8, scoped, tag = 'scoped memory for tpu_custom_call.1']
    #allocation6 [shape = 'u8[262144]{0}', space=vmem, size = 0x40000, scoped, tag = 'input window, operand 1']
    #allocation7 [shape = 's32[2]{0}', space=sflag, size = 0x8, scoped, tag = 'scoped memory for tpu_custom_call.1']
    #allocation8 [shape = 'u8[2048]{0}', space=vmem, size = 0x800, scoped, tag = 'input window, operand 2, single buffered']
    #allocation9 [shape = 'u8[262144]{0}', space=vmem, size = 0x40000, scoped, tag = 'input window, operand 3']
    #allocation10 [shape = 's32[2]{0}', space=sflag, size = 0x8, scoped, tag = 'scoped memory for tpu_custom_call.1']
    #allocation11 [shape = 'u8[262144]{0}', space=vmem, size = 0x40000, scoped, tag = 'output window, operand 0']
    %10 = vsyncpa [#allocation4], 0
    %s11 = scalar_lea.sflag [#allocation4], 1
    %12 = vsyncpa %s11, 0
    %13 = vsyncpa [#allocation7], 0
    %s14 = scalar_lea.sflag [#allocation7], 1
    %15 = vsyncpa %s14, 0
    %16 = vsyncpa [#allocation10], 0
    %s17 = scalar_lea.sflag [#allocation10], 1
    %18 = vsyncpa %s17, 0
    %19 = vsyncpa [#allocation5], 0
    %s20 = scalar_lea.sflag [#allocation5], 1
    %21 = vsyncpa %s20, 0
    loop: start=0, step=1, limit=6
    $region2: #{tpu_custom_call.1} parent=1 // loop_pre_header
      _
    $region3: #{tpu_custom_call.1} parent=1 // loop_header
      %s23 = sphi 0, %s27
      %p24 = scmp.ge.s32.totalorder %s23, 6
      %s30 = sphi 0, %s42
      %s31 = sphi 0, %s38
      %s32 = sphi 0, %s30
      %s33 = sphi 0, %s31
      %s34 = sphi 0, %s32
      %s35 = sphi 0, %s33
      %s45 = sphi 0, %s47
      %s48 = sphi 0, %s45
      %s49 = sphi 0, %s48
      %s65 = sphi 0, %s49
      %s71 = sphi 0, %s73
      %s74 = sphi 0, %s71
      %s75 = sphi 0, %s74
      %s91 = sphi 0, %s75
      %s95 = sphi 0, %s95
      %s97 = sphi 0, %s95
      %s98 = sphi 0, %s97
      %s112 = sphi 0, %s98
      %s118 = sphi 0, %s120
      %s121 = sphi 0, %s118
      %s122 = sphi 0, %s121
      %s138 = sphi 0, %s122
      %s142 = sphi 0, %s142
      %s144 = sphi 0, %s142
      %s145 = sphi 0, %s144
      %s159 = sphi 0, %s145
      %s165 = sphi 0, %s167
      %s168 = sphi 0, %s165
      %s169 = sphi 0, %s168
      %s185 = sphi 0, %s169
    $region4: #{tpu_custom_call.1} parent=1 // loop_header_branch
      %26 = sbr.rel (%p24) target = $region8
    $region5: #{tpu_custom_call.1} parent=1 // loop_body
      %s28 = ssub.s32 %s23, 1
      %s29 = ssub.s32 %s23, 2
      %s36 = sadd.s32 1, %s31
      %p37 = scmp.ge.s32.totalorder %s36, 2
      %s38 = scalar_select %p37, 0, %s36
      %s39 = sadd.s32 1, %s30
      %s40 = scalar_select %p37, %s39, %s30
      %p41 = scmp.ge.s32.totalorder %s40, 2
      %s42 = scalar_select %p41, 0, %s40
      %s43 = ssub.s32 %s30, %s42
      %p44 = scmp.eq.s32.totalorder %s43, 0
      %s46 = sadd.s32 %s45, 1
      %s47 = scalar_select %p44, %s45, %s46
      %p50 = pneg %p44
      %p51 = scmp.eq.s32.totalorder %s23, 3
      %p52 = por %p50, %p51
      %p53 = scmp.ne.s32.totalorder %s45, %s48
      %p54 = scmp.eq.s32.totalorder %s23, 0
      %p55 = por %p53, %p54
      %p56 = scmp.ne.s32.totalorder %s45, %s48
      %p57 = scmp.eq.s32.totalorder %s28, 3
      %p58 = por %p56, %p57
      %p59 = scmp.ne.s32.totalorder %s48, %s49
      %p60 = scmp.eq.s32.totalorder %s28, 0
      %p61 = por %p59, %p60
      %p62 = scmp.ne.s32.totalorder %s48, %s49
      %p63 = scmp.eq.s32.totalorder %s29, 3
      %p64 = por %p62, %p63
      %p66 = scmp.ne.s32.totalorder %s49, %s65
      %p67 = scmp.eq.s32.totalorder %s29, 0
      %p68 = por %p66, %p67
      %s69 = ssub.s32 %s31, %s38
      %p70 = scmp.eq.s32.totalorder %s69, 0
      %s72 = sadd.s32 %s71, 1
      %s73 = scalar_select %p70, %s71, %s72
      %p76 = pneg %p70
      %p77 = scmp.eq.s32.totalorder %s23, 3
      %p78 = por %p76, %p77
      %p79 = scmp.ne.s32.totalorder %s71, %s74
      %p80 = scmp.eq.s32.totalorder %s23, 0
      %p81 = por %p79, %p80
      %p82 = scmp.ne.s32.totalorder %s71, %s74
      %p83 = scmp.eq.s32.totalorder %s28, 3
      %p84 = por %p82, %p83
      %p85 = scmp.ne.s32.totalorder %s74, %s75
      %p86 = scmp.eq.s32.totalorder %s28, 0
      %p87 = por %p85, %p86
      %p88 = scmp.ne.s32.totalorder %s74, %s75
      %p89 = scmp.eq.s32.totalorder %s29, 3
      %p90 = por %p88, %p89
      %p92 = scmp.ne.s32.totalorder %s75, %s91
      %p93 = scmp.eq.s32.totalorder %s29, 0
      %p94 = por %p92, %p93
      %s96 = sadd.s32 %s95, 1
      %p99 = scmp.eq.s32.totalorder %s23, 3
      %p100 = scmp.ne.s32.totalorder %s95, %s97
      %p101 = scmp.eq.s32.totalorder %s23, 0
      %p102 = por %p100, %p101
      %p103 = scmp.ne.s32.totalorder %s95, %s97
      %p104 = scmp.eq.s32.totalorder %s28, 3
      %p105 = por %p103, %p104
      %p106 = scmp.ne.s32.totalorder %s97, %s98
      %p107 = scmp.eq.s32.totalorder %s28, 0
      %p108 = por %p106, %p107
      %p109 = scmp.ne.s32.totalorder %s97, %s98
      %p110 = scmp.eq.s32.totalorder %s29, 3
      %p111 = por %p109, %p110
      %p113 = scmp.ne.s32.totalorder %s98, %s112
      %p114 = scmp.eq.s32.totalorder %s29, 0
      %p115 = por %p113, %p114
      %s116 = ssub.s32 %s31, %s38
      %p117 = scmp.eq.s32.totalorder %s116, 0
      %s119 = sadd.s32 %s118, 1
      %s120 = scalar_select %p117, %s118, %s119
      %p123 = pneg %p117
      %p124 = scmp.eq.s32.totalorder %s23, 3
      %p125 = por %p123, %p124
      %p126 = scmp.ne.s32.totalorder %s118, %s121
      %p127 = scmp.eq.s32.totalorder %s23, 0
      %p128 = por %p126, %p127
      %p129 = scmp.ne.s32.totalorder %s118, %s121
      %p130 = scmp.eq.s32.totalorder %s28, 3
      %p131 = por %p129, %p130
      %p132 = scmp.ne.s32.totalorder %s121, %s122
      %p133 = scmp.eq.s32.totalorder %s28, 0
      %p134 = por %p132, %p133
      %p135 = scmp.ne.s32.totalorder %s121, %s122
      %p136 = scmp.eq.s32.totalorder %s29, 3
      %p137 = por %p135, %p136
      %p139 = scmp.ne.s32.totalorder %s122, %s138
      %p140 = scmp.eq.s32.totalorder %s29, 0
      %p141 = por %p139, %p140
      %s143 = sadd.s32 %s142, 1
      %p146 = scmp.eq.s32.totalorder %s23, 3
      %p147 = scmp.ne.s32.totalorder %s142, %s144
      %p148 = scmp.eq.s32.totalorder %s23, 0
      %p149 = por %p147, %p148
      %p150 = scmp.ne.s32.totalorder %s142, %s144
      %p151 = scmp.eq.s32.totalorder %s28, 3
      %p152 = por %p150, %p151
      %p153 = scmp.ne.s32.totalorder %s144, %s145
      %p154 = scmp.eq.s32.totalorder %s28, 0
      %p155 = por %p153, %p154
      %p156 = scmp.ne.s32.totalorder %s144, %s145
      %p157 = scmp.eq.s32.totalorder %s29, 3
      %p158 = por %p156, %p157
      %p160 = scmp.ne.s32.totalorder %s145, %s159
      %p161 = scmp.eq.s32.totalorder %s29, 0
      %p162 = por %p160, %p161
      %s163 = ssub.s32 %s30, %s42
      %p164 = scmp.eq.s32.totalorder %s163, 0
      %s166 = sadd.s32 %s165, 1
      %s167 = scalar_select %p164, %s165, %s166
      %p170 = pneg %p164
      %p171 = scmp.eq.s32.totalorder %s23, 3
      %p172 = por %p170, %p171
      %p173 = scmp.ne.s32.totalorder %s165, %s168
      %p174 = scmp.eq.s32.totalorder %s23, 0
      %p175 = por %p173, %p174
      %p176 = scmp.ne.s32.totalorder %s165, %s168
      %p177 = scmp.eq.s32.totalorder %s28, 3
      %p178 = por %p176, %p177
      %p179 = scmp.ne.s32.totalorder %s168, %s169
      %p180 = scmp.eq.s32.totalorder %s28, 0
      %p181 = por %p179, %p180
      %p182 = scmp.ne.s32.totalorder %s168, %s169
      %p183 = scmp.eq.s32.totalorder %s29, 3
      %p184 = por %p182, %p183
      %p186 = scmp.ne.s32.totalorder %s169, %s185
      %p187 = scmp.eq.s32.totalorder %s29, 0
      %p188 = por %p186, %p187
      %p189 = scmp.le.s32.totalorder 1, %s23
      %p190 = scmp.lt.s32.totalorder %s23, 5
      %p191 = pnand %p189, %p190
      %p192 = pneg %p191
      // Predicated region
      $region9: #{tpu_custom_call.1} parent=5 // pred_check
        _
      $region10: #{tpu_custom_call.1} parent=5 // pred_check_branch
        %194 = sbr.rel (%p191) target = $region12
      $region11: #{tpu_custom_call.1} parent=5 // pred_region
        %s195 = ssub.s32 %s23, 1
        // Predicated region
        $region13: #{tpu_custom_call.1} parent=11 // pred_check
          %p196 = pneg %p108
        $region14: #{tpu_custom_call.1} parent=11 // pred_check_branch
          %198 = sbr.rel (%p196) target = $region16
        $region15: #{tpu_custom_call.1} parent=11 // pred_region
          %200 = vsyncadd [#allocation7], 0
          %s202 = sshll.u32 %s2, 4
          %s203 = int_to_ptr.hbm [resolvable:$true] %s202
          %s204 = sshll.u32 [#allocation8], 4
          %s205 = int_to_ptr.vmem [resolvable:$true] %s204
          %207 = dma.hbm_to_vmem [thread:$0]  %s203, 64, %s205, [#allocation7]
        $region16: #{tpu_custom_call.1} parent=11 // pred_fallthru
          _
        // Predicated region
        $region17: #{tpu_custom_call.1} parent=11 // pred_check
          %p208 = pneg %p155
        $region18: #{tpu_custom_call.1} parent=11 // pred_check_branch
          %210 = sbr.rel (%p208) target = $region20
        $region19: #{tpu_custom_call.1} parent=11 // pred_region
          _
        $region20: #{tpu_custom_call.1} parent=11 // pred_fallthru
          _
      $region12: #{tpu_custom_call.1} parent=5 // pred_fallthru
        _
      %p211 = scmp.lt.s32.totalorder %s23, 4
      // Predicated region
      $region21: #{tpu_custom_call.1} parent=5 // pred_check
        %p212 = pneg %p211
      $region22: #{tpu_custom_call.1} parent=5 // pred_check_branch
        %214 = sbr.rel (%p212) target = $region24
      $region23: #{tpu_custom_call.1} parent=5 // pred_region
        // Predicated region
        $region25: #{tpu_custom_call.1} parent=23 // pred_check
          %p215 = pneg %p55
        $region26: #{tpu_custom_call.1} parent=23 // pred_check_branch
          %217 = sbr.rel (%p215) target = $region28
        $region27: #{tpu_custom_call.1} parent=23 // pred_region
          %s218 = sand.u32 %s45, 1
          %s219 = scalar_lea.sflag [#allocation4], %s218
          %s220 = sand.u32 %s45, 1
          %s221 = smul.addr %s220, 256
          %s222 = scalar_lea.vmem [#allocation3], %s221
          %s223 = smul.u32 32, %s30
          %225 = vsyncadd %s219, 0
          %s226 = smul.addr %s223, 8
          %s227 = scalar_lea.hbm %s0, %s226
          %s228 = sshll.u32 %s227, 4
          %s229 = int_to_ptr.hbm [resolvable:$true] %s228
          %s230 = sshll.u32 %s222, 4
          %s231 = int_to_ptr.vmem [resolvable:$true] %s230
          %236 = dma.hbm_to_vmem [thread:$0]  %s229, 4096, %s231, %s219, 128, 128, 8
        $region28: #{tpu_custom_call.1} parent=23 // pred_fallthru
          _
        // Predicated region
        $region29: #{tpu_custom_call.1} parent=23 // pred_check
          %p237 = pneg %p81
        $region30: #{tpu_custom_call.1} parent=23 // pred_check_branch
          %239 = sbr.rel (%p237) target = $region32
        $region31: #{tpu_custom_call.1} parent=23 // pred_region
          %s240 = sand.u32 %s23, 1
          %s241 = scalar_lea.sflag [#allocation7], %s240
          %s242 = sand.u32 %s71, 1
          %s243 = smul.addr %s242, 256
          %s244 = scalar_lea.vmem [#allocation6], %s243
          %s245 = smul.u32 2, %s31
          %247 = vsyncadd %s241, 0
          %s248 = smul.addr %s245, 8
          %s249 = scalar_lea.hbm %s1, %s248
          %s250 = sshll.u32 %s249, 4
          %s251 = int_to_ptr.hbm [resolvable:$true] %s250
          %s252 = sshll.u32 %s244, 4
          %s253 = int_to_ptr.vmem [resolvable:$true] %s252
          %258 = dma.hbm_to_vmem [thread:$0]  %s251, 4096, %s253, %s241, 512, 256, 16
        $region32: #{tpu_custom_call.1} parent=23 // pred_fallthru
          _
        // Predicated region
        $region33: #{tpu_custom_call.1} parent=23 // pred_check
          %p259 = pneg %p128
        $region34: #{tpu_custom_call.1} parent=23 // pred_check_branch
          %261 = sbr.rel (%p259) target = $region36
        $region35: #{tpu_custom_call.1} parent=23 // pred_region
          %s262 = sand.u32 %s118, 1
          %s263 = scalar_lea.sflag [#allocation10], %s262
          %s264 = sand.u32 %s118, 1
          %s265 = smul.addr %s264, 256
          %s266 = scalar_lea.vmem [#allocation9], %s265
          %s267 = smul.u32 32, %s31
          %269 = vsyncadd %s263, 0
          %s270 = smul.addr %s267, 8
          %s271 = scalar_lea.hbm %s3, %s270
          %s272 = sshll.u32 %s271, 4
          %s273 = int_to_ptr.hbm [resolvable:$true] %s272
          %s274 = sshll.u32 %s266, 4
          %s275 = int_to_ptr.vmem [resolvable:$true] %s274
          %280 = dma.hbm_to_vmem [thread:$0]  %s273, 4096, %s275, %s263, 128, 128, 8
        $region36: #{tpu_custom_call.1} parent=23 // pred_fallthru
          _
      $region24: #{tpu_custom_call.1} parent=5 // pred_fallthru
        _
      %p281 = scmp.le.s32.totalorder 1, %s23
      %p282 = scmp.lt.s32.totalorder %s23, 5
      %p283 = pnand %p281, %p282
      %p284 = pneg %p283
      // Predicated region
      $region37: #{tpu_custom_call.1} parent=5 // pred_check
        _
      $region38: #{tpu_custom_call.1} parent=5 // pred_check_branch
        %286 = sbr.rel (%p283) target = $region40
      $region39: #{tpu_custom_call.1} parent=5 // pred_region
        %s287 = ssub.s32 %s23, 1
        %s288 = sand.u32 %s48, 1
        %s289 = scalar_lea.sflag [#allocation4], %s288
        %s290 = sand.u32 %s48, 1
        %s291 = smul.addr %s290, 256
        %s292 = scalar_lea.vmem [#allocation3], %s291
        // Predicated region
        $region41: #{tpu_custom_call.1} parent=39 // pred_check
          %p293 = pneg %p61
        $region42: #{tpu_custom_call.1} parent=39 // pred_check_branch
          %295 = sbr.rel (%p293) target = $region44
        $region43: #{tpu_custom_call.1} parent=39 // pred_region
          %297 = dma.done %s289, 4096
        $region44: #{tpu_custom_call.1} parent=39 // pred_fallthru
          _
        %s298 = sand.u32 %s28, 1
        %s299 = scalar_lea.sflag [#allocation7], %s298
        %s300 = sand.u32 %s74, 1
        %s301 = smul.addr %s300, 256
        %s302 = scalar_lea.vmem [#allocation6], %s301
        // Predicated region
        $region45: #{tpu_custom_call.1} parent=39 // pred_check
          %p303 = pneg %p87
        $region46: #{tpu_custom_call.1} parent=39 // pred_check_branch
          %305 = sbr.rel (%p303) target = $region48
        $region47: #{tpu_custom_call.1} parent=39 // pred_region
          %307 = dma.done %s299, 4096
        $region48: #{tpu_custom_call.1} parent=39 // pred_fallthru
          _
        // Predicated region
        $region49: #{tpu_custom_call.1} parent=39 // pred_check
          %p308 = pneg %p108
        $region50: #{tpu_custom_call.1} parent=39 // pred_check_branch
          %310 = sbr.rel (%p308) target = $region52
        $region51: #{tpu_custom_call.1} parent=39 // pred_region
          %312 = dma.done [#allocation7], 64
        $region52: #{tpu_custom_call.1} parent=39 // pred_fallthru
          _
        %s313 = sand.u32 %s121, 1
        %s314 = scalar_lea.sflag [#allocation10], %s313
        %s315 = sand.u32 %s121, 1
        %s316 = smul.addr %s315, 256
        %s317 = scalar_lea.vmem [#allocation9], %s316
        // Predicated region
        $region53: #{tpu_custom_call.1} parent=39 // pred_check
          %p318 = pneg %p134
        $region54: #{tpu_custom_call.1} parent=39 // pred_check_branch
          %320 = sbr.rel (%p318) target = $region56
        $region55: #{tpu_custom_call.1} parent=39 // pred_region
          %322 = dma.done %s314, 4096
        $region56: #{tpu_custom_call.1} parent=39 // pred_fallthru
          _
        %s323 = sand.u32 %s48, 1
        %s324 = scalar_lea.sflag [#allocation4], %s323
        %s325 = sand.u32 %s48, 1
        %s326 = smul.addr %s325, 256
        %s327 = scalar_lea.vmem [#allocation3], %s326
        %p328 = pneg %p61
        %p329 = pneg %p58
        %s330 = sand.u32 %s28, 1
        %s331 = scalar_lea.sflag [#allocation7], %s330
        %s332 = sand.u32 %s74, 1
        %s333 = smul.addr %s332, 256
        %s334 = scalar_lea.vmem [#allocation6], %s333
        %p335 = pneg %p87
        %p336 = pneg %p84
        %p337 = pneg %p108
        %p338 = pneg %p105
        %s339 = sand.u32 %s121, 1
        %s340 = scalar_lea.sflag [#allocation10], %s339
        %s341 = sand.u32 %s121, 1
        %s342 = smul.addr %s341, 256
        %s343 = scalar_lea.vmem [#allocation9], %s342
        %p344 = pneg %p134
        %p345 = pneg %p131
        %p346 = pneg %p155
        %p347 = pneg %p152
        %p348 = pneg %p181
        %p349 = pneg %p178
        %s350 = sand.u32 %s168, 1
        %s351 = scalar_lea.sflag [#allocation5], %s350
        %s352 = sand.u32 %s168, 1
        %s353 = smul.addr %s352, 256
        %s354 = scalar_lea.vmem [#allocation11], %s353
        %s355 = smul.u32 32, %s32
        %s356 = smul.u32 2, %s33
        %s357 = smul.u32 32, %s33
        %s358 = smul.u32 32, %s32
        %p359 = scmp.eq.s32.totalorder %s33, 0
        // Predicated region
        $region57: #{tpu_custom_call.1} parent=39 // pred_check
          %p360 = pneg %p359
        $region58: #{tpu_custom_call.1} parent=39 // pred_check_branch
          %362 = sbr.rel (%p360) target = $region60
        $region59: #{tpu_custom_call.1} parent=39 // pred_region
          %363 = vst [vmem:[#allocation2] sm:$0xff] 0.0
          %364 = vst [vmem:[#allocation2 + $0x8] sm:$0xff] 0.0
          %365 = vst [vmem:[#allocation2 + $0x10] sm:$0xff] 0.0
          %366 = vst [vmem:[#allocation2 + $0x18] sm:$0xff] 0.0
          %367 = vst [vmem:[#allocation2 + $0x20] sm:$0xff] 0.0
          %368 = vst [vmem:[#allocation2 + $0x28] sm:$0xff] 0.0
          %369 = vst [vmem:[#allocation2 + $0x30] sm:$0xff] 0.0
          %370 = vst [vmem:[#allocation2 + $0x38] sm:$0xff] 0.0
          %371 = vst [vmem:[#allocation2 + $0x40] sm:$0xff] 0.0
          %372 = vst [vmem:[#allocation2 + $0x48] sm:$0xff] 0.0
          %373 = vst [vmem:[#allocation2 + $0x50] sm:$0xff] 0.0
          %374 = vst [vmem:[#allocation2 + $0x58] sm:$0xff] 0.0
          %375 = vst [vmem:[#allocation2 + $0x60] sm:$0xff] 0.0
          %376 = vst [vmem:[#allocation2 + $0x68] sm:$0xff] 0.0
          %377 = vst [vmem:[#allocation2 + $0x70] sm:$0xff] 0.0
          %378 = vst [vmem:[#allocation2 + $0x78] sm:$0xff] 0.0
          %379 = vst [vmem:[#allocation2 + $0x80] sm:$0xff] 0.0
          %380 = vst [vmem:[#allocation2 + $0x88] sm:$0xff] 0.0
          %381 = vst [vmem:[#allocation2 + $0x90] sm:$0xff] 0.0
          %382 = vst [vmem:[#allocation2 + $0x98] sm:$0xff] 0.0
          %383 = vst [vmem:[#allocation2 + $0xa0] sm:$0xff] 0.0
          %384 = vst [vmem:[#allocation2 + $0xa8] sm:$0xff] 0.0
          %385 = vst [vmem:[#allocation2 + $0xb0] sm:$0xff] 0.0
          %386 = vst [vmem:[#allocation2 + $0xb8] sm:$0xff] 0.0
          %387 = vst [vmem:[#allocation2 + $0xc0] sm:$0xff] 0.0
          %388 = vst [vmem:[#allocation2 + $0xc8] sm:$0xff] 0.0
          %389 = vst [vmem:[#allocation2 + $0xd0] sm:$0xff] 0.0
          %390 = vst [vmem:[#allocation2 + $0xd8] sm:$0xff] 0.0
          %391 = vst [vmem:[#allocation2 + $0xe0] sm:$0xff] 0.0
          %392 = vst [vmem:[#allocation2 + $0xe8] sm:$0xff] 0.0
          %393 = vst [vmem:[#allocation2 + $0xf0] sm:$0xff] 0.0
          %394 = vst [vmem:[#allocation2 + $0xf8] sm:$0xff] 0.0
        $region60: #{tpu_custom_call.1} parent=39 // pred_fallthru
          _
        %v395 = vld [vmem:[%s292] sm:$0xff]
        %v396 = vld [vmem:[%s292 + $0x8] sm:$0xff]
        %v397 = vld [vmem:[%s292 + $0x10] sm:$0xff]
        %v398 = vld [vmem:[%s292 + $0x18] sm:$0xff]
        %v399 = vld [vmem:[%s292 + $0x20] sm:$0xff]
        %v400 = vld [vmem:[%s292 + $0x28] sm:$0xff]
        %v401 = vld [vmem:[%s292 + $0x30] sm:$0xff]
        %v402 = vld [vmem:[%s292 + $0x38] sm:$0xff]
        %v403 = vld [vmem:[%s292 + $0x40] sm:$0xff]
        %v404 = vld [vmem:[%s292 + $0x48] sm:$0xff]
        %v405 = vld [vmem:[%s292 + $0x50] sm:$0xff]
        %v406 = vld [vmem:[%s292 + $0x58] sm:$0xff]
        %v407 = vld [vmem:[%s292 + $0x60] sm:$0xff]
        %v408 = vld [vmem:[%s292 + $0x68] sm:$0xff]
        %v409 = vld [vmem:[%s292 + $0x70] sm:$0xff]
        %v410 = vld [vmem:[%s292 + $0x78] sm:$0xff]
        %v411 = vld [vmem:[%s292 + $0x80] sm:$0xff]
        %v412 = vld [vmem:[%s292 + $0x88] sm:$0xff]
        %v413 = vld [vmem:[%s292 + $0x90] sm:$0xff]
        %v414 = vld [vmem:[%s292 + $0x98] sm:$0xff]
        %v415 = vld [vmem:[%s292 + $0xa0] sm:$0xff]
        %v416 = vld [vmem:[%s292 + $0xa8] sm:$0xff]
        %v417 = vld [vmem:[%s292 + $0xb0] sm:$0xff]
        %v418 = vld [vmem:[%s292 + $0xb8] sm:$0xff]
        %v419 = vld [vmem:[%s292 + $0xc0] sm:$0xff]
        %v420 = vld [vmem:[%s292 + $0xc8] sm:$0xff]
        %v421 = vld [vmem:[%s292 + $0xd0] sm:$0xff]
        %v422 = vld [vmem:[%s292 + $0xd8] sm:$0xff]
        %v423 = vld [vmem:[%s292 + $0xe0] sm:$0xff]
        %v424 = vld [vmem:[%s292 + $0xe8] sm:$0xff]
        %v425 = vld [vmem:[%s292 + $0xf0] sm:$0xff]
        %v426 = vld [vmem:[%s292 + $0xf8] sm:$0xff]
        %v427 = vld [vmem:[%s302] sm:$0xff]
        %v428 = vld [vmem:[%s302 + $0x8] sm:$0xff]
        %v429 = vld [vmem:[%s302 + $0x10] sm:$0xff]
        %v430 = vld [vmem:[%s302 + $0x18] sm:$0xff]
        %v431 = vld [vmem:[%s302 + $0x20] sm:$0xff]
        %v432 = vld [vmem:[%s302 + $0x28] sm:$0xff]
        %v433 = vld [vmem:[%s302 + $0x30] sm:$0xff]
        %v434 = vld [vmem:[%s302 + $0x38] sm:$0xff]
        %v435 = vld [vmem:[%s302 + $0x40] sm:$0xff]
        %v436 = vld [vmem:[%s302 + $0x48] sm:$0xff]
        %v437 = vld [vmem:[%s302 + $0x50] sm:$0xff]
        %v438 = vld [vmem:[%s302 + $0x58] sm:$0xff]
        %v439 = vld [vmem:[%s302 + $0x60] sm:$0xff]
        %v440 = vld [vmem:[%s302 + $0x68] sm:$0xff]
        %v441 = vld [vmem:[%s302 + $0x70] sm:$0xff]
        %v442 = vld [vmem:[%s302 + $0x78] sm:$0xff]
        %v443 = vld [vmem:[%s302 + $0x80] sm:$0xff]
        %v444 = vld [vmem:[%s302 + $0x88] sm:$0xff]
        %v445 = vld [vmem:[%s302 + $0x90] sm:$0xff]
        %v446 = vld [vmem:[%s302 + $0x98] sm:$0xff]
        %v447 = vld [vmem:[%s302 + $0xa0] sm:$0xff]
        %v448 = vld [vmem:[%s302 + $0xa8] sm:$0xff]
        %v449 = vld [vmem:[%s302 + $0xb0] sm:$0xff]
        %v450 = vld [vmem:[%s302 + $0xb8] sm:$0xff]
        %v451 = vld [vmem:[%s302 + $0xc0] sm:$0xff]
        %v452 = vld [vmem:[%s302 + $0xc8] sm:$0xff]
        %v453 = vld [vmem:[%s302 + $0xd0] sm:$0xff]
        %v454 = vld [vmem:[%s302 + $0xd8] sm:$0xff]
        %v455 = vld [vmem:[%s302 + $0xe0] sm:$0xff]
        %v456 = vld [vmem:[%s302 + $0xe8] sm:$0xff]
        %v457 = vld [vmem:[%s302 + $0xf0] sm:$0xff]
        %v458 = vld [vmem:[%s302 + $0xf8] sm:$0xff]
        %s459 = smul.u32 %s33, 256
        %s460 = sshra.s32 %s459, 7
        %s461 = sand.u32 %s459, 127
        %s462 = scalar_lea.vmem [#allocation8], %s460
        %v463 = vld [vmem:[%s462] sm:$0x3]
        %v465 = vperm.slane %v463, 0
        %v466 = vperm.slane %v463, 1
        %469 = vmatpush.msra.mxu0 %v457
        %470 = vmatpush.msra.mxu0 %v455
        %471 = vmatpush.msra.mxu0 %v453
        %472 = vmatpush.msra.mxu0 %v451
        %473 = vmatpush.msra.mxu0 %v449
        %474 = vmatpush.msra.mxu0 %v447
        %475 = vmatpush.msra.mxu0 %v445
        %476 = vmatpush.msra.mxu0 %v443
        %477 = vmatpush.msra.mxu0 %v441
        %478 = vmatpush.msra.mxu0 %v439
        %479 = vmatpush.msra.mxu0 %v437
        %480 = vmatpush.msra.mxu0 %v435
        %481 = vmatpush.msra.mxu0 %v433
        %482 = vmatpush.msra.mxu0 %v431
        %483 = vmatpush.msra.mxu0 %v429
        %484 = vmatpush.msra.mxu0 %v427
        %485 = vmatmul.f32.gmra.mxu0 %v395
        %v486 = vpop.f32.mrf.mxu0
        %v487 = vadd.f32 %v465, %v486
        %488 = vmatmul.f32.gmra.mxu0 %v396
        %v489 = vpop.f32.mrf.mxu0
        %v490 = vadd.f32 %v465, %v489
        %491 = vmatmul.f32.gmra.mxu0 %v397
        %v492 = vpop.f32.mrf.mxu0
        %v493 = vadd.f32 %v465, %v492
        %494 = vmatmul.f32.gmra.mxu0 %v398
        %v495 = vpop.f32.mrf.mxu0
        %v496 = vadd.f32 %v465, %v495
        %497 = vmatmul.f32.gmra.mxu0 %v399
        %v498 = vpop.f32.mrf.mxu0
        %v499 = vadd.f32 %v465, %v498
        %500 = vmatmul.f32.gmra.mxu0 %v400
        %v501 = vpop.f32.mrf.mxu0
        %v502 = vadd.f32 %v465, %v501
        %503 = vmatmul.f32.gmra.mxu0 %v401
        %v504 = vpop.f32.mrf.mxu0
        %v505 = vadd.f32 %v465, %v504
        %506 = vmatmul.f32.gmra.mxu0 %v402
        %v507 = vpop.f32.mrf.mxu0
        %v508 = vadd.f32 %v465, %v507
        %509 = vmatmul.f32.gmra.mxu0 %v403
        %v510 = vpop.f32.mrf.mxu0
        %v511 = vadd.f32 %v465, %v510
        %512 = vmatmul.f32.gmra.mxu0 %v404
        %v513 = vpop.f32.mrf.mxu0
        %v514 = vadd.f32 %v465, %v513
        %515 = vmatmul.f32.gmra.mxu0 %v405
        %v516 = vpop.f32.mrf.mxu0
        %v517 = vadd.f32 %v465, %v516
        %518 = vmatmul.f32.gmra.mxu0 %v406
        %v519 = vpop.f32.mrf.mxu0
        %v520 = vadd.f32 %v465, %v519
        %521 = vmatmul.f32.gmra.mxu0 %v407
        %v522 = vpop.f32.mrf.mxu0
        %v523 = vadd.f32 %v465, %v522
        %524 = vmatmul.f32.gmra.mxu0 %v408
        %v525 = vpop.f32.mrf.mxu0
        %v526 = vadd.f32 %v465, %v525
        %527 = vmatmul.f32.gmra.mxu0 %v409
        %v528 = vpop.f32.mrf.mxu0
        %v529 = vadd.f32 %v465, %v528
        %530 = vmatmul.f32.gmra.mxu0 %v410
        %v531 = vpop.f32.mrf.mxu0
        %v532 = vadd.f32 %v465, %v531
        %533 = vmatmul.f32.gmra.mxu0 %v411
        %v534 = vpop.f32.mrf.mxu0
        %v535 = vadd.f32 %v465, %v534
        %536 = vmatmul.f32.gmra.mxu0 %v412
        %v537 = vpop.f32.mrf.mxu0
        %v538 = vadd.f32 %v465, %v537
        %539 = vmatmul.f32.gmra.mxu0 %v413
        %v540 = vpop.f32.mrf.mxu0
        %v541 = vadd.f32 %v465, %v540
        %542 = vmatmul.f32.gmra.mxu0 %v414
        %v543 = vpop.f32.mrf.mxu0
        %v544 = vadd.f32 %v465, %v543
        %545 = vmatmul.f32.gmra.mxu0 %v415
        %v546 = vpop.f32.mrf.mxu0
        %v547 = vadd.f32 %v465, %v546
        %548 = vmatmul.f32.gmra.mxu0 %v416
        %v549 = vpop.f32.mrf.mxu0
        %v550 = vadd.f32 %v465, %v549
        %551 = vmatmul.f32.gmra.mxu0 %v417
        %v552 = vpop.f32.mrf.mxu0
        %v553 = vadd.f32 %v465, %v552
        %554 = vmatmul.f32.gmra.mxu0 %v418
        %v555 = vpop.f32.mrf.mxu0
        %v556 = vadd.f32 %v465, %v555
        %557 = vmatmul.f32.gmra.mxu0 %v419
        %v558 = vpop.f32.mrf.mxu0
        %v559 = vadd.f32 %v465, %v558
        %560 = vmatmul.f32.gmra.mxu0 %v420
        %v561 = vpop.f32.mrf.mxu0
        %v562 = vadd.f32 %v465, %v561
        %563 = vmatmul.f32.gmra.mxu0 %v421
        %v564 = vpop.f32.mrf.mxu0
        %v565 = vadd.f32 %v465, %v564
        %566 = vmatmul.f32.gmra.mxu0 %v422
        %v567 = vpop.f32.mrf.mxu0
        %v568 = vadd.f32 %v465, %v567
        %569 = vmatmul.f32.gmra.mxu0 %v423
        %v570 = vpop.f32.mrf.mxu0
        %v571 = vadd.f32 %v465, %v570
        %572 = vmatmul.f32.gmra.mxu0 %v424
        %v573 = vpop.f32.mrf.mxu0
        %v574 = vadd.f32 %v465, %v573
        %575 = vmatmul.f32.gmra.mxu0 %v425
        %v576 = vpop.f32.mrf.mxu0
        %v577 = vadd.f32 %v465, %v576
        %578 = vmatmul.f32.gmra.mxu0 %v426
        %v579 = vpop.f32.mrf.mxu0
        %v580 = vadd.f32 %v465, %v579
        %581 = vdwg.mxu0
        %582 = vmatpush.msra.mxu0 %v458
        %583 = vmatpush.msra.mxu0 %v456
        %584 = vmatpush.msra.mxu0 %v454
        %585 = vmatpush.msra.mxu0 %v452
        %586 = vmatpush.msra.mxu0 %v450
        %587 = vmatpush.msra.mxu0 %v448
        %588 = vmatpush.msra.mxu0 %v446
        %589 = vmatpush.msra.mxu0 %v444
        %590 = vmatpush.msra.mxu0 %v442
        %591 = vmatpush.msra.mxu0 %v440
        %592 = vmatpush.msra.mxu0 %v438
        %593 = vmatpush.msra.mxu0 %v436
        %594 = vmatpush.msra.mxu0 %v434
        %595 = vmatpush.msra.mxu0 %v432
        %596 = vmatpush.msra.mxu0 %v430
        %597 = vmatpush.msra.mxu0 %v428
        %598 = vmatmul.f32.gmra.mxu0 %v395
        %v599 = vpop.f32.mrf.mxu0
        %v600 = vadd.f32 %v466, %v599
        %601 = vmatmul.f32.gmra.mxu0 %v396
        %v602 = vpop.f32.mrf.mxu0
        %v603 = vadd.f32 %v466, %v602
        %604 = vmatmul.f32.gmra.mxu0 %v397
        %v605 = vpop.f32.mrf.mxu0
        %v606 = vadd.f32 %v466, %v605
        %607 = vmatmul.f32.gmra.mxu0 %v398
        %v608 = vpop.f32.mrf.mxu0
        %v609 = vadd.f32 %v466, %v608
        %610 = vmatmul.f32.gmra.mxu0 %v399
        %v611 = vpop.f32.mrf.mxu0
        %v612 = vadd.f32 %v466, %v611
        %613 = vmatmul.f32.gmra.mxu0 %v400
        %v614 = vpop.f32.mrf.mxu0
        %v615 = vadd.f32 %v466, %v614
        %616 = vmatmul.f32.gmra.mxu0 %v401
        %v617 = vpop.f32.mrf.mxu0
        %v618 = vadd.f32 %v466, %v617
        %619 = vmatmul.f32.gmra.mxu0 %v402
        %v620 = vpop.f32.mrf.mxu0
        %v621 = vadd.f32 %v466, %v620
        %622 = vmatmul.f32.gmra.mxu0 %v403
        %v623 = vpop.f32.mrf.mxu0
        %v624 = vadd.f32 %v466, %v623
        %625 = vmatmul.f32.gmra.mxu0 %v404
        %v626 = vpop.f32.mrf.mxu0
        %v627 = vadd.f32 %v466, %v626
        %628 = vmatmul.f32.gmra.mxu0 %v405
        %v629 = vpop.f32.mrf.mxu0
        %v630 = vadd.f32 %v466, %v629
        %631 = vmatmul.f32.gmra.mxu0 %v406
        %v632 = vpop.f32.mrf.mxu0
        %v633 = vadd.f32 %v466, %v632
        %634 = vmatmul.f32.gmra.mxu0 %v407
        %v635 = vpop.f32.mrf.mxu0
        %v636 = vadd.f32 %v466, %v635
        %637 = vmatmul.f32.gmra.mxu0 %v408
        %v638 = vpop.f32.mrf.mxu0
        %v639 = vadd.f32 %v466, %v638
        %640 = vmatmul.f32.gmra.mxu0 %v409
        %v641 = vpop.f32.mrf.mxu0
        %v642 = vadd.f32 %v466, %v641
        %643 = vmatmul.f32.gmra.mxu0 %v410
        %v644 = vpop.f32.mrf.mxu0
        %v645 = vadd.f32 %v466, %v644
        %646 = vmatmul.f32.gmra.mxu0 %v411
        %v647 = vpop.f32.mrf.mxu0
        %v648 = vadd.f32 %v466, %v647
        %649 = vmatmul.f32.gmra.mxu0 %v412
        %v650 = vpop.f32.mrf.mxu0
        %v651 = vadd.f32 %v466, %v650
        %652 = vmatmul.f32.gmra.mxu0 %v413
        %v653 = vpop.f32.mrf.mxu0
        %v654 = vadd.f32 %v466, %v653
        %655 = vmatmul.f32.gmra.mxu0 %v414
        %v656 = vpop.f32.mrf.mxu0
        %v657 = vadd.f32 %v466, %v656
        %658 = vmatmul.f32.gmra.mxu0 %v415
        %v659 = vpop.f32.mrf.mxu0
        %v660 = vadd.f32 %v466, %v659
        %661 = vmatmul.f32.gmra.mxu0 %v416
        %v662 = vpop.f32.mrf.mxu0
        %v663 = vadd.f32 %v466, %v662
        %664 = vmatmul.f32.gmra.mxu0 %v417
        %v665 = vpop.f32.mrf.mxu0
        %v666 = vadd.f32 %v466, %v665
        %667 = vmatmul.f32.gmra.mxu0 %v418
        %v668 = vpop.f32.mrf.mxu0
        %v669 = vadd.f32 %v466, %v668
        %670 = vmatmul.f32.gmra.mxu0 %v419
        %v671 = vpop.f32.mrf.mxu0
        %v672 = vadd.f32 %v466, %v671
        %673 = vmatmul.f32.gmra.mxu0 %v420
        %v674 = vpop.f32.mrf.mxu0
        %v675 = vadd.f32 %v466, %v674
        %676 = vmatmul.f32.gmra.mxu0 %v421
        %v677 = vpop.f32.mrf.mxu0
        %v678 = vadd.f32 %v466, %v677
        %679 = vmatmul.f32.gmra.mxu0 %v422
        %v680 = vpop.f32.mrf.mxu0
        %v681 = vadd.f32 %v466, %v680
        %682 = vmatmul.f32.gmra.mxu0 %v423
        %v683 = vpop.f32.mrf.mxu0
        %v684 = vadd.f32 %v466, %v683
        %685 = vmatmul.f32.gmra.mxu0 %v424
        %v686 = vpop.f32.mrf.mxu0
        %v687 = vadd.f32 %v466, %v686
        %688 = vmatmul.f32.gmra.mxu0 %v425
        %v689 = vpop.f32.mrf.mxu0
        %v690 = vadd.f32 %v466, %v689
        %691 = vmatmul.f32.gmra.mxu0 %v426
        %v692 = vpop.f32.mrf.mxu0
        %v693 = vadd.f32 %v466, %v692
        %694 = vdwg.mxu0
        %v695 = vmul.f32 %v487, 0.5
        %v696 = vmul.f32 %v600, 0.5
        %v697 = vmul.f32 %v490, 0.5
        %v698 = vmul.f32 %v603, 0.5
        %v699 = vmul.f32 %v493, 0.5
        %v700 = vmul.f32 %v606, 0.5
        %v701 = vmul.f32 %v496, 0.5
        %v702 = vmul.f32 %v609, 0.5
        %v703 = vmul.f32 %v499, 0.5
        %v704 = vmul.f32 %v612, 0.5
        %v705 = vmul.f32 %v502, 0.5
        %v706 = vmul.f32 %v615, 0.5
        %v707 = vmul.f32 %v505, 0.5
        %v708 = vmul.f32 %v618, 0.5
        %v709 = vmul.f32 %v508, 0.5
        %v710 = vmul.f32 %v621, 0.5
        %v711 = vmul.f32 %v511, 0.5
        %v712 = vmul.f32 %v624, 0.5
        %v713 = vmul.f32 %v514, 0.5
        %v714 = vmul.f32 %v627, 0.5
        %v715 = vmul.f32 %v517, 0.5
        %v716 = vmul.f32 %v630, 0.5
        %v717 = vmul.f32 %v520, 0.5
        %v718 = vmul.f32 %v633, 0.5
        %v719 = vmul.f32 %v523, 0.5
        %v720 = vmul.f32 %v636, 0.5
        %v721 = vmul.f32 %v526, 0.5
        %v722 = vmul.f32 %v639, 0.5
        %v723 = vmul.f32 %v529, 0.5
        %v724 = vmul.f32 %v642, 0.5
        %v725 = vmul.f32 %v532, 0.5
        %v726 = vmul.f32 %v645, 0.5
        %v727 = vmul.f32 %v535, 0.5
        %v728 = vmul.f32 %v648, 0.5
        %v729 = vmul.f32 %v538, 0.5
        %v730 = vmul.f32 %v651, 0.5
        %v731 = vmul.f32 %v541, 0.5
        %v732 = vmul.f32 %v654, 0.5
        %v733 = vmul.f32 %v544, 0.5
        %v734 = vmul.f32 %v657, 0.5
        %v735 = vmul.f32 %v547, 0.5
        %v736 = vmul.f32 %v660, 0.5
        %v737 = vmul.f32 %v550, 0.5
        %v738 = vmul.f32 %v663, 0.5
        %v739 = vmul.f32 %v553, 0.5
        %v740 = vmul.f32 %v666, 0.5
        %v741 = vmul.f32 %v556, 0.5
        %v742 = vmul.f32 %v669, 0.5
        %v743 = vmul.f32 %v559, 0.5
        %v744 = vmul.f32 %v672, 0.5
        %v745 = vmul.f32 %v562, 0.5
        %v746 = vmul.f32 %v675, 0.5
        %v747 = vmul.f32 %v565, 0.5
        %v748 = vmul.f32 %v678, 0.5
        %v749 = vmul.f32 %v568, 0.5
        %v750 = vmul.f32 %v681, 0.5
        %v751 = vmul.f32 %v571, 0.5
        %v752 = vmul.f32 %v684, 0.5
        %v753 = vmul.f32 %v574, 0.5
        %v754 = vmul.f32 %v687, 0.5
        %v755 = vmul.f32 %v577, 0.5
        %v756 = vmul.f32 %v690, 0.5
        %v757 = vmul.f32 %v580, 0.5
        %v758 = vmul.f32 %v693, 0.5
        %v759 = vmul.f32 %v487, 0.70710677
        %v760 = vmul.f32 %v600, 0.70710677
        %v761 = vmul.f32 %v490, 0.70710677
        %v762 = vmul.f32 %v603, 0.70710677
        %v763 = vmul.f32 %v493, 0.70710677
        %v764 = vmul.f32 %v606, 0.70710677
        %v765 = vmul.f32 %v496, 0.70710677
        %v766 = vmul.f32 %v609, 0.70710677
        %v767 = vmul.f32 %v499, 0.70710677
        %v768 = vmul.f32 %v612, 0.70710677
        %v769 = vmul.f32 %v502, 0.70710677
        %v770 = vmul.f32 %v615, 0.70710677
        %v771 = vmul.f32 %v505, 0.70710677
        %v772 = vmul.f32 %v618, 0.70710677
        %v773 = vmul.f32 %v508, 0.70710677
        %v774 = vmul.f32 %v621, 0.70710677
        %v775 = vmul.f32 %v511, 0.70710677
        %v776 = vmul.f32 %v624, 0.70710677
        %v777 = vmul.f32 %v514, 0.70710677
        %v778 = vmul.f32 %v627, 0.70710677
        %v779 = vmul.f32 %v517, 0.70710677
        %v780 = vmul.f32 %v630, 0.70710677
        %v781 = vmul.f32 %v520, 0.70710677
        %v782 = vmul.f32 %v633, 0.70710677
        %v783 = vmul.f32 %v523, 0.70710677
        %v784 = vmul.f32 %v636, 0.70710677
        %v785 = vmul.f32 %v526, 0.70710677
        %v786 = vmul.f32 %v639, 0.70710677
        %v787 = vmul.f32 %v529, 0.70710677
        %v788 = vmul.f32 %v642, 0.70710677
        %v789 = vmul.f32 %v532, 0.70710677
        %v790 = vmul.f32 %v645, 0.70710677
        %v791 = vmul.f32 %v535, 0.70710677
        %v792 = vmul.f32 %v648, 0.70710677
        %v793 = vmul.f32 %v538, 0.70710677
        %v794 = vmul.f32 %v651, 0.70710677
        %v795 = vmul.f32 %v541, 0.70710677
        %v796 = vmul.f32 %v654, 0.70710677
        %v797 = vmul.f32 %v544, 0.70710677
        %v798 = vmul.f32 %v657, 0.70710677
        %v799 = vmul.f32 %v547, 0.70710677
        %v800 = vmul.f32 %v660, 0.70710677
        %v801 = vmul.f32 %v550, 0.70710677
        %v802 = vmul.f32 %v663, 0.70710677
        %v803 = vmul.f32 %v553, 0.70710677
        %v804 = vmul.f32 %v666, 0.70710677
        %v805 = vmul.f32 %v556, 0.70710677
        %v806 = vmul.f32 %v669, 0.70710677
        %v807 = vmul.f32 %v559, 0.70710677
        %v808 = vmul.f32 %v672, 0.70710677
        %v809 = vmul.f32 %v562, 0.70710677
        %v810 = vmul.f32 %v675, 0.70710677
        %v811 = vmul.f32 %v565, 0.70710677
        %v812 = vmul.f32 %v678, 0.70710677
        %v813 = vmul.f32 %v568, 0.70710677
        %v814 = vmul.f32 %v681, 0.70710677
        %v815 = vmul.f32 %v571, 0.70710677
        %v816 = vmul.f32 %v684, 0.70710677
        %v817 = vmul.f32 %v574, 0.70710677
        %v818 = vmul.f32 %v687, 0.70710677
        %v819 = vmul.f32 %v577, 0.70710677
        %v820 = vmul.f32 %v690, 0.70710677
        %v821 = vmul.f32 %v580, 0.70710677
        %v822 = vmul.f32 %v693, 0.70710677
        %v823 = vand.u32 2147483647, %v759
        %v824 = vand.u32 2147483647, %v760
        %v825 = vand.u32 2147483647, %v761
        %v826 = vand.u32 2147483647, %v762
        %v827 = vand.u32 2147483647, %v763
        %v828 = vand.u32 2147483647, %v764
        %v829 = vand.u32 2147483647, %v765
        %v830 = vand.u32 2147483647, %v766
        %v831 = vand.u32 2147483647, %v767
        %v832 = vand.u32 2147483647, %v768
        %v833 = vand.u32 2147483647, %v769
        %v834 = vand.u32 2147483647, %v770
        %v835 = vand.u32 2147483647, %v771
        %v836 = vand.u32 2147483647, %v772
        %v837 = vand.u32 2147483647, %v773
        %v838 = vand.u32 2147483647, %v774
        %v839 = vand.u32 2147483647, %v775
        %v840 = vand.u32 2147483647, %v776
        %v841 = vand.u32 2147483647, %v777
        %v842 = vand.u32 2147483647, %v778
        %v843 = vand.u32 2147483647, %v779
        %v844 = vand.u32 2147483647, %v780
        %v845 = vand.u32 2147483647, %v781
        %v846 = vand.u32 2147483647, %v782
        %v847 = vand.u32 2147483647, %v783
        %v848 = vand.u32 2147483647, %v784
        %v849 = vand.u32 2147483647, %v785
        %v850 = vand.u32 2147483647, %v786
        %v851 = vand.u32 2147483647, %v787
        %v852 = vand.u32 2147483647, %v788
        %v853 = vand.u32 2147483647, %v789
        %v854 = vand.u32 2147483647, %v790
        %v855 = vand.u32 2147483647, %v791
        %v856 = vand.u32 2147483647, %v792
        %v857 = vand.u32 2147483647, %v793
        %v858 = vand.u32 2147483647, %v794
        %v859 = vand.u32 2147483647, %v795
        %v860 = vand.u32 2147483647, %v796
        %v861 = vand.u32 2147483647, %v797
        %v862 = vand.u32 2147483647, %v798
        %v863 = vand.u32 2147483647, %v799
        %v864 = vand.u32 2147483647, %v800
        %v865 = vand.u32 2147483647, %v801
        %v866 = vand.u32 2147483647, %v802
        %v867 = vand.u32 2147483647, %v803
        %v868 = vand.u32 2147483647, %v804
        %v869 = vand.u32 2147483647, %v805
        %v870 = vand.u32 2147483647, %v806
        %v871 = vand.u32 2147483647, %v807
        %v872 = vand.u32 2147483647, %v808
        %v873 = vand.u32 2147483647, %v809
        %v874 = vand.u32 2147483647, %v810
        %v875 = vand.u32 2147483647, %v811
        %v876 = vand.u32 2147483647, %v812
        %v877 = vand.u32 2147483647, %v813
        %v878 = vand.u32 2147483647, %v814
        %v879 = vand.u32 2147483647, %v815
        %v880 = vand.u32 2147483647, %v816
        %v881 = vand.u32 2147483647, %v817
        %v882 = vand.u32 2147483647, %v818
        %v883 = vand.u32 2147483647, %v819
        %v884 = vand.u32 2147483647, %v820
        %v885 = vand.u32 2147483647, %v821
        %v886 = vand.u32 2147483647, %v822
        %v887 = vmul.f32 %v823, 0.3275911
        %v888 = vmul.f32 %v824, 0.3275911
        %v889 = vmul.f32 %v825, 0.3275911
        %v890 = vmul.f32 %v826, 0.3275911
        %v891 = vmul.f32 %v827, 0.3275911
        %v892 = vmul.f32 %v828, 0.3275911
        %v893 = vmul.f32 %v829, 0.3275911
        %v894 = vmul.f32 %v830, 0.3275911
        %v895 = vmul.f32 %v831, 0.3275911
        %v896 = vmul.f32 %v832, 0.3275911
        %v897 = vmul.f32 %v833, 0.3275911
        %v898 = vmul.f32 %v834, 0.3275911
        %v899 = vmul.f32 %v835, 0.3275911
        %v900 = vmul.f32 %v836, 0.3275911
        %v901 = vmul.f32 %v837, 0.3275911
        %v902 = vmul.f32 %v838, 0.3275911
        %v903 = vmul.f32 %v839, 0.3275911
        %v904 = vmul.f32 %v840, 0.3275911
        %v905 = vmul.f32 %v841, 0.3275911
        %v906 = vmul.f32 %v842, 0.3275911
        %v907 = vmul.f32 %v843, 0.3275911
        %v908 = vmul.f32 %v844, 0.3275911
        %v909 = vmul.f32 %v845, 0.3275911
        %v910 = vmul.f32 %v846, 0.3275911
        %v911 = vmul.f32 %v847, 0.3275911
        %v912 = vmul.f32 %v848, 0.3275911
        %v913 = vmul.f32 %v849, 0.3275911
        %v914 = vmul.f32 %v850, 0.3275911
        %v915 = vmul.f32 %v851, 0.3275911
        %v916 = vmul.f32 %v852, 0.3275911
        %v917 = vmul.f32 %v853, 0.3275911
        %v918 = vmul.f32 %v854, 0.3275911
        %v919 = vmul.f32 %v855, 0.3275911
        %v920 = vmul.f32 %v856, 0.3275911
        %v921 = vmul.f32 %v857, 0.3275911
        %v922 = vmul.f32 %v858, 0.3275911
        %v923 = vmul.f32 %v859, 0.3275911
        %v924 = vmul.f32 %v860, 0.3275911
        %v925 = vmul.f32 %v861, 0.3275911
        %v926 = vmul.f32 %v862, 0.3275911
        %v927 = vmul.f32 %v863, 0.3275911
        %v928 = vmul.f32 %v864, 0.3275911
        %v929 = vmul.f32 %v865, 0.3275911
        %v930 = vmul.f32 %v866, 0.3275911
        %v931 = vmul.f32 %v867, 0.3275911
        %v932 = vmul.f32 %v868, 0.3275911
        %v933 = vmul.f32 %v869, 0.3275911
        %v934 = vmul.f32 %v870, 0.3275911
        %v935 = vmul.f32 %v871, 0.3275911
        %v936 = vmul.f32 %v872, 0.3275911
        %v937 = vmul.f32 %v873, 0.3275911
        %v938 = vmul.f32 %v874, 0.3275911
        %v939 = vmul.f32 %v875, 0.3275911
        %v940 = vmul.f32 %v876, 0.3275911
        %v941 = vmul.f32 %v877, 0.3275911
        %v942 = vmul.f32 %v878, 0.3275911
        %v943 = vmul.f32 %v879, 0.3275911
        %v944 = vmul.f32 %v880, 0.3275911
        %v945 = vmul.f32 %v881, 0.3275911
        %v946 = vmul.f32 %v882, 0.3275911
        %v947 = vmul.f32 %v883, 0.3275911
        %v948 = vmul.f32 %v884, 0.3275911
        %v949 = vmul.f32 %v885, 0.3275911
        %v950 = vmul.f32 %v886, 0.3275911
        %v951 = vadd.f32 %v887, 1.0
        %v952 = vadd.f32 %v888, 1.0
        %v953 = vadd.f32 %v889, 1.0
        %v954 = vadd.f32 %v890, 1.0
        %v955 = vadd.f32 %v891, 1.0
        %v956 = vadd.f32 %v892, 1.0
        %v957 = vadd.f32 %v893, 1.0
        %v958 = vadd.f32 %v894, 1.0
        %v959 = vadd.f32 %v895, 1.0
        %v960 = vadd.f32 %v896, 1.0
        %v961 = vadd.f32 %v897, 1.0
        %v962 = vadd.f32 %v898, 1.0
        %v963 = vadd.f32 %v899, 1.0
        %v964 = vadd.f32 %v900, 1.0
        %v965 = vadd.f32 %v901, 1.0
        %v966 = vadd.f32 %v902, 1.0
        %v967 = vadd.f32 %v903, 1.0
        %v968 = vadd.f32 %v904, 1.0
        %v969 = vadd.f32 %v905, 1.0
        %v970 = vadd.f32 %v906, 1.0
        %v971 = vadd.f32 %v907, 1.0
        %v972 = vadd.f32 %v908, 1.0
        %v973 = vadd.f32 %v909, 1.0
        %v974 = vadd.f32 %v910, 1.0
        %v975 = vadd.f32 %v911, 1.0
        %v976 = vadd.f32 %v912, 1.0
        %v977 = vadd.f32 %v913, 1.0
        %v978 = vadd.f32 %v914, 1.0
        %v979 = vadd.f32 %v915, 1.0
        %v980 = vadd.f32 %v916, 1.0
        %v981 = vadd.f32 %v917, 1.0
        %v982 = vadd.f32 %v918, 1.0
        %v983 = vadd.f32 %v919, 1.0
        %v984 = vadd.f32 %v920, 1.0
        %v985 = vadd.f32 %v921, 1.0
        %v986 = vadd.f32 %v922, 1.0
        %v987 = vadd.f32 %v923, 1.0
        %v988 = vadd.f32 %v924, 1.0
        %v989 = vadd.f32 %v925, 1.0
        %v990 = vadd.f32 %v926, 1.0
        %v991 = vadd.f32 %v927, 1.0
        %v992 = vadd.f32 %v928, 1.0
        %v993 = vadd.f32 %v929, 1.0
        %v994 = vadd.f32 %v930, 1.0
        %v995 = vadd.f32 %v931, 1.0
        %v996 = vadd.f32 %v932, 1.0
        %v997 = vadd.f32 %v933, 1.0
        %v998 = vadd.f32 %v934, 1.0
        %v999 = vadd.f32 %v935, 1.0
        %v1000 = vadd.f32 %v936, 1.0
        %v1001 = vadd.f32 %v937, 1.0
        %v1002 = vadd.f32 %v938, 1.0
        %v1003 = vadd.f32 %v939, 1.0
        %v1004 = vadd.f32 %v940, 1.0
        %v1005 = vadd.f32 %v941, 1.0
        %v1006 = vadd.f32 %v942, 1.0
        %v1007 = vadd.f32 %v943, 1.0
        %v1008 = vadd.f32 %v944, 1.0
        %v1009 = vadd.f32 %v945, 1.0
        %v1010 = vadd.f32 %v946, 1.0
        %v1011 = vadd.f32 %v947, 1.0
        %v1012 = vadd.f32 %v948, 1.0
        %v1013 = vadd.f32 %v949, 1.0
        %v1014 = vadd.f32 %v950, 1.0
        %v1015 = vrcp.pop %v951
        %v1016 = vmul.f32 %v951, %v1015
        %v1017 = vsub.f32 1.0, %v1016
        %v1018 = vmul.f32 %v1015, %v1017
        %v1019 = vadd.f32 %v1015, %v1018
        %vm1020 = vweird.f32 %v951
        %vm1021 = vweird.f32 %v1015
        %vm1022 = vmor %vm1020, %vm1021
        %v1023 = vsel %vm1022, %v1015, %v1019
        %v1024 = vand.u32 2147483647, %v951
        %vm1025 = vcmp.eq.f32.partialorder %v1024, 8.507059e+37
        %v1026 = vand.u32 %v951, 2147483648
        %v1027 = vor.u32 1.1754944e-38, %v1026
        %v1028 = vsel %vm1025, %v1027, %v1023
        %v1029 = vmul.f32 1.0, %v1028
        %v1030 = vrcp.pop %v952
        %v1031 = vmul.f32 %v952, %v1030
        %v1032 = vsub.f32 1.0, %v1031
        %v1033 = vmul.f32 %v1030, %v1032
        %v1034 = vadd.f32 %v1030, %v1033
        %vm1035 = vweird.f32 %v952
        %vm1036 = vweird.f32 %v1030
        %vm1037 = vmor %vm1035, %vm1036
        %v1038 = vsel %vm1037, %v1030, %v1034
        %v1039 = vand.u32 2147483647, %v952
        %vm1040 = vcmp.eq.f32.partialorder %v1039, 8.507059e+37
        %v1041 = vand.u32 %v952, 2147483648
        %v1042 = vor.u32 1.1754944e-38, %v1041
        %v1043 = vsel %vm1040, %v1042, %v1038
        %v1044 = vmul.f32 1.0, %v1043
        %v1045 = vrcp.pop %v953
        %v1046 = vmul.f32 %v953, %v1045
        %v1047 = vsub.f32 1.0, %v1046
        %v1048 = vmul.f32 %v1045, %v1047
        %v1049 = vadd.f32 %v1045, %v1048
        %vm1050 = vweird.f32 %v953
        %vm1051 = vweird.f32 %v1045
        %vm1052 = vmor %vm1050, %vm1051
        %v1053 = vsel %vm1052, %v1045, %v1049
        %v1054 = vand.u32 2147483647, %v953
        %vm1055 = vcmp.eq.f32.partialorder %v1054, 8.507059e+37
        %v1056 = vand.u32 %v953, 2147483648
        %v1057 = vor.u32 1.1754944e-38, %v1056
        %v1058 = vsel %vm1055, %v1057, %v1053
        %v1059 = vmul.f32 1.0, %v1058
        %v1060 = vrcp.pop %v954
        %v1061 = vmul.f32 %v954, %v1060
        %v1062 = vsub.f32 1.0, %v1061
        %v1063 = vmul.f32 %v1060, %v1062
        %v1064 = vadd.f32 %v1060, %v1063
        %vm1065 = vweird.f32 %v954
        %vm1066 = vweird.f32 %v1060
        %vm1067 = vmor %vm1065, %vm1066
        %v1068 = vsel %vm1067, %v1060, %v1064
        %v1069 = vand.u32 2147483647, %v954
        %vm1070 = vcmp.eq.f32.partialorder %v1069, 8.507059e+37
        %v1071 = vand.u32 %v954, 2147483648
        %v1072 = vor.u32 1.1754944e-38, %v1071
        %v1073 = vsel %vm1070, %v1072, %v1068
        %v1074 = vmul.f32 1.0, %v1073
        %v1075 = vrcp.pop %v955
        %v1076 = vmul.f32 %v955, %v1075
        %v1077 = vsub.f32 1.0, %v1076
        %v1078 = vmul.f32 %v1075, %v1077
        %v1079 = vadd.f32 %v1075, %v1078
        %vm1080 = vweird.f32 %v955
        %vm1081 = vweird.f32 %v1075
        %vm1082 = vmor %vm1080, %vm1081
        %v1083 = vsel %vm1082, %v1075, %v1079
        %v1084 = vand.u32 2147483647, %v955
        %vm1085 = vcmp.eq.f32.partialorder %v1084, 8.507059e+37
        %v1086 = vand.u32 %v955, 2147483648
        %v1087 = vor.u32 1.1754944e-38, %v1086
        %v1088 = vsel %vm1085, %v1087, %v1083
        %v1089 = vmul.f32 1.0, %v1088
        %v1090 = vrcp.pop %v956
        %v1091 = vmul.f32 %v956, %v1090
        %v1092 = vsub.f32 1.0, %v1091
        %v1093 = vmul.f32 %v1090, %v1092
        %v1094 = vadd.f32 %v1090, %v1093
        %vm1095 = vweird.f32 %v956
        %vm1096 = vweird.f32 %v1090
        %vm1097 = vmor %vm1095, %vm1096
        %v1098 = vsel %vm1097, %v1090, %v1094
        %v1099 = vand.u32 2147483647, %v956
        %vm1100 = vcmp.eq.f32.partialorder %v1099, 8.507059e+37
        %v1101 = vand.u32 %v956, 2147483648
        %v1102 = vor.u32 1.1754944e-38, %v1101
        %v1103 = vsel %vm1100, %v1102, %v1098
        %v1104 = vmul.f32 1.0, %v1103
        %v1105 = vrcp.pop %v957
        %v1106 = vmul.f32 %v957, %v1105
        %v1107 = vsub.f32 1.0, %v1106
        %v1108 = vmul.f32 %v1105, %v1107
        %v1109 = vadd.f32 %v1105, %v1108
        %vm1110 = vweird.f32 %v957
        %vm1111 = vweird.f32 %v1105
        %vm1112 = vmor %vm1110, %vm1111
        %v1113 = vsel %vm1112, %v1105, %v1109
        %v1114 = vand.u32 2147483647, %v957
        %vm1115 = vcmp.eq.f32.partialorder %v1114, 8.507059e+37
        %v1116 = vand.u32 %v957, 2147483648
        %v1117 = vor.u32 1.1754944e-38, %v1116
        %v1118 = vsel %vm1115, %v1117, %v1113
        %v1119 = vmul.f32 1.0, %v1118
        %v1120 = vrcp.pop %v958
        %v1121 = vmul.f32 %v958, %v1120
        %v1122 = vsub.f32 1.0, %v1121
        %v1123 = vmul.f32 %v1120, %v1122
        %v1124 = vadd.f32 %v1120, %v1123
        %vm1125 = vweird.f32 %v958
        %vm1126 = vweird.f32 %v1120
        %vm1127 = vmor %vm1125, %vm1126
        %v1128 = vsel %vm1127, %v1120, %v1124
        %v1129 = vand.u32 2147483647, %v958
        %vm1130 = vcmp.eq.f32.partialorder %v1129, 8.507059e+37
        %v1131 = vand.u32 %v958, 2147483648
        %v1132 = vor.u32 1.1754944e-38, %v1131
        %v1133 = vsel %vm1130, %v1132, %v1128
        %v1134 = vmul.f32 1.0, %v1133
        %v1135 = vrcp.pop %v959
        %v1136 = vmul.f32 %v959, %v1135
        %v1137 = vsub.f32 1.0, %v1136
        %v1138 = vmul.f32 %v1135, %v1137
        %v1139 = vadd.f32 %v1135, %v1138
        %vm1140 = vweird.f32 %v959
        %vm1141 = vweird.f32 %v1135
        %vm1142 = vmor %vm1140, %vm1141
        %v1143 = vsel %vm1142, %v1135, %v1139
        %v1144 = vand.u32 2147483647, %v959
        %vm1145 = vcmp.eq.f32.partialorder %v1144, 8.507059e+37
        %v1146 = vand.u32 %v959, 2147483648
        %v1147 = vor.u32 1.1754944e-38, %v1146
        %v1148 = vsel %vm1145, %v1147, %v1143
        %v1149 = vmul.f32 1.0, %v1148
        %v1150 = vrcp.pop %v960
        %v1151 = vmul.f32 %v960, %v1150
        %v1152 = vsub.f32 1.0, %v1151
        %v1153 = vmul.f32 %v1150, %v1152
        %v1154 = vadd.f32 %v1150, %v1153
        %vm1155 = vweird.f32 %v960
        %vm1156 = vweird.f32 %v1150
        %vm1157 = vmor %vm1155, %vm1156
        %v1158 = vsel %vm1157, %v1150, %v1154
        %v1159 = vand.u32 2147483647, %v960
        %vm1160 = vcmp.eq.f32.partialorder %v1159, 8.507059e+37
        %v1161 = vand.u32 %v960, 2147483648
        %v1162 = vor.u32 1.1754944e-38, %v1161
        %v1163 = vsel %vm1160, %v1162, %v1158
        %v1164 = vmul.f32 1.0, %v1163
        %v1165 = vrcp.pop %v961
        %v1166 = vmul.f32 %v961, %v1165
        %v1167 = vsub.f32 1.0, %v1166
        %v1168 = vmul.f32 %v1165, %v1167
        %v1169 = vadd.f32 %v1165, %v1168
        %vm1170 = vweird.f32 %v961
        %vm1171 = vweird.f32 %v1165
        %vm1172 = vmor %vm1170, %vm1171
        %v1173 = vsel %vm1172, %v1165, %v1169
        %v1174 = vand.u32 2147483647, %v961
        %vm1175 = vcmp.eq.f32.partialorder %v1174, 8.507059e+37
        %v1176 = vand.u32 %v961, 2147483648
        %v1177 = vor.u32 1.1754944e-38, %v1176
        %v1178 = vsel %vm1175, %v1177, %v1173
        %v1179 = vmul.f32 1.0, %v1178
        %v1180 = vrcp.pop %v962
        %v1181 = vmul.f32 %v962, %v1180
        %v1182 = vsub.f32 1.0, %v1181
        %v1183 = vmul.f32 %v1180, %v1182
        %v1184 = vadd.f32 %v1180, %v1183
        %vm1185 = vweird.f32 %v962
        %vm1186 = vweird.f32 %v1180
        %vm1187 = vmor %vm1185, %vm1186
        %v1188 = vsel %vm1187, %v1180, %v1184
        %v1189 = vand.u32 2147483647, %v962
        %vm1190 = vcmp.eq.f32.partialorder %v1189, 8.507059e+37
        %v1191 = vand.u32 %v962, 2147483648
        %v1192 = vor.u32 1.1754944e-38, %v1191
        %v1193 = vsel %vm1190, %v1192, %v1188
        %v1194 = vmul.f32 1.0, %v1193
        %v1195 = vrcp.pop %v963
        %v1196 = vmul.f32 %v963, %v1195
        %v1197 = vsub.f32 1.0, %v1196
        %v1198 = vmul.f32 %v1195, %v1197
        %v1199 = vadd.f32 %v1195, %v1198
        %vm1200 = vweird.f32 %v963
        %vm1201 = vweird.f32 %v1195
        %vm1202 = vmor %vm1200, %vm1201
        %v1203 = vsel %vm1202, %v1195, %v1199
        %v1204 = vand.u32 2147483647, %v963
        %vm1205 = vcmp.eq.f32.partialorder %v1204, 8.507059e+37
        %v1206 = vand.u32 %v963, 2147483648
        %v1207 = vor.u32 1.1754944e-38, %v1206
        %v1208 = vsel %vm1205, %v1207, %v1203
        %v1209 = vmul.f32 1.0, %v1208
        %v1210 = vrcp.pop %v964
        %v1211 = vmul.f32 %v964, %v1210
        %v1212 = vsub.f32 1.0, %v1211
        %v1213 = vmul.f32 %v1210, %v1212
        %v1214 = vadd.f32 %v1210, %v1213
        %vm1215 = vweird.f32 %v964
        %vm1216 = vweird.f32 %v1210
        %vm1217 = vmor %vm1215, %vm1216
        %v1218 = vsel %vm1217, %v1210, %v1214
        %v1219 = vand.u32 2147483647, %v964
        %vm1220 = vcmp.eq.f32.partialorder %v1219, 8.507059e+37
        %v1221 = vand.u32 %v964, 2147483648
        %v1222 = vor.u32 1.1754944e-38, %v1221
        %v1223 = vsel %vm1220, %v1222, %v1218
        %v1224 = vmul.f32 1.0, %v1223
        %v1225 = vrcp.pop %v965
        %v1226 = vmul.f32 %v965, %v1225
        %v1227 = vsub.f32 1.0, %v1226
        %v1228 = vmul.f32 %v1225, %v1227
        %v1229 = vadd.f32 %v1225, %v1228
        %vm1230 = vweird.f32 %v965
        %vm1231 = vweird.f32 %v1225
        %vm1232 = vmor %vm1230, %vm1231
        %v1233 = vsel %vm1232, %v1225, %v1229
        %v1234 = vand.u32 2147483647, %v965
        %vm1235 = vcmp.eq.f32.partialorder %v1234, 8.507059e+37
        %v1236 = vand.u32 %v965, 2147483648
        %v1237 = vor.u32 1.1754944e-38, %v1236
        %v1238 = vsel %vm1235, %v1237, %v1233
        %v1239 = vmul.f32 1.0, %v1238
        %v1240 = vrcp.pop %v966
        %v1241 = vmul.f32 %v966, %v1240
        %v1242 = vsub.f32 1.0, %v1241
        %v1243 = vmul.f32 %v1240, %v1242
        %v1244 = vadd.f32 %v1240, %v1243
        %vm1245 = vweird.f32 %v966
        %vm1246 = vweird.f32 %v1240
        %vm1247 = vmor %vm1245, %vm1246
        %v1248 = vsel %vm1247, %v1240, %v1244
        %v1249 = vand.u32 2147483647, %v966
        %vm1250 = vcmp.eq.f32.partialorder %v1249, 8.507059e+37
        %v1251 = vand.u32 %v966, 2147483648
        %v1252 = vor.u32 1.1754944e-38, %v1251
        %v1253 = vsel %vm1250, %v1252, %v1248
        %v1254 = vmul.f32 1.0, %v1253
        %v1255 = vrcp.pop %v967
        %v1256 = vmul.f32 %v967, %v1255
        %v1257 = vsub.f32 1.0, %v1256
        %v1258 = vmul.f32 %v1255, %v1257
        %v1259 = vadd.f32 %v1255, %v1258
        %vm1260 = vweird.f32 %v967
        %vm1261 = vweird.f32 %v1255
        %vm1262 = vmor %vm1260, %vm1261
        %v1263 = vsel %vm1262, %v1255, %v1259
        %v1264 = vand.u32 2147483647, %v967
        %vm1265 = vcmp.eq.f32.partialorder %v1264, 8.507059e+37
        %v1266 = vand.u32 %v967, 2147483648
        %v1267 = vor.u32 1.1754944e-38, %v1266
        %v1268 = vsel %vm1265, %v1267, %v1263
        %v1269 = vmul.f32 1.0, %v1268
        %v1270 = vrcp.pop %v968
        %v1271 = vmul.f32 %v968, %v1270
        %v1272 = vsub.f32 1.0, %v1271
        %v1273 = vmul.f32 %v1270, %v1272
        %v1274 = vadd.f32 %v1270, %v1273
        %vm1275 = vweird.f32 %v968
        %vm1276 = vweird.f32 %v1270
        %vm1277 = vmor %vm1275, %vm1276
        %v1278 = vsel %vm1277, %v1270, %v1274
        %v1279 = vand.u32 2147483647, %v968
        %vm1280 = vcmp.eq.f32.partialorder %v1279, 8.507059e+37
        %v1281 = vand.u32 %v968, 2147483648
        %v1282 = vor.u32 1.1754944e-38, %v1281
        %v1283 = vsel %vm1280, %v1282, %v1278
        %v1284 = vmul.f32 1.0, %v1283
        %v1285 = vrcp.pop %v969
        %v1286 = vmul.f32 %v969, %v1285
        %v1287 = vsub.f32 1.0, %v1286
        %v1288 = vmul.f32 %v1285, %v1287
        %v1289 = vadd.f32 %v1285, %v1288
        %vm1290 = vweird.f32 %v969
        %vm1291 = vweird.f32 %v1285
        %vm1292 = vmor %vm1290, %vm1291
        %v1293 = vsel %vm1292, %v1285, %v1289
        %v1294 = vand.u32 2147483647, %v969
        %vm1295 = vcmp.eq.f32.partialorder %v1294, 8.507059e+37
        %v1296 = vand.u32 %v969, 2147483648
        %v1297 = vor.u32 1.1754944e-38, %v1296
        %v1298 = vsel %vm1295, %v1297, %v1293
        %v1299 = vmul.f32 1.0, %v1298
        %v1300 = vrcp.pop %v970
        %v1301 = vmul.f32 %v970, %v1300
        %v1302 = vsub.f32 1.0, %v1301
        %v1303 = vmul.f32 %v1300, %v1302
        %v1304 = vadd.f32 %v1300, %v1303
        %vm1305 = vweird.f32 %v970
        %vm1306 = vweird.f32 %v1300
        %vm1307 = vmor %vm1305, %vm1306
        %v1308 = vsel %vm1307, %v1300, %v1304
        %v1309 = vand.u32 2147483647, %v970
        %vm1310 = vcmp.eq.f32.partialorder %v1309, 8.507059e+37
        %v1311 = vand.u32 %v970, 2147483648
        %v1312 = vor.u32 1.1754944e-38, %v1311
        %v1313 = vsel %vm1310, %v1312, %v1308
        %v1314 = vmul.f32 1.0, %v1313
        %v1315 = vrcp.pop %v971
        %v1316 = vmul.f32 %v971, %v1315
        %v1317 = vsub.f32 1.0, %v1316
        %v1318 = vmul.f32 %v1315, %v1317
        %v1319 = vadd.f32 %v1315, %v1318
        %vm1320 = vweird.f32 %v971
        %vm1321 = vweird.f32 %v1315
        %vm1322 = vmor %vm1320, %vm1321
        %v1323 = vsel %vm1322, %v1315, %v1319
        %v1324 = vand.u32 2147483647, %v971
        %vm1325 = vcmp.eq.f32.partialorder %v1324, 8.507059e+37
        %v1326 = vand.u32 %v971, 2147483648
        %v1327 = vor.u32 1.1754944e-38, %v1326
        %v1328 = vsel %vm1325, %v1327, %v1323
        %v1329 = vmul.f32 1.0, %v1328
        %v1330 = vrcp.pop %v972
        %v1331 = vmul.f32 %v972, %v1330
        %v1332 = vsub.f32 1.0, %v1331
        %v1333 = vmul.f32 %v1330, %v1332
        %v1334 = vadd.f32 %v1330, %v1333
        %vm1335 = vweird.f32 %v972
        %vm1336 = vweird.f32 %v1330
        %vm1337 = vmor %vm1335, %vm1336
        %v1338 = vsel %vm1337, %v1330, %v1334
        %v1339 = vand.u32 2147483647, %v972
        %vm1340 = vcmp.eq.f32.partialorder %v1339, 8.507059e+37
        %v1341 = vand.u32 %v972, 2147483648
        %v1342 = vor.u32 1.1754944e-38, %v1341
        %v1343 = vsel %vm1340, %v1342, %v1338
        %v1344 = vmul.f32 1.0, %v1343
        %v1345 = vrcp.pop %v973
        %v1346 = vmul.f32 %v973, %v1345
        %v1347 = vsub.f32 1.0, %v1346
        %v1348 = vmul.f32 %v1345, %v1347
        %v1349 = vadd.f32 %v1345, %v1348
        %vm1350 = vweird.f32 %v973
        %vm1351 = vweird.f32 %v1345
        %vm1352 = vmor %vm1350, %vm1351
        %v1353 = vsel %vm1352, %v1345, %v1349
        %v1354 = vand.u32 2147483647, %v973
        %vm1355 = vcmp.eq.f32.partialorder %v1354, 8.507059e+37
        %v1356 = vand.u32 %v973, 2147483648
        %v1357 = vor.u32 1.1754944e-38, %v1356
        %v1358 = vsel %vm1355, %v1357, %v1353
        %v1359 = vmul.f32 1.0, %v1358
        %v1360 = vrcp.pop %v974
        %v1361 = vmul.f32 %v974, %v1360
        %v1362 = vsub.f32 1.0, %v1361
        %v1363 = vmul.f32 %v1360, %v1362
        %v1364 = vadd.f32 %v1360, %v1363
        %vm1365 = vweird.f32 %v974
        %vm1366 = vweird.f32 %v1360
        %vm1367 = vmor %vm1365, %vm1366
        %v1368 = vsel %vm1367, %v1360, %v1364
        %v1369 = vand.u32 2147483647, %v974
        %vm1370 = vcmp.eq.f32.partialorder %v1369, 8.507059e+37
        %v1371 = vand.u32 %v974, 2147483648
        %v1372 = vor.u32 1.1754944e-38, %v1371
        %v1373 = vsel %vm1370, %v1372, %v1368
        %v1374 = vmul.f32 1.0, %v1373
        %v1375 = vrcp.pop %v975
        %v1376 = vmul.f32 %v975, %v1375
        %v1377 = vsub.f32 1.0, %v1376
        %v1378 = vmul.f32 %v1375, %v1377
        %v1379 = vadd.f32 %v1375, %v1378
        %vm1380 = vweird.f32 %v975
        %vm1381 = vweird.f32 %v1375
        %vm1382 = vmor %vm1380, %vm1381
        %v1383 = vsel %vm1382, %v1375, %v1379
        %v1384 = vand.u32 2147483647, %v975
        %vm1385 = vcmp.eq.f32.partialorder %v1384, 8.507059e+37
        %v1386 = vand.u32 %v975, 2147483648
        %v1387 = vor.u32 1.1754944e-38, %v1386
        %v1388 = vsel %vm1385, %v1387, %v1383
        %v1389 = vmul.f32 1.0, %v1388
        %v1390 = vrcp.pop %v976
        %v1391 = vmul.f32 %v976, %v1390
        %v1392 = vsub.f32 1.0, %v1391
        %v1393 = vmul.f32 %v1390, %v1392
        %v1394 = vadd.f32 %v1390, %v1393
        %vm1395 = vweird.f32 %v976
        %vm1396 = vweird.f32 %v1390
        %vm1397 = vmor %vm1395, %vm1396
        %v1398 = vsel %vm1397, %v1390, %v1394
        %v1399 = vand.u32 2147483647, %v976
        %vm1400 = vcmp.eq.f32.partialorder %v1399, 8.507059e+37
        %v1401 = vand.u32 %v976, 2147483648
        %v1402 = vor.u32 1.1754944e-38, %v1401
        %v1403 = vsel %vm1400, %v1402, %v1398
        %v1404 = vmul.f32 1.0, %v1403
        %v1405 = vrcp.pop %v977
        %v1406 = vmul.f32 %v977, %v1405
        %v1407 = vsub.f32 1.0, %v1406
        %v1408 = vmul.f32 %v1405, %v1407
        %v1409 = vadd.f32 %v1405, %v1408
        %vm1410 = vweird.f32 %v977
        %vm1411 = vweird.f32 %v1405
        %vm1412 = vmor %vm1410, %vm1411
        %v1413 = vsel %vm1412, %v1405, %v1409
        %v1414 = vand.u32 2147483647, %v977
        %vm1415 = vcmp.eq.f32.partialorder %v1414, 8.507059e+37
        %v1416 = vand.u32 %v977, 2147483648
        %v1417 = vor.u32 1.1754944e-38, %v1416
        %v1418 = vsel %vm1415, %v1417, %v1413
        %v1419 = vmul.f32 1.0, %v1418
        %v1420 = vrcp.pop %v978
        %v1421 = vmul.f32 %v978, %v1420
        %v1422 = vsub.f32 1.0, %v1421
        %v1423 = vmul.f32 %v1420, %v1422
        %v1424 = vadd.f32 %v1420, %v1423
        %vm1425 = vweird.f32 %v978
        %vm1426 = vweird.f32 %v1420
        %vm1427 = vmor %vm1425, %vm1426
        %v1428 = vsel %vm1427, %v1420, %v1424
        %v1429 = vand.u32 2147483647, %v978
        %vm1430 = vcmp.eq.f32.partialorder %v1429, 8.507059e+37
        %v1431 = vand.u32 %v978, 2147483648
        %v1432 = vor.u32 1.1754944e-38, %v1431
        %v1433 = vsel %vm1430, %v1432, %v1428
        %v1434 = vmul.f32 1.0, %v1433
        %v1435 = vrcp.pop %v979
        %v1436 = vmul.f32 %v979, %v1435
        %v1437 = vsub.f32 1.0, %v1436
        %v1438 = vmul.f32 %v1435, %v1437
        %v1439 = vadd.f32 %v1435, %v1438
        %vm1440 = vweird.f32 %v979
        %vm1441 = vweird.f32 %v1435
        %vm1442 = vmor %vm1440, %vm1441
        %v1443 = vsel %vm1442, %v1435, %v1439
        %v1444 = vand.u32 2147483647, %v979
        %vm1445 = vcmp.eq.f32.partialorder %v1444, 8.507059e+37
        %v1446 = vand.u32 %v979, 2147483648
        %v1447 = vor.u32 1.1754944e-38, %v1446
        %v1448 = vsel %vm1445, %v1447, %v1443
        %v1449 = vmul.f32 1.0, %v1448
        %v1450 = vrcp.pop %v980
        %v1451 = vmul.f32 %v980, %v1450
        %v1452 = vsub.f32 1.0, %v1451
        %v1453 = vmul.f32 %v1450, %v1452
        %v1454 = vadd.f32 %v1450, %v1453
        %vm1455 = vweird.f32 %v980
        %vm1456 = vweird.f32 %v1450
        %vm1457 = vmor %vm1455, %vm1456
        %v1458 = vsel %vm1457, %v1450, %v1454
        %v1459 = vand.u32 2147483647, %v980
        %vm1460 = vcmp.eq.f32.partialorder %v1459, 8.507059e+37
        %v1461 = vand.u32 %v980, 2147483648
        %v1462 = vor.u32 1.1754944e-38, %v1461
        %v1463 = vsel %vm1460, %v1462, %v1458
        %v1464 = vmul.f32 1.0, %v1463
        %v1465 = vrcp.pop %v981
        %v1466 = vmul.f32 %v981, %v1465
        %v1467 = vsub.f32 1.0, %v1466
        %v1468 = vmul.f32 %v1465, %v1467
        %v1469 = vadd.f32 %v1465, %v1468
        %vm1470 = vweird.f32 %v981
        %vm1471 = vweird.f32 %v1465
        %vm1472 = vmor %vm1470, %vm1471
        %v1473 = vsel %vm1472, %v1465, %v1469
        %v1474 = vand.u32 2147483647, %v981
        %vm1475 = vcmp.eq.f32.partialorder %v1474, 8.507059e+37
        %v1476 = vand.u32 %v981, 2147483648
        %v1477 = vor.u32 1.1754944e-38, %v1476
        %v1478 = vsel %vm1475, %v1477, %v1473
        %v1479 = vmul.f32 1.0, %v1478
        %v1480 = vrcp.pop %v982
        %v1481 = vmul.f32 %v982, %v1480
        %v1482 = vsub.f32 1.0, %v1481
        %v1483 = vmul.f32 %v1480, %v1482
        %v1484 = vadd.f32 %v1480, %v1483
        %vm1485 = vweird.f32 %v982
        %vm1486 = vweird.f32 %v1480
        %vm1487 = vmor %vm1485, %vm1486
        %v1488 = vsel %vm1487, %v1480, %v1484
        %v1489 = vand.u32 2147483647, %v982
        %vm1490 = vcmp.eq.f32.partialorder %v1489, 8.507059e+37
        %v1491 = vand.u32 %v982, 2147483648
        %v1492 = vor.u32 1.1754944e-38, %v1491
        %v1493 = vsel %vm1490, %v1492, %v1488
        %v1494 = vmul.f32 1.0, %v1493
        %v1495 = vrcp.pop %v983
        %v1496 = vmul.f32 %v983, %v1495
        %v1497 = vsub.f32 1.0, %v1496
        %v1498 = vmul.f32 %v1495, %v1497
        %v1499 = vadd.f32 %v1495, %v1498
        %vm1500 = vweird.f32 %v983
        %vm1501 = vweird.f32 %v1495
        %vm1502 = vmor %vm1500, %vm1501
        %v1503 = vsel %vm1502, %v1495, %v1499
        %v1504 = vand.u32 2147483647, %v983
        %vm1505 = vcmp.eq.f32.partialorder %v1504, 8.507059e+37
        %v1506 = vand.u32 %v983, 2147483648
        %v1507 = vor.u32 1.1754944e-38, %v1506
        %v1508 = vsel %vm1505, %v1507, %v1503
        %v1509 = vmul.f32 1.0, %v1508
        %v1510 = vrcp.pop %v984
        %v1511 = vmul.f32 %v984, %v1510
        %v1512 = vsub.f32 1.0, %v1511
        %v1513 = vmul.f32 %v1510, %v1512
        %v1514 = vadd.f32 %v1510, %v1513
        %vm1515 = vweird.f32 %v984
        %vm1516 = vweird.f32 %v1510
        %vm1517 = vmor %vm1515, %vm1516
        %v1518 = vsel %vm1517, %v1510, %v1514
        %v1519 = vand.u32 2147483647, %v984
        %vm1520 = vcmp.eq.f32.partialorder %v1519, 8.507059e+37
        %v1521 = vand.u32 %v984, 2147483648
        %v1522 = vor.u32 1.1754944e-38, %v1521
        %v1523 = vsel %vm1520, %v1522, %v1518
        %v1524 = vmul.f32 1.0, %v1523
        %v1525 = vrcp.pop %v985
        %v1526 = vmul.f32 %v985, %v1525
        %v1527 = vsub.f32 1.0, %v1526
        %v1528 = vmul.f32 %v1525, %v1527
        %v1529 = vadd.f32 %v1525, %v1528
        %vm1530 = vweird.f32 %v985
        %vm1531 = vweird.f32 %v1525
        %vm1532 = vmor %vm1530, %vm1531
        %v1533 = vsel %vm1532, %v1525, %v1529
        %v1534 = vand.u32 2147483647, %v985
        %vm1535 = vcmp.eq.f32.partialorder %v1534, 8.507059e+37
        %v1536 = vand.u32 %v985, 2147483648
        %v1537 = vor.u32 1.1754944e-38, %v1536
        %v1538 = vsel %vm1535, %v1537, %v1533
        %v1539 = vmul.f32 1.0, %v1538
        %v1540 = vrcp.pop %v986
        %v1541 = vmul.f32 %v986, %v1540
        %v1542 = vsub.f32 1.0, %v1541
        %v1543 = vmul.f32 %v1540, %v1542
        %v1544 = vadd.f32 %v1540, %v1543
        %vm1545 = vweird.f32 %v986
        %vm1546 = vweird.f32 %v1540
        %vm1547 = vmor %vm1545, %vm1546
        %v1548 = vsel %vm1547, %v1540, %v1544
        %v1549 = vand.u32 2147483647, %v986
        %vm1550 = vcmp.eq.f32.partialorder %v1549, 8.507059e+37
        %v1551 = vand.u32 %v986, 2147483648
        %v1552 = vor.u32 1.1754944e-38, %v1551
        %v1553 = vsel %vm1550, %v1552, %v1548
        %v1554 = vmul.f32 1.0, %v1553
        %v1555 = vrcp.pop %v987
        %v1556 = vmul.f32 %v987, %v1555
        %v1557 = vsub.f32 1.0, %v1556
        %v1558 = vmul.f32 %v1555, %v1557
        %v1559 = vadd.f32 %v1555, %v1558
        %vm1560 = vweird.f32 %v987
        %vm1561 = vweird.f32 %v1555
        %vm1562 = vmor %vm1560, %vm1561
        %v1563 = vsel %vm1562, %v1555, %v1559
        %v1564 = vand.u32 2147483647, %v987
        %vm1565 = vcmp.eq.f32.partialorder %v1564, 8.507059e+37
        %v1566 = vand.u32 %v987, 2147483648
        %v1567 = vor.u32 1.1754944e-38, %v1566
        %v1568 = vsel %vm1565, %v1567, %v1563
        %v1569 = vmul.f32 1.0, %v1568
        %v1570 = vrcp.pop %v988
        %v1571 = vmul.f32 %v988, %v1570
        %v1572 = vsub.f32 1.0, %v1571
        %v1573 = vmul.f32 %v1570, %v1572
        %v1574 = vadd.f32 %v1570, %v1573
        %vm1575 = vweird.f32 %v988
        %vm1576 = vweird.f32 %v1570
        %vm1577 = vmor %vm1575, %vm1576
        %v1578 = vsel %vm1577, %v1570, %v1574
        %v1579 = vand.u32 2147483647, %v988
        %vm1580 = vcmp.eq.f32.partialorder %v1579, 8.507059e+37
        %v1581 = vand.u32 %v988, 2147483648
        %v1582 = vor.u32 1.1754944e-38, %v1581
        %v1583 = vsel %vm1580, %v1582, %v1578
        %v1584 = vmul.f32 1.0, %v1583
        %v1585 = vrcp.pop %v989
        %v1586 = vmul.f32 %v989, %v1585
        %v1587 = vsub.f32 1.0, %v1586
        %v1588 = vmul.f32 %v1585, %v1587
        %v1589 = vadd.f32 %v1585, %v1588
        %vm1590 = vweird.f32 %v989
        %vm1591 = vweird.f32 %v1585
        %vm1592 = vmor %vm1590, %vm1591
        %v1593 = vsel %vm1592, %v1585, %v1589
        %v1594 = vand.u32 2147483647, %v989
        %vm1595 = vcmp.eq.f32.partialorder %v1594, 8.507059e+37
        %v1596 = vand.u32 %v989, 2147483648
        %v1597 = vor.u32 1.1754944e-38, %v1596
        %v1598 = vsel %vm1595, %v1597, %v1593
        %v1599 = vmul.f32 1.0, %v1598
        %v1600 = vrcp.pop %v990
        %v1601 = vmul.f32 %v990, %v1600
        %v1602 = vsub.f32 1.0, %v1601
        %v1603 = vmul.f32 %v1600, %v1602
        %v1604 = vadd.f32 %v1600, %v1603
        %vm1605 = vweird.f32 %v990
        %vm1606 = vweird.f32 %v1600
        %vm1607 = vmor %vm1605, %vm1606
        %v1608 = vsel %vm1607, %v1600, %v1604
        %v1609 = vand.u32 2147483647, %v990
        %vm1610 = vcmp.eq.f32.partialorder %v1609, 8.507059e+37
        %v1611 = vand.u32 %v990, 2147483648
        %v1612 = vor.u32 1.1754944e-38, %v1611
        %v1613 = vsel %vm1610, %v1612, %v1608
        %v1614 = vmul.f32 1.0, %v1613
        %v1615 = vrcp.pop %v991
        %v1616 = vmul.f32 %v991, %v1615
        %v1617 = vsub.f32 1.0, %v1616
        %v1618 = vmul.f32 %v1615, %v1617
        %v1619 = vadd.f32 %v1615, %v1618
        %vm1620 = vweird.f32 %v991
        %vm1621 = vweird.f32 %v1615
        %vm1622 = vmor %vm1620, %vm1621
        %v1623 = vsel %vm1622, %v1615, %v1619
        %v1624 = vand.u32 2147483647, %v991
        %vm1625 = vcmp.eq.f32.partialorder %v1624, 8.507059e+37
        %v1626 = vand.u32 %v991, 2147483648
        %v1627 = vor.u32 1.1754944e-38, %v1626
        %v1628 = vsel %vm1625, %v1627, %v1623
        %v1629 = vmul.f32 1.0, %v1628
        %v1630 = vrcp.pop %v992
        %v1631 = vmul.f32 %v992, %v1630
        %v1632 = vsub.f32 1.0, %v1631
        %v1633 = vmul.f32 %v1630, %v1632
        %v1634 = vadd.f32 %v1630, %v1633
        %vm1635 = vweird.f32 %v992
        %vm1636 = vweird.f32 %v1630
        %vm1637 = vmor %vm1635, %vm1636
        %v1638 = vsel %vm1637, %v1630, %v1634
        %v1639 = vand.u32 2147483647, %v992
        %vm1640 = vcmp.eq.f32.partialorder %v1639, 8.507059e+37
        %v1641 = vand.u32 %v992, 2147483648
        %v1642 = vor.u32 1.1754944e-38, %v1641
        %v1643 = vsel %vm1640, %v1642, %v1638
        %v1644 = vmul.f32 1.0, %v1643
        %v1645 = vrcp.pop %v993
        %v1646 = vmul.f32 %v993, %v1645
        %v1647 = vsub.f32 1.0, %v1646
        %v1648 = vmul.f32 %v1645, %v1647
        %v1649 = vadd.f32 %v1645, %v1648
        %vm1650 = vweird.f32 %v993
        %vm1651 = vweird.f32 %v1645
        %vm1652 = vmor %vm1650, %vm1651
        %v1653 = vsel %vm1652, %v1645, %v1649
        %v1654 = vand.u32 2147483647, %v993
        %vm1655 = vcmp.eq.f32.partialorder %v1654, 8.507059e+37
        %v1656 = vand.u32 %v993, 2147483648
        %v1657 = vor.u32 1.1754944e-38, %v1656
        %v1658 = vsel %vm1655, %v1657, %v1653
        %v1659 = vmul.f32 1.0, %v1658
        %v1660 = vrcp.pop %v994
        %v1661 = vmul.f32 %v994, %v1660
        %v1662 = vsub.f32 1.0, %v1661
        %v1663 = vmul.f32 %v1660, %v1662
        %v1664 = vadd.f32 %v1660, %v1663
        %vm1665 = vweird.f32 %v994
        %vm1666 = vweird.f32 %v1660
        %vm1667 = vmor %vm1665, %vm1666
        %v1668 = vsel %vm1667, %v1660, %v1664
        %v1669 = vand.u32 2147483647, %v994
        %vm1670 = vcmp.eq.f32.partialorder %v1669, 8.507059e+37
        %v1671 = vand.u32 %v994, 2147483648
        %v1672 = vor.u32 1.1754944e-38, %v1671
        %v1673 = vsel %vm1670, %v1672, %v1668
        %v1674 = vmul.f32 1.0, %v1673
        %v1675 = vrcp.pop %v995
        %v1676 = vmul.f32 %v995, %v1675
        %v1677 = vsub.f32 1.0, %v1676
        %v1678 = vmul.f32 %v1675, %v1677
        %v1679 = vadd.f32 %v1675, %v1678
        %vm1680 = vweird.f32 %v995
        %vm1681 = vweird.f32 %v1675
        %vm1682 = vmor %vm1680, %vm1681
        %v1683 = vsel %vm1682, %v1675, %v1679
        %v1684 = vand.u32 2147483647, %v995
        %vm1685 = vcmp.eq.f32.partialorder %v1684, 8.507059e+37
        %v1686 = vand.u32 %v995, 2147483648
        %v1687 = vor.u32 1.1754944e-38, %v1686
        %v1688 = vsel %vm1685, %v1687, %v1683
        %v1689 = vmul.f32 1.0, %v1688
        %v1690 = vrcp.pop %v996
        %v1691 = vmul.f32 %v996, %v1690
        %v1692 = vsub.f32 1.0, %v1691
        %v1693 = vmul.f32 %v1690, %v1692
        %v1694 = vadd.f32 %v1690, %v1693
        %vm1695 = vweird.f32 %v996
        %vm1696 = vweird.f32 %v1690
        %vm1697 = vmor %vm1695, %vm1696
        %v1698 = vsel %vm1697, %v1690, %v1694
        %v1699 = vand.u32 2147483647, %v996
        %vm1700 = vcmp.eq.f32.partialorder %v1699, 8.507059e+37
        %v1701 = vand.u32 %v996, 2147483648
        %v1702 = vor.u32 1.1754944e-38, %v1701
        %v1703 = vsel %vm1700, %v1702, %v1698
        %v1704 = vmul.f32 1.0, %v1703
        %v1705 = vrcp.pop %v997
        %v1706 = vmul.f32 %v997, %v1705
        %v1707 = vsub.f32 1.0, %v1706
        %v1708 = vmul.f32 %v1705, %v1707
        %v1709 = vadd.f32 %v1705, %v1708
        %vm1710 = vweird.f32 %v997
        %vm1711 = vweird.f32 %v1705
        %vm1712 = vmor %vm1710, %vm1711
        %v1713 = vsel %vm1712, %v1705, %v1709
        %v1714 = vand.u32 2147483647, %v997
        %vm1715 = vcmp.eq.f32.partialorder %v1714, 8.507059e+37
        %v1716 = vand.u32 %v997, 2147483648
        %v1717 = vor.u32 1.1754944e-38, %v1716
        %v1718 = vsel %vm1715, %v1717, %v1713
        %v1719 = vmul.f32 1.0, %v1718
        %v1720 = vrcp.pop %v998
        %v1721 = vmul.f32 %v998, %v1720
        %v1722 = vsub.f32 1.0, %v1721
        %v1723 = vmul.f32 %v1720, %v1722
        %v1724 = vadd.f32 %v1720, %v1723
        %vm1725 = vweird.f32 %v998
        %vm1726 = vweird.f32 %v1720
        %vm1727 = vmor %vm1725, %vm1726
        %v1728 = vsel %vm1727, %v1720, %v1724
        %v1729 = vand.u32 2147483647, %v998
        %vm1730 = vcmp.eq.f32.partialorder %v1729, 8.507059e+37
        %v1731 = vand.u32 %v998, 2147483648
        %v1732 = vor.u32 1.1754944e-38, %v1731
        %v1733 = vsel %vm1730, %v1732, %v1728
        %v1734 = vmul.f32 1.0, %v1733
        %v1735 = vrcp.pop %v999
        %v1736 = vmul.f32 %v999, %v1735
        %v1737 = vsub.f32 1.0, %v1736
        %v1738 = vmul.f32 %v1735, %v1737
        %v1739 = vadd.f32 %v1735, %v1738
        %vm1740 = vweird.f32 %v999
        %vm1741 = vweird.f32 %v1735
        %vm1742 = vmor %vm1740, %vm1741
        %v1743 = vsel %vm1742, %v1735, %v1739
        %v1744 = vand.u32 2147483647, %v999
        %vm1745 = vcmp.eq.f32.partialorder %v1744, 8.507059e+37
        %v1746 = vand.u32 %v999, 2147483648
        %v1747 = vor.u32 1.1754944e-38, %v1746
        %v1748 = vsel %vm1745, %v1747, %v1743
        %v1749 = vmul.f32 1.0, %v1748
        %v1750 = vrcp.pop %v1000
        %v1751 = vmul.f32 %v1000, %v1750
        %v1752 = vsub.f32 1.0, %v1751
        %v1753 = vmul.f32 %v1750, %v1752
        %v1754 = vadd.f32 %v1750, %v1753
        %vm1755 = vweird.f32 %v1000
        %vm1756 = vweird.f32 %v1750
        %vm1757 = vmor %vm1755, %vm1756
        %v1758 = vsel %vm1757, %v1750, %v1754
        %v1759 = vand.u32 2147483647, %v1000
        %vm1760 = vcmp.eq.f32.partialorder %v1759, 8.507059e+37
        %v1761 = vand.u32 %v1000, 2147483648
        %v1762 = vor.u32 1.1754944e-38, %v1761
        %v1763 = vsel %vm1760, %v1762, %v1758
        %v1764 = vmul.f32 1.0, %v1763
        %v1765 = vrcp.pop %v1001
        %v1766 = vmul.f32 %v1001, %v1765
        %v1767 = vsub.f32 1.0, %v1766
        %v1768 = vmul.f32 %v1765, %v1767
        %v1769 = vadd.f32 %v1765, %v1768
        %vm1770 = vweird.f32 %v1001
        %vm1771 = vweird.f32 %v1765
        %vm1772 = vmor %vm1770, %vm1771
        %v1773 = vsel %vm1772, %v1765, %v1769
        %v1774 = vand.u32 2147483647, %v1001
        %vm1775 = vcmp.eq.f32.partialorder %v1774, 8.507059e+37
        %v1776 = vand.u32 %v1001, 2147483648
        %v1777 = vor.u32 1.1754944e-38, %v1776
        %v1778 = vsel %vm1775, %v1777, %v1773
        %v1779 = vmul.f32 1.0, %v1778
        %v1780 = vrcp.pop %v1002
        %v1781 = vmul.f32 %v1002, %v1780
        %v1782 = vsub.f32 1.0, %v1781
        %v1783 = vmul.f32 %v1780, %v1782
        %v1784 = vadd.f32 %v1780, %v1783
        %vm1785 = vweird.f32 %v1002
        %vm1786 = vweird.f32 %v1780
        %vm1787 = vmor %vm1785, %vm1786
        %v1788 = vsel %vm1787, %v1780, %v1784
        %v1789 = vand.u32 2147483647, %v1002
        %vm1790 = vcmp.eq.f32.partialorder %v1789, 8.507059e+37
        %v1791 = vand.u32 %v1002, 2147483648
        %v1792 = vor.u32 1.1754944e-38, %v1791
        %v1793 = vsel %vm1790, %v1792, %v1788
        %v1794 = vmul.f32 1.0, %v1793
        %v1795 = vrcp.pop %v1003
        %v1796 = vmul.f32 %v1003, %v1795
        %v1797 = vsub.f32 1.0, %v1796
        %v1798 = vmul.f32 %v1795, %v1797
        %v1799 = vadd.f32 %v1795, %v1798
        %vm1800 = vweird.f32 %v1003
        %vm1801 = vweird.f32 %v1795
        %vm1802 = vmor %vm1800, %vm1801
        %v1803 = vsel %vm1802, %v1795, %v1799
        %v1804 = vand.u32 2147483647, %v1003
        %vm1805 = vcmp.eq.f32.partialorder %v1804, 8.507059e+37
        %v1806 = vand.u32 %v1003, 2147483648
        %v1807 = vor.u32 1.1754944e-38, %v1806
        %v1808 = vsel %vm1805, %v1807, %v1803
        %v1809 = vmul.f32 1.0, %v1808
        %v1810 = vrcp.pop %v1004
        %v1811 = vmul.f32 %v1004, %v1810
        %v1812 = vsub.f32 1.0, %v1811
        %v1813 = vmul.f32 %v1810, %v1812
        %v1814 = vadd.f32 %v1810, %v1813
        %vm1815 = vweird.f32 %v1004
        %vm1816 = vweird.f32 %v1810
        %vm1817 = vmor %vm1815, %vm1816
        %v1818 = vsel %vm1817, %v1810, %v1814
        %v1819 = vand.u32 2147483647, %v1004
        %vm1820 = vcmp.eq.f32.partialorder %v1819, 8.507059e+37
        %v1821 = vand.u32 %v1004, 2147483648
        %v1822 = vor.u32 1.1754944e-38, %v1821
        %v1823 = vsel %vm1820, %v1822, %v1818
        %v1824 = vmul.f32 1.0, %v1823
        %v1825 = vrcp.pop %v1005
        %v1826 = vmul.f32 %v1005, %v1825
        %v1827 = vsub.f32 1.0, %v1826
        %v1828 = vmul.f32 %v1825, %v1827
        %v1829 = vadd.f32 %v1825, %v1828
        %vm1830 = vweird.f32 %v1005
        %vm1831 = vweird.f32 %v1825
        %vm1832 = vmor %vm1830, %vm1831
        %v1833 = vsel %vm1832, %v1825, %v1829
        %v1834 = vand.u32 2147483647, %v1005
        %vm1835 = vcmp.eq.f32.partialorder %v1834, 8.507059e+37
        %v1836 = vand.u32 %v1005, 2147483648
        %v1837 = vor.u32 1.1754944e-38, %v1836
        %v1838 = vsel %vm1835, %v1837, %v1833
        %v1839 = vmul.f32 1.0, %v1838
        %v1840 = vrcp.pop %v1006
        %v1841 = vmul.f32 %v1006, %v1840
        %v1842 = vsub.f32 1.0, %v1841
        %v1843 = vmul.f32 %v1840, %v1842
        %v1844 = vadd.f32 %v1840, %v1843
        %vm1845 = vweird.f32 %v1006
        %vm1846 = vweird.f32 %v1840
        %vm1847 = vmor %vm1845, %vm1846
        %v1848 = vsel %vm1847, %v1840, %v1844
        %v1849 = vand.u32 2147483647, %v1006
        %vm1850 = vcmp.eq.f32.partialorder %v1849, 8.507059e+37
        %v1851 = vand.u32 %v1006, 2147483648
        %v1852 = vor.u32 1.1754944e-38, %v1851
        %v1853 = vsel %vm1850, %v1852, %v1848
        %v1854 = vmul.f32 1.0, %v1853
        %v1855 = vrcp.pop %v1007
        %v1856 = vmul.f32 %v1007, %v1855
        %v1857 = vsub.f32 1.0, %v1856
        %v1858 = vmul.f32 %v1855, %v1857
        %v1859 = vadd.f32 %v1855, %v1858
        %vm1860 = vweird.f32 %v1007
        %vm1861 = vweird.f32 %v1855
        %vm1862 = vmor %vm1860, %vm1861
        %v1863 = vsel %vm1862, %v1855, %v1859
        %v1864 = vand.u32 2147483647, %v1007
        %vm1865 = vcmp.eq.f32.partialorder %v1864, 8.507059e+37
        %v1866 = vand.u32 %v1007, 2147483648
        %v1867 = vor.u32 1.1754944e-38, %v1866
        %v1868 = vsel %vm1865, %v1867, %v1863
        %v1869 = vmul.f32 1.0, %v1868
        %v1870 = vrcp.pop %v1008
        %v1871 = vmul.f32 %v1008, %v1870
        %v1872 = vsub.f32 1.0, %v1871
        %v1873 = vmul.f32 %v1870, %v1872
        %v1874 = vadd.f32 %v1870, %v1873
        %vm1875 = vweird.f32 %v1008
        %vm1876 = vweird.f32 %v1870
        %vm1877 = vmor %vm1875, %vm1876
        %v1878 = vsel %vm1877, %v1870, %v1874
        %v1879 = vand.u32 2147483647, %v1008
        %vm1880 = vcmp.eq.f32.partialorder %v1879, 8.507059e+37
        %v1881 = vand.u32 %v1008, 2147483648
        %v1882 = vor.u32 1.1754944e-38, %v1881
        %v1883 = vsel %vm1880, %v1882, %v1878
        %v1884 = vmul.f32 1.0, %v1883
        %v1885 = vrcp.pop %v1009
        %v1886 = vmul.f32 %v1009, %v1885
        %v1887 = vsub.f32 1.0, %v1886
        %v1888 = vmul.f32 %v1885, %v1887
        %v1889 = vadd.f32 %v1885, %v1888
        %vm1890 = vweird.f32 %v1009
        %vm1891 = vweird.f32 %v1885
        %vm1892 = vmor %vm1890, %vm1891
        %v1893 = vsel %vm1892, %v1885, %v1889
        %v1894 = vand.u32 2147483647, %v1009
        %vm1895 = vcmp.eq.f32.partialorder %v1894, 8.507059e+37
        %v1896 = vand.u32 %v1009, 2147483648
        %v1897 = vor.u32 1.1754944e-38, %v1896
        %v1898 = vsel %vm1895, %v1897, %v1893
        %v1899 = vmul.f32 1.0, %v1898
        %v1900 = vrcp.pop %v1010
        %v1901 = vmul.f32 %v1010, %v1900
        %v1902 = vsub.f32 1.0, %v1901
        %v1903 = vmul.f32 %v1900, %v1902
        %v1904 = vadd.f32 %v1900, %v1903
        %vm1905 = vweird.f32 %v1010
        %vm1906 = vweird.f32 %v1900
        %vm1907 = vmor %vm1905, %vm1906
        %v1908 = vsel %vm1907, %v1900, %v1904
        %v1909 = vand.u32 2147483647, %v1010
        %vm1910 = vcmp.eq.f32.partialorder %v1909, 8.507059e+37
        %v1911 = vand.u32 %v1010, 2147483648
        %v1912 = vor.u32 1.1754944e-38, %v1911
        %v1913 = vsel %vm1910, %v1912, %v1908
        %v1914 = vmul.f32 1.0, %v1913
        %v1915 = vrcp.pop %v1011
        %v1916 = vmul.f32 %v1011, %v1915
        %v1917 = vsub.f32 1.0, %v1916
        %v1918 = vmul.f32 %v1915, %v1917
        %v1919 = vadd.f32 %v1915, %v1918
        %vm1920 = vweird.f32 %v1011
        %vm1921 = vweird.f32 %v1915
        %vm1922 = vmor %vm1920, %vm1921
        %v1923 = vsel %vm1922, %v1915, %v1919
        %v1924 = vand.u32 2147483647, %v1011
        %vm1925 = vcmp.eq.f32.partialorder %v1924, 8.507059e+37
        %v1926 = vand.u32 %v1011, 2147483648
        %v1927 = vor.u32 1.1754944e-38, %v1926
        %v1928 = vsel %vm1925, %v1927, %v1923
        %v1929 = vmul.f32 1.0, %v1928
        %v1930 = vrcp.pop %v1012
        %v1931 = vmul.f32 %v1012, %v1930
        %v1932 = vsub.f32 1.0, %v1931
        %v1933 = vmul.f32 %v1930, %v1932
        %v1934 = vadd.f32 %v1930, %v1933
        %vm1935 = vweird.f32 %v1012
        %vm1936 = vweird.f32 %v1930
        %vm1937 = vmor %vm1935, %vm1936
        %v1938 = vsel %vm1937, %v1930, %v1934
        %v1939 = vand.u32 2147483647, %v1012
        %vm1940 = vcmp.eq.f32.partialorder %v1939, 8.507059e+37
        %v1941 = vand.u32 %v1012, 2147483648
        %v1942 = vor.u32 1.1754944e-38, %v1941
        %v1943 = vsel %vm1940, %v1942, %v1938
        %v1944 = vmul.f32 1.0, %v1943
        %v1945 = vrcp.pop %v1013
        %v1946 = vmul.f32 %v1013, %v1945
        %v1947 = vsub.f32 1.0, %v1946
        %v1948 = vmul.f32 %v1945, %v1947
        %v1949 = vadd.f32 %v1945, %v1948
        %vm1950 = vweird.f32 %v1013
        %vm1951 = vweird.f32 %v1945
        %vm1952 = vmor %vm1950, %vm1951
        %v1953 = vsel %vm1952, %v1945, %v1949
        %v1954 = vand.u32 2147483647, %v1013
        %vm1955 = vcmp.eq.f32.partialorder %v1954, 8.507059e+37
        %v1956 = vand.u32 %v1013, 2147483648
        %v1957 = vor.u32 1.1754944e-38, %v1956
        %v1958 = vsel %vm1955, %v1957, %v1953
        %v1959 = vmul.f32 1.0, %v1958
        %v1960 = vrcp.pop %v1014
        %v1961 = vmul.f32 %v1014, %v1960
        %v1962 = vsub.f32 1.0, %v1961
        %v1963 = vmul.f32 %v1960, %v1962
        %v1964 = vadd.f32 %v1960, %v1963
        %vm1965 = vweird.f32 %v1014
        %vm1966 = vweird.f32 %v1960
        %vm1967 = vmor %vm1965, %vm1966
        %v1968 = vsel %vm1967, %v1960, %v1964
        %v1969 = vand.u32 2147483647, %v1014
        %vm1970 = vcmp.eq.f32.partialorder %v1969, 8.507059e+37
        %v1971 = vand.u32 %v1014, 2147483648
        %v1972 = vor.u32 1.1754944e-38, %v1971
        %v1973 = vsel %vm1970, %v1972, %v1968
        %v1974 = vmul.f32 1.0, %v1973
        %v1975 = vmul.f32 %v1029, 1.0614054
        %v1976 = vmul.f32 %v1044, 1.0614054
        %v1977 = vmul.f32 %v1059, 1.0614054
        %v1978 = vmul.f32 %v1074, 1.0614054
        %v1979 = vmul.f32 %v1089, 1.0614054
        %v1980 = vmul.f32 %v1104, 1.0614054
        %v1981 = vmul.f32 %v1119, 1.0614054
        %v1982 = vmul.f32 %v1134, 1.0614054
        %v1983 = vmul.f32 %v1149, 1.0614054
        %v1984 = vmul.f32 %v1164, 1.0614054
        %v1985 = vmul.f32 %v1179, 1.0614054
        %v1986 = vmul.f32 %v1194, 1.0614054
        %v1987 = vmul.f32 %v1209, 1.0614054
        %v1988 = vmul.f32 %v1224, 1.0614054
        %v1989 = vmul.f32 %v1239, 1.0614054
        %v1990 = vmul.f32 %v1254, 1.0614054
        %v1991 = vmul.f32 %v1269, 1.0614054
        %v1992 = vmul.f32 %v1284, 1.0614054
        %v1993 = vmul.f32 %v1299, 1.0614054
        %v1994 = vmul.f32 %v1314, 1.0614054
        %v1995 = vmul.f32 %v1329, 1.0614054
        %v1996 = vmul.f32 %v1344, 1.0614054
        %v1997 = vmul.f32 %v1359, 1.0614054
        %v1998 = vmul.f32 %v1374, 1.0614054
        %v1999 = vmul.f32 %v1389, 1.0614054
        %v2000 = vmul.f32 %v1404, 1.0614054
        %v2001 = vmul.f32 %v1419, 1.0614054
        %v2002 = vmul.f32 %v1434, 1.0614054
        %v2003 = vmul.f32 %v1449, 1.0614054
        %v2004 = vmul.f32 %v1464, 1.0614054
        %v2005 = vmul.f32 %v1479, 1.0614054
        %v2006 = vmul.f32 %v1494, 1.0614054
        %v2007 = vmul.f32 %v1509, 1.0614054
        %v2008 = vmul.f32 %v1524, 1.0614054
        %v2009 = vmul.f32 %v1539, 1.0614054
        %v2010 = vmul.f32 %v1554, 1.0614054
        %v2011 = vmul.f32 %v1569, 1.0614054
        %v2012 = vmul.f32 %v1584, 1.0614054
        %v2013 = vmul.f32 %v1599, 1.0614054
        %v2014 = vmul.f32 %v1614, 1.0614054
        %v2015 = vmul.f32 %v1629, 1.0614054
        %v2016 = vmul.f32 %v1644, 1.0614054
        %v2017 = vmul.f32 %v1659, 1.0614054
        %v2018 = vmul.f32 %v1674, 1.0614054
        %v2019 = vmul.f32 %v1689, 1.0614054
        %v2020 = vmul.f32 %v1704, 1.0614054
        %v2021 = vmul.f32 %v1719, 1.0614054
        %v2022 = vmul.f32 %v1734, 1.0614054
        %v2023 = vmul.f32 %v1749, 1.0614054
        %v2024 = vmul.f32 %v1764, 1.0614054
        %v2025 = vmul.f32 %v1779, 1.0614054
        %v2026 = vmul.f32 %v1794, 1.0614054
        %v2027 = vmul.f32 %v1809, 1.0614054
        %v2028 = vmul.f32 %v1824, 1.0614054
        %v2029 = vmul.f32 %v1839, 1.0614054
        %v2030 = vmul.f32 %v1854, 1.0614054
        %v2031 = vmul.f32 %v1869, 1.0614054
        %v2032 = vmul.f32 %v1884, 1.0614054
        %v2033 = vmul.f32 %v1899, 1.0614054
        %v2034 = vmul.f32 %v1914, 1.0614054
        %v2035 = vmul.f32 %v1929, 1.0614054
        %v2036 = vmul.f32 %v1944, 1.0614054
        %v2037 = vmul.f32 %v1959, 1.0614054
        %v2038 = vmul.f32 %v1974, 1.0614054
        %v2039 = vadd.f32 %v1975, -1.4531521
        %v2040 = vadd.f32 %v1976, -1.4531521
        %v2041 = vadd.f32 %v1977, -1.4531521
        %v2042 = vadd.f32 %v1978, -1.4531521
        %v2043 = vadd.f32 %v1979, -1.4531521
        %v2044 = vadd.f32 %v1980, -1.4531521
        %v2045 = vadd.f32 %v1981, -1.4531521
        %v2046 = vadd.f32 %v1982, -1.4531521
        %v2047 = vadd.f32 %v1983, -1.4531521
        %v2048 = vadd.f32 %v1984, -1.4531521
        %v2049 = vadd.f32 %v1985, -1.4531521
        %v2050 = vadd.f32 %v1986, -1.4531521
        %v2051 = vadd.f32 %v1987, -1.4531521
        %v2052 = vadd.f32 %v1988, -1.4531521
        %v2053 = vadd.f32 %v1989, -1.4531521
        %v2054 = vadd.f32 %v1990, -1.4531521
        %v2055 = vadd.f32 %v1991, -1.4531521
        %v2056 = vadd.f32 %v1992, -1.4531521
        %v2057 = vadd.f32 %v1993, -1.4531521
        %v2058 = vadd.f32 %v1994, -1.4531521
        %v2059 = vadd.f32 %v1995, -1.4531521
        %v2060 = vadd.f32 %v1996, -1.4531521
        %v2061 = vadd.f32 %v1997, -1.4531521
        %v2062 = vadd.f32 %v1998, -1.4531521
        %v2063 = vadd.f32 %v1999, -1.4531521
        %v2064 = vadd.f32 %v2000, -1.4531521
        %v2065 = vadd.f32 %v2001, -1.4531521
        %v2066 = vadd.f32 %v2002, -1.4531521
        %v2067 = vadd.f32 %v2003, -1.4531521
        %v2068 = vadd.f32 %v2004, -1.4531521
        %v2069 = vadd.f32 %v2005, -1.4531521
        %v2070 = vadd.f32 %v2006, -1.4531521
        %v2071 = vadd.f32 %v2007, -1.4531521
        %v2072 = vadd.f32 %v2008, -1.4531521
        %v2073 = vadd.f32 %v2009, -1.4531521
        %v2074 = vadd.f32 %v2010, -1.4531521
        %v2075 = vadd.f32 %v2011, -1.4531521
        %v2076 = vadd.f32 %v2012, -1.4531521
        %v2077 = vadd.f32 %v2013, -1.4531521
        %v2078 = vadd.f32 %v2014, -1.4531521
        %v2079 = vadd.f32 %v2015, -1.4531521
        %v2080 = vadd.f32 %v2016, -1.4531521
        %v2081 = vadd.f32 %v2017, -1.4531521
        %v2082 = vadd.f32 %v2018, -1.4531521
        %v2083 = vadd.f32 %v2019, -1.4531521
        %v2084 = vadd.f32 %v2020, -1.4531521
        %v2085 = vadd.f32 %v2021, -1.4531521
        %v2086 = vadd.f32 %v2022, -1.4531521
        %v2087 = vadd.f32 %v2023, -1.4531521
        %v2088 = vadd.f32 %v2024, -1.4531521
        %v2089 = vadd.f32 %v2025, -1.4531521
        %v2090 = vadd.f32 %v2026, -1.4531521
        %v2091 = vadd.f32 %v2027, -1.4531521
        %v2092 = vadd.f32 %v2028, -1.4531521
        %v2093 = vadd.f32 %v2029, -1.4531521
        %v2094 = vadd.f32 %v2030, -1.4531521
        %v2095 = vadd.f32 %v2031, -1.4531521
        %v2096 = vadd.f32 %v2032, -1.4531521
        %v2097 = vadd.f32 %v2033, -1.4531521
        %v2098 = vadd.f32 %v2034, -1.4531521
        %v2099 = vadd.f32 %v2035, -1.4531521
        %v2100 = vadd.f32 %v2036, -1.4531521
        %v2101 = vadd.f32 %v2037, -1.4531521
        %v2102 = vadd.f32 %v2038, -1.4531521
        %v2103 = vmul.f32 %v2039, %v1029
        %v2104 = vmul.f32 %v2040, %v1044
        %v2105 = vmul.f32 %v2041, %v1059
        %v2106 = vmul.f32 %v2042, %v1074
        %v2107 = vmul.f32 %v2043, %v1089
        %v2108 = vmul.f32 %v2044, %v1104
        %v2109 = vmul.f32 %v2045, %v1119
        %v2110 = vmul.f32 %v2046, %v1134
        %v2111 = vmul.f32 %v2047, %v1149
        %v2112 = vmul.f32 %v2048, %v1164
        %v2113 = vmul.f32 %v2049, %v1179
        %v2114 = vmul.f32 %v2050, %v1194
        %v2115 = vmul.f32 %v2051, %v1209
        %v2116 = vmul.f32 %v2052, %v1224
        %v2117 = vmul.f32 %v2053, %v1239
        %v2118 = vmul.f32 %v2054, %v1254
        %v2119 = vmul.f32 %v2055, %v1269
        %v2120 = vmul.f32 %v2056, %v1284
        %v2121 = vmul.f32 %v2057, %v1299
        %v2122 = vmul.f32 %v2058, %v1314
        %v2123 = vmul.f32 %v2059, %v1329
        %v2124 = vmul.f32 %v2060, %v1344
        %v2125 = vmul.f32 %v2061, %v1359
        %v2126 = vmul.f32 %v2062, %v1374
        %v2127 = vmul.f32 %v2063, %v1389
        %v2128 = vmul.f32 %v2064, %v1404
        %v2129 = vmul.f32 %v2065, %v1419
        %v2130 = vmul.f32 %v2066, %v1434
        %v2131 = vmul.f32 %v2067, %v1449
        %v2132 = vmul.f32 %v2068, %v1464
        %v2133 = vmul.f32 %v2069, %v1479
        %v2134 = vmul.f32 %v2070, %v1494
        %v2135 = vmul.f32 %v2071, %v1509
        %v2136 = vmul.f32 %v2072, %v1524
        %v2137 = vmul.f32 %v2073, %v1539
        %v2138 = vmul.f32 %v2074, %v1554
        %v2139 = vmul.f32 %v2075, %v1569
        %v2140 = vmul.f32 %v2076, %v1584
        %v2141 = vmul.f32 %v2077, %v1599
        %v2142 = vmul.f32 %v2078, %v1614
        %v2143 = vmul.f32 %v2079, %v1629
        %v2144 = vmul.f32 %v2080, %v1644
        %v2145 = vmul.f32 %v2081, %v1659
        %v2146 = vmul.f32 %v2082, %v1674
        %v2147 = vmul.f32 %v2083, %v1689
        %v2148 = vmul.f32 %v2084, %v1704
        %v2149 = vmul.f32 %v2085, %v1719
        %v2150 = vmul.f32 %v2086, %v1734
        %v2151 = vmul.f32 %v2087, %v1749
        %v2152 = vmul.f32 %v2088, %v1764
        %v2153 = vmul.f32 %v2089, %v1779
        %v2154 = vmul.f32 %v2090, %v1794
        %v2155 = vmul.f32 %v2091, %v1809
        %v2156 = vmul.f32 %v2092, %v1824
        %v2157 = vmul.f32 %v2093, %v1839
        %v2158 = vmul.f32 %v2094, %v1854
        %v2159 = vmul.f32 %v2095, %v1869
        %v2160 = vmul.f32 %v2096, %v1884
        %v2161 = vmul.f32 %v2097, %v1899
        %v2162 = vmul.f32 %v2098, %v1914
        %v2163 = vmul.f32 %v2099, %v1929
        %v2164 = vmul.f32 %v2100, %v1944
        %v2165 = vmul.f32 %v2101, %v1959
        %v2166 = vmul.f32 %v2102, %v1974
        %v2167 = vadd.f32 %v2103, 1.4214138
        %v2168 = vadd.f32 %v2104, 1.4214138
        %v2169 = vadd.f32 %v2105, 1.4214138
        %v2170 = vadd.f32 %v2106, 1.4214138
        %v2171 = vadd.f32 %v2107, 1.4214138
        %v2172 = vadd.f32 %v2108, 1.4214138
        %v2173 = vadd.f32 %v2109, 1.4214138
        %v2174 = vadd.f32 %v2110, 1.4214138
        %v2175 = vadd.f32 %v2111, 1.4214138
        %v2176 = vadd.f32 %v2112, 1.4214138
        %v2177 = vadd.f32 %v2113, 1.4214138
        %v2178 = vadd.f32 %v2114, 1.4214138
        %v2179 = vadd.f32 %v2115, 1.4214138
        %v2180 = vadd.f32 %v2116, 1.4214138
        %v2181 = vadd.f32 %v2117, 1.4214138
        %v2182 = vadd.f32 %v2118, 1.4214138
        %v2183 = vadd.f32 %v2119, 1.4214138
        %v2184 = vadd.f32 %v2120, 1.4214138
        %v2185 = vadd.f32 %v2121, 1.4214138
        %v2186 = vadd.f32 %v2122, 1.4214138
        %v2187 = vadd.f32 %v2123, 1.4214138
        %v2188 = vadd.f32 %v2124, 1.4214138
        %v2189 = vadd.f32 %v2125, 1.4214138
        %v2190 = vadd.f32 %v2126, 1.4214138
        %v2191 = vadd.f32 %v2127, 1.4214138
        %v2192 = vadd.f32 %v2128, 1.4214138
        %v2193 = vadd.f32 %v2129, 1.4214138
        %v2194 = vadd.f32 %v2130, 1.4214138
        %v2195 = vadd.f32 %v2131, 1.4214138
        %v2196 = vadd.f32 %v2132, 1.4214138
        %v2197 = vadd.f32 %v2133, 1.4214138
        %v2198 = vadd.f32 %v2134, 1.4214138
        %v2199 = vadd.f32 %v2135, 1.4214138
        %v2200 = vadd.f32 %v2136, 1.4214138
        %v2201 = vadd.f32 %v2137, 1.4214138
        %v2202 = vadd.f32 %v2138, 1.4214138
        %v2203 = vadd.f32 %v2139, 1.4214138
        %v2204 = vadd.f32 %v2140, 1.4214138
        %v2205 = vadd.f32 %v2141, 1.4214138
        %v2206 = vadd.f32 %v2142, 1.4214138
        %v2207 = vadd.f32 %v2143, 1.4214138
        %v2208 = vadd.f32 %v2144, 1.4214138
        %v2209 = vadd.f32 %v2145, 1.4214138
        %v2210 = vadd.f32 %v2146, 1.4214138
        %v2211 = vadd.f32 %v2147, 1.4214138
        %v2212 = vadd.f32 %v2148, 1.4214138
        %v2213 = vadd.f32 %v2149, 1.4214138
        %v2214 = vadd.f32 %v2150, 1.4214138
        %v2215 = vadd.f32 %v2151, 1.4214138
        %v2216 = vadd.f32 %v2152, 1.4214138
        %v2217 = vadd.f32 %v2153, 1.4214138
        %v2218 = vadd.f32 %v2154, 1.4214138
        %v2219 = vadd.f32 %v2155, 1.4214138
        %v2220 = vadd.f32 %v2156, 1.4214138
        %v2221 = vadd.f32 %v2157, 1.4214138
        %v2222 = vadd.f32 %v2158, 1.4214138
        %v2223 = vadd.f32 %v2159, 1.4214138
        %v2224 = vadd.f32 %v2160, 1.4214138
        %v2225 = vadd.f32 %v2161, 1.4214138
        %v2226 = vadd.f32 %v2162, 1.4214138
        %v2227 = vadd.f32 %v2163, 1.4214138
        %v2228 = vadd.f32 %v2164, 1.4214138
        %v2229 = vadd.f32 %v2165, 1.4214138
        %v2230 = vadd.f32 %v2166, 1.4214138
        %v2231 = vmul.f32 %v2167, %v1029
        %v2232 = vmul.f32 %v2168, %v1044
        %v2233 = vmul.f32 %v2169, %v1059
        %v2234 = vmul.f32 %v2170, %v1074
        %v2235 = vmul.f32 %v2171, %v1089
        %v2236 = vmul.f32 %v2172, %v1104
        %v2237 = vmul.f32 %v2173, %v1119
        %v2238 = vmul.f32 %v2174, %v1134
        %v2239 = vmul.f32 %v2175, %v1149
        %v2240 = vmul.f32 %v2176, %v1164
        %v2241 = vmul.f32 %v2177, %v1179
        %v2242 = vmul.f32 %v2178, %v1194
        %v2243 = vmul.f32 %v2179, %v1209
        %v2244 = vmul.f32 %v2180, %v1224
        %v2245 = vmul.f32 %v2181, %v1239
        %v2246 = vmul.f32 %v2182, %v1254
        %v2247 = vmul.f32 %v2183, %v1269
        %v2248 = vmul.f32 %v2184, %v1284
        %v2249 = vmul.f32 %v2185, %v1299
        %v2250 = vmul.f32 %v2186, %v1314
        %v2251 = vmul.f32 %v2187, %v1329
        %v2252 = vmul.f32 %v2188, %v1344
        %v2253 = vmul.f32 %v2189, %v1359
        %v2254 = vmul.f32 %v2190, %v1374
        %v2255 = vmul.f32 %v2191, %v1389
        %v2256 = vmul.f32 %v2192, %v1404
        %v2257 = vmul.f32 %v2193, %v1419
        %v2258 = vmul.f32 %v2194, %v1434
        %v2259 = vmul.f32 %v2195, %v1449
        %v2260 = vmul.f32 %v2196, %v1464
        %v2261 = vmul.f32 %v2197, %v1479
        %v2262 = vmul.f32 %v2198, %v1494
        %v2263 = vmul.f32 %v2199, %v1509
        %v2264 = vmul.f32 %v2200, %v1524
        %v2265 = vmul.f32 %v2201, %v1539
        %v2266 = vmul.f32 %v2202, %v1554
        %v2267 = vmul.f32 %v2203, %v1569
        %v2268 = vmul.f32 %v2204, %v1584
        %v2269 = vmul.f32 %v2205, %v1599
        %v2270 = vmul.f32 %v2206, %v1614
        %v2271 = vmul.f32 %v2207, %v1629
        %v2272 = vmul.f32 %v2208, %v1644
        %v2273 = vmul.f32 %v2209, %v1659
        %v2274 = vmul.f32 %v2210, %v1674
        %v2275 = vmul.f32 %v2211, %v1689
        %v2276 = vmul.f32 %v2212, %v1704
        %v2277 = vmul.f32 %v2213, %v1719
        %v2278 = vmul.f32 %v2214, %v1734
        %v2279 = vmul.f32 %v2215, %v1749
        %v2280 = vmul.f32 %v2216, %v1764
        %v2281 = vmul.f32 %v2217, %v1779
        %v2282 = vmul.f32 %v2218, %v1794
        %v2283 = vmul.f32 %v2219, %v1809
        %v2284 = vmul.f32 %v2220, %v1824
        %v2285 = vmul.f32 %v2221, %v1839
        %v2286 = vmul.f32 %v2222, %v1854
        %v2287 = vmul.f32 %v2223, %v1869
        %v2288 = vmul.f32 %v2224, %v1884
        %v2289 = vmul.f32 %v2225, %v1899
        %v2290 = vmul.f32 %v2226, %v1914
        %v2291 = vmul.f32 %v2227, %v1929
        %v2292 = vmul.f32 %v2228, %v1944
        %v2293 = vmul.f32 %v2229, %v1959
        %v2294 = vmul.f32 %v2230, %v1974
        %v2295 = vadd.f32 %v2231, -0.28449672
        %v2296 = vadd.f32 %v2232, -0.28449672
        %v2297 = vadd.f32 %v2233, -0.28449672
        %v2298 = vadd.f32 %v2234, -0.28449672
        %v2299 = vadd.f32 %v2235, -0.28449672
        %v2300 = vadd.f32 %v2236, -0.28449672
        %v2301 = vadd.f32 %v2237, -0.28449672
        %v2302 = vadd.f32 %v2238, -0.28449672
        %v2303 = vadd.f32 %v2239, -0.28449672
        %v2304 = vadd.f32 %v2240, -0.28449672
        %v2305 = vadd.f32 %v2241, -0.28449672
        %v2306 = vadd.f32 %v2242, -0.28449672
        %v2307 = vadd.f32 %v2243, -0.28449672
        %v2308 = vadd.f32 %v2244, -0.28449672
        %v2309 = vadd.f32 %v2245, -0.28449672
        %v2310 = vadd.f32 %v2246, -0.28449672
        %v2311 = vadd.f32 %v2247, -0.28449672
        %v2312 = vadd.f32 %v2248, -0.28449672
        %v2313 = vadd.f32 %v2249, -0.28449672
        %v2314 = vadd.f32 %v2250, -0.28449672
        %v2315 = vadd.f32 %v2251, -0.28449672
        %v2316 = vadd.f32 %v2252, -0.28449672
        %v2317 = vadd.f32 %v2253, -0.28449672
        %v2318 = vadd.f32 %v2254, -0.28449672
        %v2319 = vadd.f32 %v2255, -0.28449672
        %v2320 = vadd.f32 %v2256, -0.28449672
        %v2321 = vadd.f32 %v2257, -0.28449672
        %v2322 = vadd.f32 %v2258, -0.28449672
        %v2323 = vadd.f32 %v2259, -0.28449672
        %v2324 = vadd.f32 %v2260, -0.28449672
        %v2325 = vadd.f32 %v2261, -0.28449672
        %v2326 = vadd.f32 %v2262, -0.28449672
        %v2327 = vadd.f32 %v2263, -0.28449672
        %v2328 = vadd.f32 %v2264, -0.28449672
        %v2329 = vadd.f32 %v2265, -0.28449672
        %v2330 = vadd.f32 %v2266, -0.28449672
        %v2331 = vadd.f32 %v2267, -0.28449672
        %v2332 = vadd.f32 %v2268, -0.28449672
        %v2333 = vadd.f32 %v2269, -0.28449672
        %v2334 = vadd.f32 %v2270, -0.28449672
        %v2335 = vadd.f32 %v2271, -0.28449672
        %v2336 = vadd.f32 %v2272, -0.28449672
        %v2337 = vadd.f32 %v2273, -0.28449672
        %v2338 = vadd.f32 %v2274, -0.28449672
        %v2339 = vadd.f32 %v2275, -0.28449672
        %v2340 = vadd.f32 %v2276, -0.28449672
        %v2341 = vadd.f32 %v2277, -0.28449672
        %v2342 = vadd.f32 %v2278, -0.28449672
        %v2343 = vadd.f32 %v2279, -0.28449672
        %v2344 = vadd.f32 %v2280, -0.28449672
        %v2345 = vadd.f32 %v2281, -0.28449672
        %v2346 = vadd.f32 %v2282, -0.28449672
        %v2347 = vadd.f32 %v2283, -0.28449672
        %v2348 = vadd.f32 %v2284, -0.28449672
        %v2349 = vadd.f32 %v2285, -0.28449672
        %v2350 = vadd.f32 %v2286, -0.28449672
        %v2351 = vadd.f32 %v2287, -0.28449672
        %v2352 = vadd.f32 %v2288, -0.28449672
        %v2353 = vadd.f32 %v2289, -0.28449672
        %v2354 = vadd.f32 %v2290, -0.28449672
        %v2355 = vadd.f32 %v2291, -0.28449672
        %v2356 = vadd.f32 %v2292, -0.28449672
        %v2357 = vadd.f32 %v2293, -0.28449672
        %v2358 = vadd.f32 %v2294, -0.28449672
        %v2359 = vmul.f32 %v2295, %v1029
        %v2360 = vmul.f32 %v2296, %v1044
        %v2361 = vmul.f32 %v2297, %v1059
        %v2362 = vmul.f32 %v2298, %v1074
        %v2363 = vmul.f32 %v2299, %v1089
        %v2364 = vmul.f32 %v2300, %v1104
        %v2365 = vmul.f32 %v2301, %v1119
        %v2366 = vmul.f32 %v2302, %v1134
        %v2367 = vmul.f32 %v2303, %v1149
        %v2368 = vmul.f32 %v2304, %v1164
        %v2369 = vmul.f32 %v2305, %v1179
        %v2370 = vmul.f32 %v2306, %v1194
        %v2371 = vmul.f32 %v2307, %v1209
        %v2372 = vmul.f32 %v2308, %v1224
        %v2373 = vmul.f32 %v2309, %v1239
        %v2374 = vmul.f32 %v2310, %v1254
        %v2375 = vmul.f32 %v2311, %v1269
        %v2376 = vmul.f32 %v2312, %v1284
        %v2377 = vmul.f32 %v2313, %v1299
        %v2378 = vmul.f32 %v2314, %v1314
        %v2379 = vmul.f32 %v2315, %v1329
        %v2380 = vmul.f32 %v2316, %v1344
        %v2381 = vmul.f32 %v2317, %v1359
        %v2382 = vmul.f32 %v2318, %v1374
        %v2383 = vmul.f32 %v2319, %v1389
        %v2384 = vmul.f32 %v2320, %v1404
        %v2385 = vmul.f32 %v2321, %v1419
        %v2386 = vmul.f32 %v2322, %v1434
        %v2387 = vmul.f32 %v2323, %v1449
        %v2388 = vmul.f32 %v2324, %v1464
        %v2389 = vmul.f32 %v2325, %v1479
        %v2390 = vmul.f32 %v2326, %v1494
        %v2391 = vmul.f32 %v2327, %v1509
        %v2392 = vmul.f32 %v2328, %v1524
        %v2393 = vmul.f32 %v2329, %v1539
        %v2394 = vmul.f32 %v2330, %v1554
        %v2395 = vmul.f32 %v2331, %v1569
        %v2396 = vmul.f32 %v2332, %v1584
        %v2397 = vmul.f32 %v2333, %v1599
        %v2398 = vmul.f32 %v2334, %v1614
        %v2399 = vmul.f32 %v2335, %v1629
        %v2400 = vmul.f32 %v2336, %v1644
        %v2401 = vmul.f32 %v2337, %v1659
        %v2402 = vmul.f32 %v2338, %v1674
        %v2403 = vmul.f32 %v2339, %v1689
        %v2404 = vmul.f32 %v2340, %v1704
        %v2405 = vmul.f32 %v2341, %v1719
        %v2406 = vmul.f32 %v2342, %v1734
        %v2407 = vmul.f32 %v2343, %v1749
        %v2408 = vmul.f32 %v2344, %v1764
        %v2409 = vmul.f32 %v2345, %v1779
        %v2410 = vmul.f32 %v2346, %v1794
        %v2411 = vmul.f32 %v2347, %v1809
        %v2412 = vmul.f32 %v2348, %v1824
        %v2413 = vmul.f32 %v2349, %v1839
        %v2414 = vmul.f32 %v2350, %v1854
        %v2415 = vmul.f32 %v2351, %v1869
        %v2416 = vmul.f32 %v2352, %v1884
        %v2417 = vmul.f32 %v2353, %v1899
        %v2418 = vmul.f32 %v2354, %v1914
        %v2419 = vmul.f32 %v2355, %v1929
        %v2420 = vmul.f32 %v2356, %v1944
        %v2421 = vmul.f32 %v2357, %v1959
        %v2422 = vmul.f32 %v2358, %v1974
        %v2423 = vadd.f32 %v2359, 0.2548296
        %v2424 = vadd.f32 %v2360, 0.2548296
        %v2425 = vadd.f32 %v2361, 0.2548296
        %v2426 = vadd.f32 %v2362, 0.2548296
        %v2427 = vadd.f32 %v2363, 0.2548296
        %v2428 = vadd.f32 %v2364, 0.2548296
        %v2429 = vadd.f32 %v2365, 0.2548296
        %v2430 = vadd.f32 %v2366, 0.2548296
        %v2431 = vadd.f32 %v2367, 0.2548296
        %v2432 = vadd.f32 %v2368, 0.2548296
        %v2433 = vadd.f32 %v2369, 0.2548296
        %v2434 = vadd.f32 %v2370, 0.2548296
        %v2435 = vadd.f32 %v2371, 0.2548296
        %v2436 = vadd.f32 %v2372, 0.2548296
        %v2437 = vadd.f32 %v2373, 0.2548296
        %v2438 = vadd.f32 %v2374, 0.2548296
        %v2439 = vadd.f32 %v2375, 0.2548296
        %v2440 = vadd.f32 %v2376, 0.2548296
        %v2441 = vadd.f32 %v2377, 0.2548296
        %v2442 = vadd.f32 %v2378, 0.2548296
        %v2443 = vadd.f32 %v2379, 0.2548296
        %v2444 = vadd.f32 %v2380, 0.2548296
        %v2445 = vadd.f32 %v2381, 0.2548296
        %v2446 = vadd.f32 %v2382, 0.2548296
        %v2447 = vadd.f32 %v2383, 0.2548296
        %v2448 = vadd.f32 %v2384, 0.2548296
        %v2449 = vadd.f32 %v2385, 0.2548296
        %v2450 = vadd.f32 %v2386, 0.2548296
        %v2451 = vadd.f32 %v2387, 0.2548296
        %v2452 = vadd.f32 %v2388, 0.2548296
        %v2453 = vadd.f32 %v2389, 0.2548296
        %v2454 = vadd.f32 %v2390, 0.2548296
        %v2455 = vadd.f32 %v2391, 0.2548296
        %v2456 = vadd.f32 %v2392, 0.2548296
        %v2457 = vadd.f32 %v2393, 0.2548296
        %v2458 = vadd.f32 %v2394, 0.2548296
        %v2459 = vadd.f32 %v2395, 0.2548296
        %v2460 = vadd.f32 %v2396, 0.2548296
        %v2461 = vadd.f32 %v2397, 0.2548296
        %v2462 = vadd.f32 %v2398, 0.2548296
        %v2463 = vadd.f32 %v2399, 0.2548296
        %v2464 = vadd.f32 %v2400, 0.2548296
        %v2465 = vadd.f32 %v2401, 0.2548296
        %v2466 = vadd.f32 %v2402, 0.2548296
        %v2467 = vadd.f32 %v2403, 0.2548296
        %v2468 = vadd.f32 %v2404, 0.2548296
        %v2469 = vadd.f32 %v2405, 0.2548296
        %v2470 = vadd.f32 %v2406, 0.2548296
        %v2471 = vadd.f32 %v2407, 0.2548296
        %v2472 = vadd.f32 %v2408, 0.2548296
        %v2473 = vadd.f32 %v2409, 0.2548296
        %v2474 = vadd.f32 %v2410, 0.2548296
        %v2475 = vadd.f32 %v2411, 0.2548296
        %v2476 = vadd.f32 %v2412, 0.2548296
        %v2477 = vadd.f32 %v2413, 0.2548296
        %v2478 = vadd.f32 %v2414, 0.2548296
        %v2479 = vadd.f32 %v2415, 0.2548296
        %v2480 = vadd.f32 %v2416, 0.2548296
        %v2481 = vadd.f32 %v2417, 0.2548296
        %v2482 = vadd.f32 %v2418, 0.2548296
        %v2483 = vadd.f32 %v2419, 0.2548296
        %v2484 = vadd.f32 %v2420, 0.2548296
        %v2485 = vadd.f32 %v2421, 0.2548296
        %v2486 = vadd.f32 %v2422, 0.2548296
        %v2487 = vmul.f32 %v2423, %v1029
        %v2488 = vmul.f32 %v2424, %v1044
        %v2489 = vmul.f32 %v2425, %v1059
        %v2490 = vmul.f32 %v2426, %v1074
        %v2491 = vmul.f32 %v2427, %v1089
        %v2492 = vmul.f32 %v2428, %v1104
        %v2493 = vmul.f32 %v2429, %v1119
        %v2494 = vmul.f32 %v2430, %v1134
        %v2495 = vmul.f32 %v2431, %v1149
        %v2496 = vmul.f32 %v2432, %v1164
        %v2497 = vmul.f32 %v2433, %v1179
        %v2498 = vmul.f32 %v2434, %v1194
        %v2499 = vmul.f32 %v2435, %v1209
        %v2500 = vmul.f32 %v2436, %v1224
        %v2501 = vmul.f32 %v2437, %v1239
        %v2502 = vmul.f32 %v2438, %v1254
        %v2503 = vmul.f32 %v2439, %v1269
        %v2504 = vmul.f32 %v2440, %v1284
        %v2505 = vmul.f32 %v2441, %v1299
        %v2506 = vmul.f32 %v2442, %v1314
        %v2507 = vmul.f32 %v2443, %v1329
        %v2508 = vmul.f32 %v2444, %v1344
        %v2509 = vmul.f32 %v2445, %v1359
        %v2510 = vmul.f32 %v2446, %v1374
        %v2511 = vmul.f32 %v2447, %v1389
        %v2512 = vmul.f32 %v2448, %v1404
        %v2513 = vmul.f32 %v2449, %v1419
        %v2514 = vmul.f32 %v2450, %v1434
        %v2515 = vmul.f32 %v2451, %v1449
        %v2516 = vmul.f32 %v2452, %v1464
        %v2517 = vmul.f32 %v2453, %v1479
        %v2518 = vmul.f32 %v2454, %v1494
        %v2519 = vmul.f32 %v2455, %v1509
        %v2520 = vmul.f32 %v2456, %v1524
        %v2521 = vmul.f32 %v2457, %v1539
        %v2522 = vmul.f32 %v2458, %v1554
        %v2523 = vmul.f32 %v2459, %v1569
        %v2524 = vmul.f32 %v2460, %v1584
        %v2525 = vmul.f32 %v2461, %v1599
        %v2526 = vmul.f32 %v2462, %v1614
        %v2527 = vmul.f32 %v2463, %v1629
        %v2528 = vmul.f32 %v2464, %v1644
        %v2529 = vmul.f32 %v2465, %v1659
        %v2530 = vmul.f32 %v2466, %v1674
        %v2531 = vmul.f32 %v2467, %v1689
        %v2532 = vmul.f32 %v2468, %v1704
        %v2533 = vmul.f32 %v2469, %v1719
        %v2534 = vmul.f32 %v2470, %v1734
        %v2535 = vmul.f32 %v2471, %v1749
        %v2536 = vmul.f32 %v2472, %v1764
        %v2537 = vmul.f32 %v2473, %v1779
        %v2538 = vmul.f32 %v2474, %v1794
        %v2539 = vmul.f32 %v2475, %v1809
        %v2540 = vmul.f32 %v2476, %v1824
        %v2541 = vmul.f32 %v2477, %v1839
        %v2542 = vmul.f32 %v2478, %v1854
        %v2543 = vmul.f32 %v2479, %v1869
        %v2544 = vmul.f32 %v2480, %v1884
        %v2545 = vmul.f32 %v2481, %v1899
        %v2546 = vmul.f32 %v2482, %v1914
        %v2547 = vmul.f32 %v2483, %v1929
        %v2548 = vmul.f32 %v2484, %v1944
        %v2549 = vmul.f32 %v2485, %v1959
        %v2550 = vmul.f32 %v2486, %v1974
        %v2551 = vsub.f32 0.0, %v823
        %v2552 = vsub.f32 0.0, %v824
        %v2553 = vsub.f32 0.0, %v825
        %v2554 = vsub.f32 0.0, %v826
        %v2555 = vsub.f32 0.0, %v827
        %v2556 = vsub.f32 0.0, %v828
        %v2557 = vsub.f32 0.0, %v829
        %v2558 = vsub.f32 0.0, %v830
        %v2559 = vsub.f32 0.0, %v831
        %v2560 = vsub.f32 0.0, %v832
        %v2561 = vsub.f32 0.0, %v833
        %v2562 = vsub.f32 0.0, %v834
        %v2563 = vsub.f32 0.0, %v835
        %v2564 = vsub.f32 0.0, %v836
        %v2565 = vsub.f32 0.0, %v837
        %v2566 = vsub.f32 0.0, %v838
        %v2567 = vsub.f32 0.0, %v839
        %v2568 = vsub.f32 0.0, %v840
        %v2569 = vsub.f32 0.0, %v841
        %v2570 = vsub.f32 0.0, %v842
        %v2571 = vsub.f32 0.0, %v843
        %v2572 = vsub.f32 0.0, %v844
        %v2573 = vsub.f32 0.0, %v845
        %v2574 = vsub.f32 0.0, %v846
        %v2575 = vsub.f32 0.0, %v847
        %v2576 = vsub.f32 0.0, %v848
        %v2577 = vsub.f32 0.0, %v849
        %v2578 = vsub.f32 0.0, %v850
        %v2579 = vsub.f32 0.0, %v851
        %v2580 = vsub.f32 0.0, %v852
        %v2581 = vsub.f32 0.0, %v853
        %v2582 = vsub.f32 0.0, %v854
        %v2583 = vsub.f32 0.0, %v855
        %v2584 = vsub.f32 0.0, %v856
        %v2585 = vsub.f32 0.0, %v857
        %v2586 = vsub.f32 0.0, %v858
        %v2587 = vsub.f32 0.0, %v859
        %v2588 = vsub.f32 0.0, %v860
        %v2589 = vsub.f32 0.0, %v861
        %v2590 = vsub.f32 0.0, %v862
        %v2591 = vsub.f32 0.0, %v863
        %v2592 = vsub.f32 0.0, %v864
        %v2593 = vsub.f32 0.0, %v865
        %v2594 = vsub.f32 0.0, %v866
        %v2595 = vsub.f32 0.0, %v867
        %v2596 = vsub.f32 0.0, %v868
        %v2597 = vsub.f32 0.0, %v869
        %v2598 = vsub.f32 0.0, %v870
        %v2599 = vsub.f32 0.0, %v871
        %v2600 = vsub.f32 0.0, %v872
        %v2601 = vsub.f32 0.0, %v873
        %v2602 = vsub.f32 0.0, %v874
        %v2603 = vsub.f32 0.0, %v875
        %v2604 = vsub.f32 0.0, %v876
        %v2605 = vsub.f32 0.0, %v877
        %v2606 = vsub.f32 0.0, %v878
        %v2607 = vsub.f32 0.0, %v879
        %v2608 = vsub.f32 0.0, %v880
        %v2609 = vsub.f32 0.0, %v881
        %v2610 = vsub.f32 0.0, %v882
        %v2611 = vsub.f32 0.0, %v883
        %v2612 = vsub.f32 0.0, %v884
        %v2613 = vsub.f32 0.0, %v885
        %v2614 = vsub.f32 0.0, %v886
        %v2615 = vmul.f32 %v2551, %v823
        %v2616 = vmul.f32 %v2552, %v824
        %v2617 = vmul.f32 %v2553, %v825
        %v2618 = vmul.f32 %v2554, %v826
        %v2619 = vmul.f32 %v2555, %v827
        %v2620 = vmul.f32 %v2556, %v828
        %v2621 = vmul.f32 %v2557, %v829
        %v2622 = vmul.f32 %v2558, %v830
        %v2623 = vmul.f32 %v2559, %v831
        %v2624 = vmul.f32 %v2560, %v832
        %v2625 = vmul.f32 %v2561, %v833
        %v2626 = vmul.f32 %v2562, %v834
        %v2627 = vmul.f32 %v2563, %v835
        %v2628 = vmul.f32 %v2564, %v836
        %v2629 = vmul.f32 %v2565, %v837
        %v2630 = vmul.f32 %v2566, %v838
        %v2631 = vmul.f32 %v2567, %v839
        %v2632 = vmul.f32 %v2568, %v840
        %v2633 = vmul.f32 %v2569, %v841
        %v2634 = vmul.f32 %v2570, %v842
        %v2635 = vmul.f32 %v2571, %v843
        %v2636 = vmul.f32 %v2572, %v844
        %v2637 = vmul.f32 %v2573, %v845
        %v2638 = vmul.f32 %v2574, %v846
        %v2639 = vmul.f32 %v2575, %v847
        %v2640 = vmul.f32 %v2576, %v848
        %v2641 = vmul.f32 %v2577, %v849
        %v2642 = vmul.f32 %v2578, %v850
        %v2643 = vmul.f32 %v2579, %v851
        %v2644 = vmul.f32 %v2580, %v852
        %v2645 = vmul.f32 %v2581, %v853
        %v2646 = vmul.f32 %v2582, %v854
        %v2647 = vmul.f32 %v2583, %v855
        %v2648 = vmul.f32 %v2584, %v856
        %v2649 = vmul.f32 %v2585, %v857
        %v2650 = vmul.f32 %v2586, %v858
        %v2651 = vmul.f32 %v2587, %v859
        %v2652 = vmul.f32 %v2588, %v860
        %v2653 = vmul.f32 %v2589, %v861
        %v2654 = vmul.f32 %v2590, %v862
        %v2655 = vmul.f32 %v2591, %v863
        %v2656 = vmul.f32 %v2592, %v864
        %v2657 = vmul.f32 %v2593, %v865
        %v2658 = vmul.f32 %v2594, %v866
        %v2659 = vmul.f32 %v2595, %v867
        %v2660 = vmul.f32 %v2596, %v868
        %v2661 = vmul.f32 %v2597, %v869
        %v2662 = vmul.f32 %v2598, %v870
        %v2663 = vmul.f32 %v2599, %v871
        %v2664 = vmul.f32 %v2600, %v872
        %v2665 = vmul.f32 %v2601, %v873
        %v2666 = vmul.f32 %v2602, %v874
        %v2667 = vmul.f32 %v2603, %v875
        %v2668 = vmul.f32 %v2604, %v876
        %v2669 = vmul.f32 %v2605, %v877
        %v2670 = vmul.f32 %v2606, %v878
        %v2671 = vmul.f32 %v2607, %v879
        %v2672 = vmul.f32 %v2608, %v880
        %v2673 = vmul.f32 %v2609, %v881
        %v2674 = vmul.f32 %v2610, %v882
        %v2675 = vmul.f32 %v2611, %v883
        %v2676 = vmul.f32 %v2612, %v884
        %v2677 = vmul.f32 %v2613, %v885
        %v2678 = vmul.f32 %v2614, %v886
        %v2679 = vmul.f32 %v2615, 1.442695
        %v2680 = vpow.pop %v2679
        %v2681 = vmul.f32 %v2616, 1.442695
        %v2682 = vpow.pop %v2681
        %v2683 = vmul.f32 %v2617, 1.442695
        %v2684 = vpow.pop %v2683
        %v2685 = vmul.f32 %v2618, 1.442695
        %v2686 = vpow.pop %v2685
        %v2687 = vmul.f32 %v2619, 1.442695
        %v2688 = vpow.pop %v2687
        %v2689 = vmul.f32 %v2620, 1.442695
        %v2690 = vpow.pop %v2689
        %v2691 = vmul.f32 %v2621, 1.442695
        %v2692 = vpow.pop %v2691
        %v2693 = vmul.f32 %v2622, 1.442695
        %v2694 = vpow.pop %v2693
        %v2695 = vmul.f32 %v2623, 1.442695
        %v2696 = vpow.pop %v2695
        %v2697 = vmul.f32 %v2624, 1.442695
        %v2698 = vpow.pop %v2697
        %v2699 = vmul.f32 %v2625, 1.442695
        %v2700 = vpow.pop %v2699
        %v2701 = vmul.f32 %v2626, 1.442695
        %v2702 = vpow.pop %v2701
        %v2703 = vmul.f32 %v2627, 1.442695
        %v2704 = vpow.pop %v2703
        %v2705 = vmul.f32 %v2628, 1.442695
        %v2706 = vpow.pop %v2705
        %v2707 = vmul.f32 %v2629, 1.442695
        %v2708 = vpow.pop %v2707
        %v2709 = vmul.f32 %v2630, 1.442695
        %v2710 = vpow.pop %v2709
        %v2711 = vmul.f32 %v2631, 1.442695
        %v2712 = vpow.pop %v2711
        %v2713 = vmul.f32 %v2632, 1.442695
        %v2714 = vpow.pop %v2713
        %v2715 = vmul.f32 %v2633, 1.442695
        %v2716 = vpow.pop %v2715
        %v2717 = vmul.f32 %v2634, 1.442695
        %v2718 = vpow.pop %v2717
        %v2719 = vmul.f32 %v2635, 1.442695
        %v2720 = vpow.pop %v2719
        %v2721 = vmul.f32 %v2636, 1.442695
        %v2722 = vpow.pop %v2721
        %v2723 = vmul.f32 %v2637, 1.442695
        %v2724 = vpow.pop %v2723
        %v2725 = vmul.f32 %v2638, 1.442695
        %v2726 = vpow.pop %v2725
        %v2727 = vmul.f32 %v2639, 1.442695
        %v2728 = vpow.pop %v2727
        %v2729 = vmul.f32 %v2640, 1.442695
        %v2730 = vpow.pop %v2729
        %v2731 = vmul.f32 %v2641, 1.442695
        %v2732 = vpow.pop %v2731
        %v2733 = vmul.f32 %v2642, 1.442695
        %v2734 = vpow.pop %v2733
        %v2735 = vmul.f32 %v2643, 1.442695
        %v2736 = vpow.pop %v2735
        %v2737 = vmul.f32 %v2644, 1.442695
        %v2738 = vpow.pop %v2737
        %v2739 = vmul.f32 %v2645, 1.442695
        %v2740 = vpow.pop %v2739
        %v2741 = vmul.f32 %v2646, 1.442695
        %v2742 = vpow.pop %v2741
        %v2743 = vmul.f32 %v2647, 1.442695
        %v2744 = vpow.pop %v2743
        %v2745 = vmul.f32 %v2648, 1.442695
        %v2746 = vpow.pop %v2745
        %v2747 = vmul.f32 %v2649, 1.442695
        %v2748 = vpow.pop %v2747
        %v2749 = vmul.f32 %v2650, 1.442695
        %v2750 = vpow.pop %v2749
        %v2751 = vmul.f32 %v2651, 1.442695
        %v2752 = vpow.pop %v2751
        %v2753 = vmul.f32 %v2652, 1.442695
        %v2754 = vpow.pop %v2753
        %v2755 = vmul.f32 %v2653, 1.442695
        %v2756 = vpow.pop %v2755
        %v2757 = vmul.f32 %v2654, 1.442695
        %v2758 = vpow.pop %v2757
        %v2759 = vmul.f32 %v2655, 1.442695
        %v2760 = vpow.pop %v2759
        %v2761 = vmul.f32 %v2656, 1.442695
        %v2762 = vpow.pop %v2761
        %v2763 = vmul.f32 %v2657, 1.442695
        %v2764 = vpow.pop %v2763
        %v2765 = vmul.f32 %v2658, 1.442695
        %v2766 = vpow.pop %v2765
        %v2767 = vmul.f32 %v2659, 1.442695
        %v2768 = vpow.pop %v2767
        %v2769 = vmul.f32 %v2660, 1.442695
        %v2770 = vpow.pop %v2769
        %v2771 = vmul.f32 %v2661, 1.442695
        %v2772 = vpow.pop %v2771
        %v2773 = vmul.f32 %v2662, 1.442695
        %v2774 = vpow.pop %v2773
        %v2775 = vmul.f32 %v2663, 1.442695
        %v2776 = vpow.pop %v2775
        %v2777 = vmul.f32 %v2664, 1.442695
        %v2778 = vpow.pop %v2777
        %v2779 = vmul.f32 %v2665, 1.442695
        %v2780 = vpow.pop %v2779
        %v2781 = vmul.f32 %v2666, 1.442695
        %v2782 = vpow.pop %v2781
        %v2783 = vmul.f32 %v2667, 1.442695
        %v2784 = vpow.pop %v2783
        %v2785 = vmul.f32 %v2668, 1.442695
        %v2786 = vpow.pop %v2785
        %v2787 = vmul.f32 %v2669, 1.442695
        %v2788 = vpow.pop %v2787
        %v2789 = vmul.f32 %v2670, 1.442695
        %v2790 = vpow.pop %v2789
        %v2791 = vmul.f32 %v2671, 1.442695
        %v2792 = vpow.pop %v2791
        %v2793 = vmul.f32 %v2672, 1.442695
        %v2794 = vpow.pop %v2793
        %v2795 = vmul.f32 %v2673, 1.442695
        %v2796 = vpow.pop %v2795
        %v2797 = vmul.f32 %v2674, 1.442695
        %v2798 = vpow.pop %v2797
        %v2799 = vmul.f32 %v2675, 1.442695
        %v2800 = vpow.pop %v2799
        %v2801 = vmul.f32 %v2676, 1.442695
        %v2802 = vpow.pop %v2801
        %v2803 = vmul.f32 %v2677, 1.442695
        %v2804 = vpow.pop %v2803
        %v2805 = vmul.f32 %v2678, 1.442695
        %v2806 = vpow.pop %v2805
        %v2807 = vmul.f32 %v2487, %v2680
        %v2808 = vmul.f32 %v2488, %v2682
        %v2809 = vmul.f32 %v2489, %v2684
        %v2810 = vmul.f32 %v2490, %v2686
        %v2811 = vmul.f32 %v2491, %v2688
        %v2812 = vmul.f32 %v2492, %v2690
        %v2813 = vmul.f32 %v2493, %v2692
        %v2814 = vmul.f32 %v2494, %v2694
        %v2815 = vmul.f32 %v2495, %v2696
        %v2816 = vmul.f32 %v2496, %v2698
        %v2817 = vmul.f32 %v2497, %v2700
        %v2818 = vmul.f32 %v2498, %v2702
        %v2819 = vmul.f32 %v2499, %v2704
        %v2820 = vmul.f32 %v2500, %v2706
        %v2821 = vmul.f32 %v2501, %v2708
        %v2822 = vmul.f32 %v2502, %v2710
        %v2823 = vmul.f32 %v2503, %v2712
        %v2824 = vmul.f32 %v2504, %v2714
        %v2825 = vmul.f32 %v2505, %v2716
        %v2826 = vmul.f32 %v2506, %v2718
        %v2827 = vmul.f32 %v2507, %v2720
        %v2828 = vmul.f32 %v2508, %v2722
        %v2829 = vmul.f32 %v2509, %v2724
        %v2830 = vmul.f32 %v2510, %v2726
        %v2831 = vmul.f32 %v2511, %v2728
        %v2832 = vmul.f32 %v2512, %v2730
        %v2833 = vmul.f32 %v2513, %v2732
        %v2834 = vmul.f32 %v2514, %v2734
        %v2835 = vmul.f32 %v2515, %v2736
        %v2836 = vmul.f32 %v2516, %v2738
        %v2837 = vmul.f32 %v2517, %v2740
        %v2838 = vmul.f32 %v2518, %v2742
        %v2839 = vmul.f32 %v2519, %v2744
        %v2840 = vmul.f32 %v2520, %v2746
        %v2841 = vmul.f32 %v2521, %v2748
        %v2842 = vmul.f32 %v2522, %v2750
        %v2843 = vmul.f32 %v2523, %v2752
        %v2844 = vmul.f32 %v2524, %v2754
        %v2845 = vmul.f32 %v2525, %v2756
        %v2846 = vmul.f32 %v2526, %v2758
        %v2847 = vmul.f32 %v2527, %v2760
        %v2848 = vmul.f32 %v2528, %v2762
        %v2849 = vmul.f32 %v2529, %v2764
        %v2850 = vmul.f32 %v2530, %v2766
        %v2851 = vmul.f32 %v2531, %v2768
        %v2852 = vmul.f32 %v2532, %v2770
        %v2853 = vmul.f32 %v2533, %v2772
        %v2854 = vmul.f32 %v2534, %v2774
        %v2855 = vmul.f32 %v2535, %v2776
        %v2856 = vmul.f32 %v2536, %v2778
        %v2857 = vmul.f32 %v2537, %v2780
        %v2858 = vmul.f32 %v2538, %v2782
        %v2859 = vmul.f32 %v2539, %v2784
        %v2860 = vmul.f32 %v2540, %v2786
        %v2861 = vmul.f32 %v2541, %v2788
        %v2862 = vmul.f32 %v2542, %v2790
        %v2863 = vmul.f32 %v2543, %v2792
        %v2864 = vmul.f32 %v2544, %v2794
        %v2865 = vmul.f32 %v2545, %v2796
        %v2866 = vmul.f32 %v2546, %v2798
        %v2867 = vmul.f32 %v2547, %v2800
        %v2868 = vmul.f32 %v2548, %v2802
        %v2869 = vmul.f32 %v2549, %v2804
        %v2870 = vmul.f32 %v2550, %v2806
        %v2871 = vsub.f32 1.0, %v2807
        %v2872 = vsub.f32 1.0, %v2808
        %v2873 = vsub.f32 1.0, %v2809
        %v2874 = vsub.f32 1.0, %v2810
        %v2875 = vsub.f32 1.0, %v2811
        %v2876 = vsub.f32 1.0, %v2812
        %v2877 = vsub.f32 1.0, %v2813
        %v2878 = vsub.f32 1.0, %v2814
        %v2879 = vsub.f32 1.0, %v2815
        %v2880 = vsub.f32 1.0, %v2816
        %v2881 = vsub.f32 1.0, %v2817
        %v2882 = vsub.f32 1.0, %v2818
        %v2883 = vsub.f32 1.0, %v2819
        %v2884 = vsub.f32 1.0, %v2820
        %v2885 = vsub.f32 1.0, %v2821
        %v2886 = vsub.f32 1.0, %v2822
        %v2887 = vsub.f32 1.0, %v2823
        %v2888 = vsub.f32 1.0, %v2824
        %v2889 = vsub.f32 1.0, %v2825
        %v2890 = vsub.f32 1.0, %v2826
        %v2891 = vsub.f32 1.0, %v2827
        %v2892 = vsub.f32 1.0, %v2828
        %v2893 = vsub.f32 1.0, %v2829
        %v2894 = vsub.f32 1.0, %v2830
        %v2895 = vsub.f32 1.0, %v2831
        %v2896 = vsub.f32 1.0, %v2832
        %v2897 = vsub.f32 1.0, %v2833
        %v2898 = vsub.f32 1.0, %v2834
        %v2899 = vsub.f32 1.0, %v2835
        %v2900 = vsub.f32 1.0, %v2836
        %v2901 = vsub.f32 1.0, %v2837
        %v2902 = vsub.f32 1.0, %v2838
        %v2903 = vsub.f32 1.0, %v2839
        %v2904 = vsub.f32 1.0, %v2840
        %v2905 = vsub.f32 1.0, %v2841
        %v2906 = vsub.f32 1.0, %v2842
        %v2907 = vsub.f32 1.0, %v2843
        %v2908 = vsub.f32 1.0, %v2844
        %v2909 = vsub.f32 1.0, %v2845
        %v2910 = vsub.f32 1.0, %v2846
        %v2911 = vsub.f32 1.0, %v2847
        %v2912 = vsub.f32 1.0, %v2848
        %v2913 = vsub.f32 1.0, %v2849
        %v2914 = vsub.f32 1.0, %v2850
        %v2915 = vsub.f32 1.0, %v2851
        %v2916 = vsub.f32 1.0, %v2852
        %v2917 = vsub.f32 1.0, %v2853
        %v2918 = vsub.f32 1.0, %v2854
        %v2919 = vsub.f32 1.0, %v2855
        %v2920 = vsub.f32 1.0, %v2856
        %v2921 = vsub.f32 1.0, %v2857
        %v2922 = vsub.f32 1.0, %v2858
        %v2923 = vsub.f32 1.0, %v2859
        %v2924 = vsub.f32 1.0, %v2860
        %v2925 = vsub.f32 1.0, %v2861
        %v2926 = vsub.f32 1.0, %v2862
        %v2927 = vsub.f32 1.0, %v2863
        %v2928 = vsub.f32 1.0, %v2864
        %v2929 = vsub.f32 1.0, %v2865
        %v2930 = vsub.f32 1.0, %v2866
        %v2931 = vsub.f32 1.0, %v2867
        %v2932 = vsub.f32 1.0, %v2868
        %v2933 = vsub.f32 1.0, %v2869
        %v2934 = vsub.f32 1.0, %v2870
        %vm2935 = vcmp.lt.f32.partialorder %v759, 0.0
        %vm2936 = vcmp.lt.f32.partialorder %v760, 0.0
        %vm2937 = vcmp.lt.f32.partialorder %v761, 0.0
        %vm2938 = vcmp.lt.f32.partialorder %v762, 0.0
        %vm2939 = vcmp.lt.f32.partialorder %v763, 0.0
        %vm2940 = vcmp.lt.f32.partialorder %v764, 0.0
        %vm2941 = vcmp.lt.f32.partialorder %v765, 0.0
        %vm2942 = vcmp.lt.f32.partialorder %v766, 0.0
        %vm2943 = vcmp.lt.f32.partialorder %v767, 0.0
        %vm2944 = vcmp.lt.f32.partialorder %v768, 0.0
        %vm2945 = vcmp.lt.f32.partialorder %v769, 0.0
        %vm2946 = vcmp.lt.f32.partialorder %v770, 0.0
        %vm2947 = vcmp.lt.f32.partialorder %v771, 0.0
        %vm2948 = vcmp.lt.f32.partialorder %v772, 0.0
        %vm2949 = vcmp.lt.f32.partialorder %v773, 0.0
        %vm2950 = vcmp.lt.f32.partialorder %v774, 0.0
        %vm2951 = vcmp.lt.f32.partialorder %v775, 0.0
        %vm2952 = vcmp.lt.f32.partialorder %v776, 0.0
        %vm2953 = vcmp.lt.f32.partialorder %v777, 0.0
        %vm2954 = vcmp.lt.f32.partialorder %v778, 0.0
        %vm2955 = vcmp.lt.f32.partialorder %v779, 0.0
        %vm2956 = vcmp.lt.f32.partialorder %v780, 0.0
        %vm2957 = vcmp.lt.f32.partialorder %v781, 0.0
        %vm2958 = vcmp.lt.f32.partialorder %v782, 0.0
        %vm2959 = vcmp.lt.f32.partialorder %v783, 0.0
        %vm2960 = vcmp.lt.f32.partialorder %v784, 0.0
        %vm2961 = vcmp.lt.f32.partialorder %v785, 0.0
        %vm2962 = vcmp.lt.f32.partialorder %v786, 0.0
        %vm2963 = vcmp.lt.f32.partialorder %v787, 0.0
        %vm2964 = vcmp.lt.f32.partialorder %v788, 0.0
        %vm2965 = vcmp.lt.f32.partialorder %v789, 0.0
        %vm2966 = vcmp.lt.f32.partialorder %v790, 0.0
        %vm2967 = vcmp.lt.f32.partialorder %v791, 0.0
        %vm2968 = vcmp.lt.f32.partialorder %v792, 0.0
        %vm2969 = vcmp.lt.f32.partialorder %v793, 0.0
        %vm2970 = vcmp.lt.f32.partialorder %v794, 0.0
        %vm2971 = vcmp.lt.f32.partialorder %v795, 0.0
        %vm2972 = vcmp.lt.f32.partialorder %v796, 0.0
        %vm2973 = vcmp.lt.f32.partialorder %v797, 0.0
        %vm2974 = vcmp.lt.f32.partialorder %v798, 0.0
        %vm2975 = vcmp.lt.f32.partialorder %v799, 0.0
        %vm2976 = vcmp.lt.f32.partialorder %v800, 0.0
        %vm2977 = vcmp.lt.f32.partialorder %v801, 0.0
        %vm2978 = vcmp.lt.f32.partialorder %v802, 0.0
        %vm2979 = vcmp.lt.f32.partialorder %v803, 0.0
        %vm2980 = vcmp.lt.f32.partialorder %v804, 0.0
        %vm2981 = vcmp.lt.f32.partialorder %v805, 0.0
        %vm2982 = vcmp.lt.f32.partialorder %v806, 0.0
        %vm2983 = vcmp.lt.f32.partialorder %v807, 0.0
        %vm2984 = vcmp.lt.f32.partialorder %v808, 0.0
        %vm2985 = vcmp.lt.f32.partialorder %v809, 0.0
        %vm2986 = vcmp.lt.f32.partialorder %v810, 0.0
        %vm2987 = vcmp.lt.f32.partialorder %v811, 0.0
        %vm2988 = vcmp.lt.f32.partialorder %v812, 0.0
        %vm2989 = vcmp.lt.f32.partialorder %v813, 0.0
        %vm2990 = vcmp.lt.f32.partialorder %v814, 0.0
        %vm2991 = vcmp.lt.f32.partialorder %v815, 0.0
        %vm2992 = vcmp.lt.f32.partialorder %v816, 0.0
        %vm2993 = vcmp.lt.f32.partialorder %v817, 0.0
        %vm2994 = vcmp.lt.f32.partialorder %v818, 0.0
        %vm2995 = vcmp.lt.f32.partialorder %v819, 0.0
        %vm2996 = vcmp.lt.f32.partialorder %v820, 0.0
        %vm2997 = vcmp.lt.f32.partialorder %v821, 0.0
        %vm2998 = vcmp.lt.f32.partialorder %v822, 0.0
        %v2999 = vsub.f32 0.0, %v2871
        %v3000 = vsub.f32 0.0, %v2872
        %v3001 = vsub.f32 0.0, %v2873
        %v3002 = vsub.f32 0.0, %v2874
        %v3003 = vsub.f32 0.0, %v2875
        %v3004 = vsub.f32 0.0, %v2876
        %v3005 = vsub.f32 0.0, %v2877
        %v3006 = vsub.f32 0.0, %v2878
        %v3007 = vsub.f32 0.0, %v2879
        %v3008 = vsub.f32 0.0, %v2880
        %v3009 = vsub.f32 0.0, %v2881
        %v3010 = vsub.f32 0.0, %v2882
        %v3011 = vsub.f32 0.0, %v2883
        %v3012 = vsub.f32 0.0, %v2884
        %v3013 = vsub.f32 0.0, %v2885
        %v3014 = vsub.f32 0.0, %v2886
        %v3015 = vsub.f32 0.0, %v2887
        %v3016 = vsub.f32 0.0, %v2888
        %v3017 = vsub.f32 0.0, %v2889
        %v3018 = vsub.f32 0.0, %v2890
        %v3019 = vsub.f32 0.0, %v2891
        %v3020 = vsub.f32 0.0, %v2892
        %v3021 = vsub.f32 0.0, %v2893
        %v3022 = vsub.f32 0.0, %v2894
        %v3023 = vsub.f32 0.0, %v2895
        %v3024 = vsub.f32 0.0, %v2896
        %v3025 = vsub.f32 0.0, %v2897
        %v3026 = vsub.f32 0.0, %v2898
        %v3027 = vsub.f32 0.0, %v2899
        %v3028 = vsub.f32 0.0, %v2900
        %v3029 = vsub.f32 0.0, %v2901
        %v3030 = vsub.f32 0.0, %v2902
        %v3031 = vsub.f32 0.0, %v2903
        %v3032 = vsub.f32 0.0, %v2904
        %v3033 = vsub.f32 0.0, %v2905
        %v3034 = vsub.f32 0.0, %v2906
        %v3035 = vsub.f32 0.0, %v2907
        %v3036 = vsub.f32 0.0, %v2908
        %v3037 = vsub.f32 0.0, %v2909
        %v3038 = vsub.f32 0.0, %v2910
        %v3039 = vsub.f32 0.0, %v2911
        %v3040 = vsub.f32 0.0, %v2912
        %v3041 = vsub.f32 0.0, %v2913
        %v3042 = vsub.f32 0.0, %v2914
        %v3043 = vsub.f32 0.0, %v2915
        %v3044 = vsub.f32 0.0, %v2916
        %v3045 = vsub.f32 0.0, %v2917
        %v3046 = vsub.f32 0.0, %v2918
        %v3047 = vsub.f32 0.0, %v2919
        %v3048 = vsub.f32 0.0, %v2920
        %v3049 = vsub.f32 0.0, %v2921
        %v3050 = vsub.f32 0.0, %v2922
        %v3051 = vsub.f32 0.0, %v2923
        %v3052 = vsub.f32 0.0, %v2924
        %v3053 = vsub.f32 0.0, %v2925
        %v3054 = vsub.f32 0.0, %v2926
        %v3055 = vsub.f32 0.0, %v2927
        %v3056 = vsub.f32 0.0, %v2928
        %v3057 = vsub.f32 0.0, %v2929
        %v3058 = vsub.f32 0.0, %v2930
        %v3059 = vsub.f32 0.0, %v2931
        %v3060 = vsub.f32 0.0, %v2932
        %v3061 = vsub.f32 0.0, %v2933
        %v3062 = vsub.f32 0.0, %v2934
        %v3063 = vsel %vm2935, %v2999, %v2871
        %v3064 = vsel %vm2936, %v3000, %v2872
        %v3065 = vsel %vm2937, %v3001, %v2873
        %v3066 = vsel %vm2938, %v3002, %v2874
        %v3067 = vsel %vm2939, %v3003, %v2875
        %v3068 = vsel %vm2940, %v3004, %v2876
        %v3069 = vsel %vm2941, %v3005, %v2877
        %v3070 = vsel %vm2942, %v3006, %v2878
        %v3071 = vsel %vm2943, %v3007, %v2879
        %v3072 = vsel %vm2944, %v3008, %v2880
        %v3073 = vsel %vm2945, %v3009, %v2881
        %v3074 = vsel %vm2946, %v3010, %v2882
        %v3075 = vsel %vm2947, %v3011, %v2883
        %v3076 = vsel %vm2948, %v3012, %v2884
        %v3077 = vsel %vm2949, %v3013, %v2885
        %v3078 = vsel %vm2950, %v3014, %v2886
        %v3079 = vsel %vm2951, %v3015, %v2887
        %v3080 = vsel %vm2952, %v3016, %v2888
        %v3081 = vsel %vm2953, %v3017, %v2889
        %v3082 = vsel %vm2954, %v3018, %v2890
        %v3083 = vsel %vm2955, %v3019, %v2891
        %v3084 = vsel %vm2956, %v3020, %v2892
        %v3085 = vsel %vm2957, %v3021, %v2893
        %v3086 = vsel %vm2958, %v3022, %v2894
        %v3087 = vsel %vm2959, %v3023, %v2895
        %v3088 = vsel %vm2960, %v3024, %v2896
        %v3089 = vsel %vm2961, %v3025, %v2897
        %v3090 = vsel %vm2962, %v3026, %v2898
        %v3091 = vsel %vm2963, %v3027, %v2899
        %v3092 = vsel %vm2964, %v3028, %v2900
        %v3093 = vsel %vm2965, %v3029, %v2901
        %v3094 = vsel %vm2966, %v3030, %v2902
        %v3095 = vsel %vm2967, %v3031, %v2903
        %v3096 = vsel %vm2968, %v3032, %v2904
        %v3097 = vsel %vm2969, %v3033, %v2905
        %v3098 = vsel %vm2970, %v3034, %v2906
        %v3099 = vsel %vm2971, %v3035, %v2907
        %v3100 = vsel %vm2972, %v3036, %v2908
        %v3101 = vsel %vm2973, %v3037, %v2909
        %v3102 = vsel %vm2974, %v3038, %v2910
        %v3103 = vsel %vm2975, %v3039, %v2911
        %v3104 = vsel %vm2976, %v3040, %v2912
        %v3105 = vsel %vm2977, %v3041, %v2913
        %v3106 = vsel %vm2978, %v3042, %v2914
        %v3107 = vsel %vm2979, %v3043, %v2915
        %v3108 = vsel %vm2980, %v3044, %v2916
        %v3109 = vsel %vm2981, %v3045, %v2917
        %v3110 = vsel %vm2982, %v3046, %v2918
        %v3111 = vsel %vm2983, %v3047, %v2919
        %v3112 = vsel %vm2984, %v3048, %v2920
        %v3113 = vsel %vm2985, %v3049, %v2921
        %v3114 = vsel %vm2986, %v3050, %v2922
        %v3115 = vsel %vm2987, %v3051, %v2923
        %v3116 = vsel %vm2988, %v3052, %v2924
        %v3117 = vsel %vm2989, %v3053, %v2925
        %v3118 = vsel %vm2990, %v3054, %v2926
        %v3119 = vsel %vm2991, %v3055, %v2927
        %v3120 = vsel %vm2992, %v3056, %v2928
        %v3121 = vsel %vm2993, %v3057, %v2929
        %v3122 = vsel %vm2994, %v3058, %v2930
        %v3123 = vsel %vm2995, %v3059, %v2931
        %v3124 = vsel %vm2996, %v3060, %v2932
        %v3125 = vsel %vm2997, %v3061, %v2933
        %v3126 = vsel %vm2998, %v3062, %v2934
        %v3127 = vadd.f32 %v3063, 1.0
        %v3128 = vadd.f32 %v3064, 1.0
        %v3129 = vadd.f32 %v3065, 1.0
        %v3130 = vadd.f32 %v3066, 1.0
        %v3131 = vadd.f32 %v3067, 1.0
        %v3132 = vadd.f32 %v3068, 1.0
        %v3133 = vadd.f32 %v3069, 1.0
        %v3134 = vadd.f32 %v3070, 1.0
        %v3135 = vadd.f32 %v3071, 1.0
        %v3136 = vadd.f32 %v3072, 1.0
        %v3137 = vadd.f32 %v3073, 1.0
        %v3138 = vadd.f32 %v3074, 1.0
        %v3139 = vadd.f32 %v3075, 1.0
        %v3140 = vadd.f32 %v3076, 1.0
        %v3141 = vadd.f32 %v3077, 1.0
        %v3142 = vadd.f32 %v3078, 1.0
        %v3143 = vadd.f32 %v3079, 1.0
        %v3144 = vadd.f32 %v3080, 1.0
        %v3145 = vadd.f32 %v3081, 1.0
        %v3146 = vadd.f32 %v3082, 1.0
        %v3147 = vadd.f32 %v3083, 1.0
        %v3148 = vadd.f32 %v3084, 1.0
        %v3149 = vadd.f32 %v3085, 1.0
        %v3150 = vadd.f32 %v3086, 1.0
        %v3151 = vadd.f32 %v3087, 1.0
        %v3152 = vadd.f32 %v3088, 1.0
        %v3153 = vadd.f32 %v3089, 1.0
        %v3154 = vadd.f32 %v3090, 1.0
        %v3155 = vadd.f32 %v3091, 1.0
        %v3156 = vadd.f32 %v3092, 1.0
        %v3157 = vadd.f32 %v3093, 1.0
        %v3158 = vadd.f32 %v3094, 1.0
        %v3159 = vadd.f32 %v3095, 1.0
        %v3160 = vadd.f32 %v3096, 1.0
        %v3161 = vadd.f32 %v3097, 1.0
        %v3162 = vadd.f32 %v3098, 1.0
        %v3163 = vadd.f32 %v3099, 1.0
        %v3164 = vadd.f32 %v3100, 1.0
        %v3165 = vadd.f32 %v3101, 1.0
        %v3166 = vadd.f32 %v3102, 1.0
        %v3167 = vadd.f32 %v3103, 1.0
        %v3168 = vadd.f32 %v3104, 1.0
        %v3169 = vadd.f32 %v3105, 1.0
        %v3170 = vadd.f32 %v3106, 1.0
        %v3171 = vadd.f32 %v3107, 1.0
        %v3172 = vadd.f32 %v3108, 1.0
        %v3173 = vadd.f32 %v3109, 1.0
        %v3174 = vadd.f32 %v3110, 1.0
        %v3175 = vadd.f32 %v3111, 1.0
        %v3176 = vadd.f32 %v3112, 1.0
        %v3177 = vadd.f32 %v3113, 1.0
        %v3178 = vadd.f32 %v3114, 1.0
        %v3179 = vadd.f32 %v3115, 1.0
        %v3180 = vadd.f32 %v3116, 1.0
        %v3181 = vadd.f32 %v3117, 1.0
        %v3182 = vadd.f32 %v3118, 1.0
        %v3183 = vadd.f32 %v3119, 1.0
        %v3184 = vadd.f32 %v3120, 1.0
        %v3185 = vadd.f32 %v3121, 1.0
        %v3186 = vadd.f32 %v3122, 1.0
        %v3187 = vadd.f32 %v3123, 1.0
        %v3188 = vadd.f32 %v3124, 1.0
        %v3189 = vadd.f32 %v3125, 1.0
        %v3190 = vadd.f32 %v3126, 1.0
        %v3191 = vmul.f32 %v695, %v3127
        %v3192 = vmul.f32 %v696, %v3128
        %v3193 = vmul.f32 %v697, %v3129
        %v3194 = vmul.f32 %v698, %v3130
        %v3195 = vmul.f32 %v699, %v3131
        %v3196 = vmul.f32 %v700, %v3132
        %v3197 = vmul.f32 %v701, %v3133
        %v3198 = vmul.f32 %v702, %v3134
        %v3199 = vmul.f32 %v703, %v3135
        %v3200 = vmul.f32 %v704, %v3136
        %v3201 = vmul.f32 %v705, %v3137
        %v3202 = vmul.f32 %v706, %v3138
        %v3203 = vmul.f32 %v707, %v3139
        %v3204 = vmul.f32 %v708, %v3140
        %v3205 = vmul.f32 %v709, %v3141
        %v3206 = vmul.f32 %v710, %v3142
        %v3207 = vmul.f32 %v711, %v3143
        %v3208 = vmul.f32 %v712, %v3144
        %v3209 = vmul.f32 %v713, %v3145
        %v3210 = vmul.f32 %v714, %v3146
        %v3211 = vmul.f32 %v715, %v3147
        %v3212 = vmul.f32 %v716, %v3148
        %v3213 = vmul.f32 %v717, %v3149
        %v3214 = vmul.f32 %v718, %v3150
        %v3215 = vmul.f32 %v719, %v3151
        %v3216 = vmul.f32 %v720, %v3152
        %v3217 = vmul.f32 %v721, %v3153
        %v3218 = vmul.f32 %v722, %v3154
        %v3219 = vmul.f32 %v723, %v3155
        %v3220 = vmul.f32 %v724, %v3156
        %v3221 = vmul.f32 %v725, %v3157
        %v3222 = vmul.f32 %v726, %v3158
        %v3223 = vmul.f32 %v727, %v3159
        %v3224 = vmul.f32 %v728, %v3160
        %v3225 = vmul.f32 %v729, %v3161
        %v3226 = vmul.f32 %v730, %v3162
        %v3227 = vmul.f32 %v731, %v3163
        %v3228 = vmul.f32 %v732, %v3164
        %v3229 = vmul.f32 %v733, %v3165
        %v3230 = vmul.f32 %v734, %v3166
        %v3231 = vmul.f32 %v735, %v3167
        %v3232 = vmul.f32 %v736, %v3168
        %v3233 = vmul.f32 %v737, %v3169
        %v3234 = vmul.f32 %v738, %v3170
        %v3235 = vmul.f32 %v739, %v3171
        %v3236 = vmul.f32 %v740, %v3172
        %v3237 = vmul.f32 %v741, %v3173
        %v3238 = vmul.f32 %v742, %v3174
        %v3239 = vmul.f32 %v743, %v3175
        %v3240 = vmul.f32 %v744, %v3176
        %v3241 = vmul.f32 %v745, %v3177
        %v3242 = vmul.f32 %v746, %v3178
        %v3243 = vmul.f32 %v747, %v3179
        %v3244 = vmul.f32 %v748, %v3180
        %v3245 = vmul.f32 %v749, %v3181
        %v3246 = vmul.f32 %v750, %v3182
        %v3247 = vmul.f32 %v751, %v3183
        %v3248 = vmul.f32 %v752, %v3184
        %v3249 = vmul.f32 %v753, %v3185
        %v3250 = vmul.f32 %v754, %v3186
        %v3251 = vmul.f32 %v755, %v3187
        %v3252 = vmul.f32 %v756, %v3188
        %v3253 = vmul.f32 %v757, %v3189
        %v3254 = vmul.f32 %v758, %v3190
        %v3255 = vld [vmem:[#allocation2] sm:$0xff]
        %v3256 = vld [vmem:[#allocation2 + $0x8] sm:$0xff]
        %v3257 = vld [vmem:[#allocation2 + $0x10] sm:$0xff]
        %v3258 = vld [vmem:[#allocation2 + $0x18] sm:$0xff]
        %v3259 = vld [vmem:[#allocation2 + $0x20] sm:$0xff]
        %v3260 = vld [vmem:[#allocation2 + $0x28] sm:$0xff]
        %v3261 = vld [vmem:[#allocation2 + $0x30] sm:$0xff]
        %v3262 = vld [vmem:[#allocation2 + $0x38] sm:$0xff]
        %v3263 = vld [vmem:[#allocation2 + $0x40] sm:$0xff]
        %v3264 = vld [vmem:[#allocation2 + $0x48] sm:$0xff]
        %v3265 = vld [vmem:[#allocation2 + $0x50] sm:$0xff]
        %v3266 = vld [vmem:[#allocation2 + $0x58] sm:$0xff]
        %v3267 = vld [vmem:[#allocation2 + $0x60] sm:$0xff]
        %v3268 = vld [vmem:[#allocation2 + $0x68] sm:$0xff]
        %v3269 = vld [vmem:[#allocation2 + $0x70] sm:$0xff]
        %v3270 = vld [vmem:[#allocation2 + $0x78] sm:$0xff]
        %v3271 = vld [vmem:[#allocation2 + $0x80] sm:$0xff]
        %v3272 = vld [vmem:[#allocation2 + $0x88] sm:$0xff]
        %v3273 = vld [vmem:[#allocation2 + $0x90] sm:$0xff]
        %v3274 = vld [vmem:[#allocation2 + $0x98] sm:$0xff]
        %v3275 = vld [vmem:[#allocation2 + $0xa0] sm:$0xff]
        %v3276 = vld [vmem:[#allocation2 + $0xa8] sm:$0xff]
        %v3277 = vld [vmem:[#allocation2 + $0xb0] sm:$0xff]
        %v3278 = vld [vmem:[#allocation2 + $0xb8] sm:$0xff]
        %v3279 = vld [vmem:[#allocation2 + $0xc0] sm:$0xff]
        %v3280 = vld [vmem:[#allocation2 + $0xc8] sm:$0xff]
        %v3281 = vld [vmem:[#allocation2 + $0xd0] sm:$0xff]
        %v3282 = vld [vmem:[#allocation2 + $0xd8] sm:$0xff]
        %v3283 = vld [vmem:[#allocation2 + $0xe0] sm:$0xff]
        %v3284 = vld [vmem:[#allocation2 + $0xe8] sm:$0xff]
        %v3285 = vld [vmem:[#allocation2 + $0xf0] sm:$0xff]
        %v3286 = vld [vmem:[#allocation2 + $0xf8] sm:$0xff]
        %v3287 = vld [vmem:[%s317] sm:$0xff]
        %v3288 = vld [vmem:[%s317 + $0x8] sm:$0xff]
        %v3289 = vld [vmem:[%s317 + $0x10] sm:$0xff]
        %v3290 = vld [vmem:[%s317 + $0x18] sm:$0xff]
        %v3291 = vld [vmem:[%s317 + $0x20] sm:$0xff]
        %v3292 = vld [vmem:[%s317 + $0x28] sm:$0xff]
        %v3293 = vld [vmem:[%s317 + $0x30] sm:$0xff]
        %v3294 = vld [vmem:[%s317 + $0x38] sm:$0xff]
        %v3295 = vld [vmem:[%s317 + $0x40] sm:$0xff]
        %v3296 = vld [vmem:[%s317 + $0x48] sm:$0xff]
        %v3297 = vld [vmem:[%s317 + $0x50] sm:$0xff]
        %v3298 = vld [vmem:[%s317 + $0x58] sm:$0xff]
        %v3299 = vld [vmem:[%s317 + $0x60] sm:$0xff]
        %v3300 = vld [vmem:[%s317 + $0x68] sm:$0xff]
        %v3301 = vld [vmem:[%s317 + $0x70] sm:$0xff]
        %v3302 = vld [vmem:[%s317 + $0x78] sm:$0xff]
        %v3303 = vld [vmem:[%s317 + $0x80] sm:$0xff]
        %v3304 = vld [vmem:[%s317 + $0x88] sm:$0xff]
        %v3305 = vld [vmem:[%s317 + $0x90] sm:$0xff]
        %v3306 = vld [vmem:[%s317 + $0x98] sm:$0xff]
        %v3307 = vld [vmem:[%s317 + $0xa0] sm:$0xff]
        %v3308 = vld [vmem:[%s317 + $0xa8] sm:$0xff]
        %v3309 = vld [vmem:[%s317 + $0xb0] sm:$0xff]
        %v3310 = vld [vmem:[%s317 + $0xb8] sm:$0xff]
        %v3311 = vld [vmem:[%s317 + $0xc0] sm:$0xff]
        %v3312 = vld [vmem:[%s317 + $0xc8] sm:$0xff]
        %v3313 = vld [vmem:[%s317 + $0xd0] sm:$0xff]
        %v3314 = vld [vmem:[%s317 + $0xd8] sm:$0xff]
        %v3315 = vld [vmem:[%s317 + $0xe0] sm:$0xff]
        %v3316 = vld [vmem:[%s317 + $0xe8] sm:$0xff]
        %v3317 = vld [vmem:[%s317 + $0xf0] sm:$0xff]
        %v3318 = vld [vmem:[%s317 + $0xf8] sm:$0xff]
        %3319 = vmatpush.msra.mxu0 %v3302
        %3320 = vmatpush.msra.mxu0 %v3301
        %3321 = vmatpush.msra.mxu0 %v3300
        %3322 = vmatpush.msra.mxu0 %v3299
        %3323 = vmatpush.msra.mxu0 %v3298
        %3324 = vmatpush.msra.mxu0 %v3297
        %3325 = vmatpush.msra.mxu0 %v3296
        %3326 = vmatpush.msra.mxu0 %v3295
        %3327 = vmatpush.msra.mxu0 %v3294
        %3328 = vmatpush.msra.mxu0 %v3293
        %3329 = vmatpush.msra.mxu0 %v3292
        %3330 = vmatpush.msra.mxu0 %v3291
        %3331 = vmatpush.msra.mxu0 %v3290
        %3332 = vmatpush.msra.mxu0 %v3289
        %3333 = vmatpush.msra.mxu0 %v3288
        %3334 = vmatpush.msra.mxu0 %v3287
        %3335 = vmatmul.f32.gmra.mxu0 %v3191
        %v3336 = vpop.f32.mrf.mxu0
        %v3337 = vadd.f32 0.0, %v3336
        %3338 = vmatmul.f32.gmra.mxu0 %v3193
        %v3339 = vpop.f32.mrf.mxu0
        %v3340 = vadd.f32 0.0, %v3339
        %3341 = vmatmul.f32.gmra.mxu0 %v3195
        %v3342 = vpop.f32.mrf.mxu0
        %v3343 = vadd.f32 0.0, %v3342
        %3344 = vmatmul.f32.gmra.mxu0 %v3197
        %v3345 = vpop.f32.mrf.mxu0
        %v3346 = vadd.f32 0.0, %v3345
        %3347 = vmatmul.f32.gmra.mxu0 %v3199
        %v3348 = vpop.f32.mrf.mxu0
        %v3349 = vadd.f32 0.0, %v3348
        %3350 = vmatmul.f32.gmra.mxu0 %v3201
        %v3351 = vpop.f32.mrf.mxu0
        %v3352 = vadd.f32 0.0, %v3351
        %3353 = vmatmul.f32.gmra.mxu0 %v3203
        %v3354 = vpop.f32.mrf.mxu0
        %v3355 = vadd.f32 0.0, %v3354
        %3356 = vmatmul.f32.gmra.mxu0 %v3205
        %v3357 = vpop.f32.mrf.mxu0
        %v3358 = vadd.f32 0.0, %v3357
        %3359 = vmatmul.f32.gmra.mxu0 %v3207
        %v3360 = vpop.f32.mrf.mxu0
        %v3361 = vadd.f32 0.0, %v3360
        %3362 = vmatmul.f32.gmra.mxu0 %v3209
        %v3363 = vpop.f32.mrf.mxu0
        %v3364 = vadd.f32 0.0, %v3363
        %3365 = vmatmul.f32.gmra.mxu0 %v3211
        %v3366 = vpop.f32.mrf.mxu0
        %v3367 = vadd.f32 0.0, %v3366
        %3368 = vmatmul.f32.gmra.mxu0 %v3213
        %v3369 = vpop.f32.mrf.mxu0
        %v3370 = vadd.f32 0.0, %v3369
        %3371 = vmatmul.f32.gmra.mxu0 %v3215
        %v3372 = vpop.f32.mrf.mxu0
        %v3373 = vadd.f32 0.0, %v3372
        %3374 = vmatmul.f32.gmra.mxu0 %v3217
        %v3375 = vpop.f32.mrf.mxu0
        %v3376 = vadd.f32 0.0, %v3375
        %3377 = vmatmul.f32.gmra.mxu0 %v3219
        %v3378 = vpop.f32.mrf.mxu0
        %v3379 = vadd.f32 0.0, %v3378
        %3380 = vmatmul.f32.gmra.mxu0 %v3221
        %v3381 = vpop.f32.mrf.mxu0
        %v3382 = vadd.f32 0.0, %v3381
        %3383 = vmatmul.f32.gmra.mxu0 %v3223
        %v3384 = vpop.f32.mrf.mxu0
        %v3385 = vadd.f32 0.0, %v3384
        %3386 = vmatmul.f32.gmra.mxu0 %v3225
        %v3387 = vpop.f32.mrf.mxu0
        %v3388 = vadd.f32 0.0, %v3387
        %3389 = vmatmul.f32.gmra.mxu0 %v3227
        %v3390 = vpop.f32.mrf.mxu0
        %v3391 = vadd.f32 0.0, %v3390
        %3392 = vmatmul.f32.gmra.mxu0 %v3229
        %v3393 = vpop.f32.mrf.mxu0
        %v3394 = vadd.f32 0.0, %v3393
        %3395 = vmatmul.f32.gmra.mxu0 %v3231
        %v3396 = vpop.f32.mrf.mxu0
        %v3397 = vadd.f32 0.0, %v3396
        %3398 = vmatmul.f32.gmra.mxu0 %v3233
        %v3399 = vpop.f32.mrf.mxu0
        %v3400 = vadd.f32 0.0, %v3399
        %3401 = vmatmul.f32.gmra.mxu0 %v3235
        %v3402 = vpop.f32.mrf.mxu0
        %v3403 = vadd.f32 0.0, %v3402
        %3404 = vmatmul.f32.gmra.mxu0 %v3237
        %v3405 = vpop.f32.mrf.mxu0
        %v3406 = vadd.f32 0.0, %v3405
        %3407 = vmatmul.f32.gmra.mxu0 %v3239
        %v3408 = vpop.f32.mrf.mxu0
        %v3409 = vadd.f32 0.0, %v3408
        %3410 = vmatmul.f32.gmra.mxu0 %v3241
        %v3411 = vpop.f32.mrf.mxu0
        %v3412 = vadd.f32 0.0, %v3411
        %3413 = vmatmul.f32.gmra.mxu0 %v3243
        %v3414 = vpop.f32.mrf.mxu0
        %v3415 = vadd.f32 0.0, %v3414
        %3416 = vmatmul.f32.gmra.mxu0 %v3245
        %v3417 = vpop.f32.mrf.mxu0
        %v3418 = vadd.f32 0.0, %v3417
        %3419 = vmatmul.f32.gmra.mxu0 %v3247
        %v3420 = vpop.f32.mrf.mxu0
        %v3421 = vadd.f32 0.0, %v3420
        %3422 = vmatmul.f32.gmra.mxu0 %v3249
        %v3423 = vpop.f32.mrf.mxu0
        %v3424 = vadd.f32 0.0, %v3423
        %3425 = vmatmul.f32.gmra.mxu0 %v3251
        %v3426 = vpop.f32.mrf.mxu0
        %v3427 = vadd.f32 0.0, %v3426
        %3428 = vmatmul.f32.gmra.mxu0 %v3253
        %v3429 = vpop.f32.mrf.mxu0
        %v3430 = vadd.f32 0.0, %v3429
        %3431 = vdwg.mxu0
        %3432 = vmatpush.msra.mxu0 %v3318
        %3433 = vmatpush.msra.mxu0 %v3317
        %3434 = vmatpush.msra.mxu0 %v3316
        %3435 = vmatpush.msra.mxu0 %v3315
        %3436 = vmatpush.msra.mxu0 %v3314
        %3437 = vmatpush.msra.mxu0 %v3313
        %3438 = vmatpush.msra.mxu0 %v3312
        %3439 = vmatpush.msra.mxu0 %v3311
        %3440 = vmatpush.msra.mxu0 %v3310
        %3441 = vmatpush.msra.mxu0 %v3309
        %3442 = vmatpush.msra.mxu0 %v3308
        %3443 = vmatpush.msra.mxu0 %v3307
        %3444 = vmatpush.msra.mxu0 %v3306
        %3445 = vmatpush.msra.mxu0 %v3305
        %3446 = vmatpush.msra.mxu0 %v3304
        %3447 = vmatpush.msra.mxu0 %v3303
        %3448 = vmatmul.f32.gmra.mxu0 %v3192
        %v3449 = vpop.f32.mrf.mxu0
        %v3450 = vadd.f32 %v3337, %v3449
        %3451 = vmatmul.f32.gmra.mxu0 %v3194
        %v3452 = vpop.f32.mrf.mxu0
        %v3453 = vadd.f32 %v3340, %v3452
        %3454 = vmatmul.f32.gmra.mxu0 %v3196
        %v3455 = vpop.f32.mrf.mxu0
        %v3456 = vadd.f32 %v3343, %v3455
        %3457 = vmatmul.f32.gmra.mxu0 %v3198
        %v3458 = vpop.f32.mrf.mxu0
        %v3459 = vadd.f32 %v3346, %v3458
        %3460 = vmatmul.f32.gmra.mxu0 %v3200
        %v3461 = vpop.f32.mrf.mxu0
        %v3462 = vadd.f32 %v3349, %v3461
        %3463 = vmatmul.f32.gmra.mxu0 %v3202
        %v3464 = vpop.f32.mrf.mxu0
        %v3465 = vadd.f32 %v3352, %v3464
        %3466 = vmatmul.f32.gmra.mxu0 %v3204
        %v3467 = vpop.f32.mrf.mxu0
        %v3468 = vadd.f32 %v3355, %v3467
        %3469 = vmatmul.f32.gmra.mxu0 %v3206
        %v3470 = vpop.f32.mrf.mxu0
        %v3471 = vadd.f32 %v3358, %v3470
        %3472 = vmatmul.f32.gmra.mxu0 %v3208
        %v3473 = vpop.f32.mrf.mxu0
        %v3474 = vadd.f32 %v3361, %v3473
        %3475 = vmatmul.f32.gmra.mxu0 %v3210
        %v3476 = vpop.f32.mrf.mxu0
        %v3477 = vadd.f32 %v3364, %v3476
        %3478 = vmatmul.f32.gmra.mxu0 %v3212
        %v3479 = vpop.f32.mrf.mxu0
        %v3480 = vadd.f32 %v3367, %v3479
        %3481 = vmatmul.f32.gmra.mxu0 %v3214
        %v3482 = vpop.f32.mrf.mxu0
        %v3483 = vadd.f32 %v3370, %v3482
        %3484 = vmatmul.f32.gmra.mxu0 %v3216
        %v3485 = vpop.f32.mrf.mxu0
        %v3486 = vadd.f32 %v3373, %v3485
        %3487 = vmatmul.f32.gmra.mxu0 %v3218
        %v3488 = vpop.f32.mrf.mxu0
        %v3489 = vadd.f32 %v3376, %v3488
        %3490 = vmatmul.f32.gmra.mxu0 %v3220
        %v3491 = vpop.f32.mrf.mxu0
        %v3492 = vadd.f32 %v3379, %v3491
        %3493 = vmatmul.f32.gmra.mxu0 %v3222
        %v3494 = vpop.f32.mrf.mxu0
        %v3495 = vadd.f32 %v3382, %v3494
        %3496 = vmatmul.f32.gmra.mxu0 %v3224
        %v3497 = vpop.f32.mrf.mxu0
        %v3498 = vadd.f32 %v3385, %v3497
        %3499 = vmatmul.f32.gmra.mxu0 %v3226
        %v3500 = vpop.f32.mrf.mxu0
        %v3501 = vadd.f32 %v3388, %v3500
        %3502 = vmatmul.f32.gmra.mxu0 %v3228
        %v3503 = vpop.f32.mrf.mxu0
        %v3504 = vadd.f32 %v3391, %v3503
        %3505 = vmatmul.f32.gmra.mxu0 %v3230
        %v3506 = vpop.f32.mrf.mxu0
        %v3507 = vadd.f32 %v3394, %v3506
        %3508 = vmatmul.f32.gmra.mxu0 %v3232
        %v3509 = vpop.f32.mrf.mxu0
        %v3510 = vadd.f32 %v3397, %v3509
        %3511 = vmatmul.f32.gmra.mxu0 %v3234
        %v3512 = vpop.f32.mrf.mxu0
        %v3513 = vadd.f32 %v3400, %v3512
        %3514 = vmatmul.f32.gmra.mxu0 %v3236
        %v3515 = vpop.f32.mrf.mxu0
        %v3516 = vadd.f32 %v3403, %v3515
        %3517 = vmatmul.f32.gmra.mxu0 %v3238
        %v3518 = vpop.f32.mrf.mxu0
        %v3519 = vadd.f32 %v3406, %v3518
        %3520 = vmatmul.f32.gmra.mxu0 %v3240
        %v3521 = vpop.f32.mrf.mxu0
        %v3522 = vadd.f32 %v3409, %v3521
        %3523 = vmatmul.f32.gmra.mxu0 %v3242
        %v3524 = vpop.f32.mrf.mxu0
        %v3525 = vadd.f32 %v3412, %v3524
        %3526 = vmatmul.f32.gmra.mxu0 %v3244
        %v3527 = vpop.f32.mrf.mxu0
        %v3528 = vadd.f32 %v3415, %v3527
        %3529 = vmatmul.f32.gmra.mxu0 %v3246
        %v3530 = vpop.f32.mrf.mxu0
        %v3531 = vadd.f32 %v3418, %v3530
        %3532 = vmatmul.f32.gmra.mxu0 %v3248
        %v3533 = vpop.f32.mrf.mxu0
        %v3534 = vadd.f32 %v3421, %v3533
        %3535 = vmatmul.f32.gmra.mxu0 %v3250
        %v3536 = vpop.f32.mrf.mxu0
        %v3537 = vadd.f32 %v3424, %v3536
        %3538 = vmatmul.f32.gmra.mxu0 %v3252
        %v3539 = vpop.f32.mrf.mxu0
        %v3540 = vadd.f32 %v3427, %v3539
        %3541 = vmatmul.f32.gmra.mxu0 %v3254
        %v3542 = vpop.f32.mrf.mxu0
        %v3543 = vadd.f32 %v3430, %v3542
        %3544 = vdwg.mxu0
        %v3545 = vadd.f32 %v3255, %v3450
        %v3546 = vadd.f32 %v3256, %v3453
        %v3547 = vadd.f32 %v3257, %v3456
        %v3548 = vadd.f32 %v3258, %v3459
        %v3549 = vadd.f32 %v3259, %v3462
        %v3550 = vadd.f32 %v3260, %v3465
        %v3551 = vadd.f32 %v3261, %v3468
        %v3552 = vadd.f32 %v3262, %v3471
        %v3553 = vadd.f32 %v3263, %v3474
        %v3554 = vadd.f32 %v3264, %v3477
        %v3555 = vadd.f32 %v3265, %v3480
        %v3556 = vadd.f32 %v3266, %v3483
        %v3557 = vadd.f32 %v3267, %v3486
        %v3558 = vadd.f32 %v3268, %v3489
        %v3559 = vadd.f32 %v3269, %v3492
        %v3560 = vadd.f32 %v3270, %v3495
        %v3561 = vadd.f32 %v3271, %v3498
        %v3562 = vadd.f32 %v3272, %v3501
        %v3563 = vadd.f32 %v3273, %v3504
        %v3564 = vadd.f32 %v3274, %v3507
        %v3565 = vadd.f32 %v3275, %v3510
        %v3566 = vadd.f32 %v3276, %v3513
        %v3567 = vadd.f32 %v3277, %v3516
        %v3568 = vadd.f32 %v3278, %v3519
        %v3569 = vadd.f32 %v3279, %v3522
        %v3570 = vadd.f32 %v3280, %v3525
        %v3571 = vadd.f32 %v3281, %v3528
        %v3572 = vadd.f32 %v3282, %v3531
        %v3573 = vadd.f32 %v3283, %v3534
        %v3574 = vadd.f32 %v3284, %v3537
        %v3575 = vadd.f32 %v3285, %v3540
        %v3576 = vadd.f32 %v3286, %v3543
        %3577 = vst [vmem:[#allocation2] sm:$0xff] %v3545
        %3578 = vst [vmem:[#allocation2 + $0x8] sm:$0xff] %v3546
        %3579 = vst [vmem:[#allocation2 + $0x10] sm:$0xff] %v3547
        %3580 = vst [vmem:[#allocation2 + $0x18] sm:$0xff] %v3548
        %3581 = vst [vmem:[#allocation2 + $0x20] sm:$0xff] %v3549
        %3582 = vst [vmem:[#allocation2 + $0x28] sm:$0xff] %v3550
        %3583 = vst [vmem:[#allocation2 + $0x30] sm:$0xff] %v3551
        %3584 = vst [vmem:[#allocation2 + $0x38] sm:$0xff] %v3552
        %3585 = vst [vmem:[#allocation2 + $0x40] sm:$0xff] %v3553
        %3586 = vst [vmem:[#allocation2 + $0x48] sm:$0xff] %v3554
        %3587 = vst [vmem:[#allocation2 + $0x50] sm:$0xff] %v3555
        %3588 = vst [vmem:[#allocation2 + $0x58] sm:$0xff] %v3556
        %3589 = vst [vmem:[#allocation2 + $0x60] sm:$0xff] %v3557
        %3590 = vst [vmem:[#allocation2 + $0x68] sm:$0xff] %v3558
        %3591 = vst [vmem:[#allocation2 + $0x70] sm:$0xff] %v3559
        %3592 = vst [vmem:[#allocation2 + $0x78] sm:$0xff] %v3560
        %3593 = vst [vmem:[#allocation2 + $0x80] sm:$0xff] %v3561
        %3594 = vst [vmem:[#allocation2 + $0x88] sm:$0xff] %v3562
        %3595 = vst [vmem:[#allocation2 + $0x90] sm:$0xff] %v3563
        %3596 = vst [vmem:[#allocation2 + $0x98] sm:$0xff] %v3564
        %3597 = vst [vmem:[#allocation2 + $0xa0] sm:$0xff] %v3565
        %3598 = vst [vmem:[#allocation2 + $0xa8] sm:$0xff] %v3566
        %3599 = vst [vmem:[#allocation2 + $0xb0] sm:$0xff] %v3567
        %3600 = vst [vmem:[#allocation2 + $0xb8] sm:$0xff] %v3568
        %3601 = vst [vmem:[#allocation2 + $0xc0] sm:$0xff] %v3569
        %3602 = vst [vmem:[#allocation2 + $0xc8] sm:$0xff] %v3570
        %3603 = vst [vmem:[#allocation2 + $0xd0] sm:$0xff] %v3571
        %3604 = vst [vmem:[#allocation2 + $0xd8] sm:$0xff] %v3572
        %3605 = vst [vmem:[#allocation2 + $0xe0] sm:$0xff] %v3573
        %3606 = vst [vmem:[#allocation2 + $0xe8] sm:$0xff] %v3574
        %3607 = vst [vmem:[#allocation2 + $0xf0] sm:$0xff] %v3575
        %3608 = vst [vmem:[#allocation2 + $0xf8] sm:$0xff] %v3576
        %p3609 = scmp.eq.s32.totalorder %s33, 1
        // Predicated region
        $region61: #{tpu_custom_call.1} parent=39 // pred_check
          %p3610 = pneg %p3609
        $region62: #{tpu_custom_call.1} parent=39 // pred_check_branch
          %3612 = sbr.rel (%p3610) target = $region64
        $region63: #{tpu_custom_call.1} parent=39 // pred_region
          %v3613 = vld [vmem:[#allocation2] sm:$0xff]
          %v3614 = vld [vmem:[#allocation2 + $0x8] sm:$0xff]
          %v3615 = vld [vmem:[#allocation2 + $0x10] sm:$0xff]
          %v3616 = vld [vmem:[#allocation2 + $0x18] sm:$0xff]
          %v3617 = vld [vmem:[#allocation2 + $0x20] sm:$0xff]
          %v3618 = vld [vmem:[#allocation2 + $0x28] sm:$0xff]
          %v3619 = vld [vmem:[#allocation2 + $0x30] sm:$0xff]
          %v3620 = vld [vmem:[#allocation2 + $0x38] sm:$0xff]
          %v3621 = vld [vmem:[#allocation2 + $0x40] sm:$0xff]
          %v3622 = vld [vmem:[#allocation2 + $0x48] sm:$0xff]
          %v3623 = vld [vmem:[#allocation2 + $0x50] sm:$0xff]
          %v3624 = vld [vmem:[#allocation2 + $0x58] sm:$0xff]
          %v3625 = vld [vmem:[#allocation2 + $0x60] sm:$0xff]
          %v3626 = vld [vmem:[#allocation2 + $0x68] sm:$0xff]
          %v3627 = vld [vmem:[#allocation2 + $0x70] sm:$0xff]
          %v3628 = vld [vmem:[#allocation2 + $0x78] sm:$0xff]
          %v3629 = vld [vmem:[#allocation2 + $0x80] sm:$0xff]
          %v3630 = vld [vmem:[#allocation2 + $0x88] sm:$0xff]
          %v3631 = vld [vmem:[#allocation2 + $0x90] sm:$0xff]
          %v3632 = vld [vmem:[#allocation2 + $0x98] sm:$0xff]
          %v3633 = vld [vmem:[#allocation2 + $0xa0] sm:$0xff]
          %v3634 = vld [vmem:[#allocation2 + $0xa8] sm:$0xff]
          %v3635 = vld [vmem:[#allocation2 + $0xb0] sm:$0xff]
          %v3636 = vld [vmem:[#allocation2 + $0xb8] sm:$0xff]
          %v3637 = vld [vmem:[#allocation2 + $0xc0] sm:$0xff]
          %v3638 = vld [vmem:[#allocation2 + $0xc8] sm:$0xff]
          %v3639 = vld [vmem:[#allocation2 + $0xd0] sm:$0xff]
          %v3640 = vld [vmem:[#allocation2 + $0xd8] sm:$0xff]
          %v3641 = vld [vmem:[#allocation2 + $0xe0] sm:$0xff]
          %v3642 = vld [vmem:[#allocation2 + $0xe8] sm:$0xff]
          %v3643 = vld [vmem:[#allocation2 + $0xf0] sm:$0xff]
          %v3644 = vld [vmem:[#allocation2 + $0xf8] sm:$0xff]
          %v3645 = vld [vmem:[%s4] sm:$0x1]
          %v3647 = vperm.slane %v3645, 0
          %v3649 = vadd.f32 %v3613, %v3647
          %v3650 = vadd.f32 %v3614, %v3647
          %v3651 = vadd.f32 %v3615, %v3647
          %v3652 = vadd.f32 %v3616, %v3647
          %v3653 = vadd.f32 %v3617, %v3647
          %v3654 = vadd.f32 %v3618, %v3647
          %v3655 = vadd.f32 %v3619, %v3647
          %v3656 = vadd.f32 %v3620, %v3647
          %v3657 = vadd.f32 %v3621, %v3647
          %v3658 = vadd.f32 %v3622, %v3647
          %v3659 = vadd.f32 %v3623, %v3647
          %v3660 = vadd.f32 %v3624, %v3647
          %v3661 = vadd.f32 %v3625, %v3647
          %v3662 = vadd.f32 %v3626, %v3647
          %v3663 = vadd.f32 %v3627, %v3647
          %v3664 = vadd.f32 %v3628, %v3647
          %v3665 = vadd.f32 %v3629, %v3647
          %v3666 = vadd.f32 %v3630, %v3647
          %v3667 = vadd.f32 %v3631, %v3647
          %v3668 = vadd.f32 %v3632, %v3647
          %v3669 = vadd.f32 %v3633, %v3647
          %v3670 = vadd.f32 %v3634, %v3647
          %v3671 = vadd.f32 %v3635, %v3647
          %v3672 = vadd.f32 %v3636, %v3647
          %v3673 = vadd.f32 %v3637, %v3647
          %v3674 = vadd.f32 %v3638, %v3647
          %v3675 = vadd.f32 %v3639, %v3647
          %v3676 = vadd.f32 %v3640, %v3647
          %v3677 = vadd.f32 %v3641, %v3647
          %v3678 = vadd.f32 %v3642, %v3647
          %v3679 = vadd.f32 %v3643, %v3647
          %v3680 = vadd.f32 %v3644, %v3647
          %3681 = vst [vmem:[%s354] sm:$0xff] %v3649
          %3682 = vst [vmem:[%s354 + $0x8] sm:$0xff] %v3650
          %3683 = vst [vmem:[%s354 + $0x10] sm:$0xff] %v3651
          %3684 = vst [vmem:[%s354 + $0x18] sm:$0xff] %v3652
          %3685 = vst [vmem:[%s354 + $0x20] sm:$0xff] %v3653
          %3686 = vst [vmem:[%s354 + $0x28] sm:$0xff] %v3654
          %3687 = vst [vmem:[%s354 + $0x30] sm:$0xff] %v3655
          %3688 = vst [vmem:[%s354 + $0x38] sm:$0xff] %v3656
          %3689 = vst [vmem:[%s354 + $0x40] sm:$0xff] %v3657
          %3690 = vst [vmem:[%s354 + $0x48] sm:$0xff] %v3658
          %3691 = vst [vmem:[%s354 + $0x50] sm:$0xff] %v3659
          %3692 = vst [vmem:[%s354 + $0x58] sm:$0xff] %v3660
          %3693 = vst [vmem:[%s354 + $0x60] sm:$0xff] %v3661
          %3694 = vst [vmem:[%s354 + $0x68] sm:$0xff] %v3662
          %3695 = vst [vmem:[%s354 + $0x70] sm:$0xff] %v3663
          %3696 = vst [vmem:[%s354 + $0x78] sm:$0xff] %v3664
          %3697 = vst [vmem:[%s354 + $0x80] sm:$0xff] %v3665
          %3698 = vst [vmem:[%s354 + $0x88] sm:$0xff] %v3666
          %3699 = vst [vmem:[%s354 + $0x90] sm:$0xff] %v3667
          %3700 = vst [vmem:[%s354 + $0x98] sm:$0xff] %v3668
          %3701 = vst [vmem:[%s354 + $0xa0] sm:$0xff] %v3669
          %3702 = vst [vmem:[%s354 + $0xa8] sm:$0xff] %v3670
          %3703 = vst [vmem:[%s354 + $0xb0] sm:$0xff] %v3671
          %3704 = vst [vmem:[%s354 + $0xb8] sm:$0xff] %v3672
          %3705 = vst [vmem:[%s354 + $0xc0] sm:$0xff] %v3673
          %3706 = vst [vmem:[%s354 + $0xc8] sm:$0xff] %v3674
          %3707 = vst [vmem:[%s354 + $0xd0] sm:$0xff] %v3675
          %3708 = vst [vmem:[%s354 + $0xd8] sm:$0xff] %v3676
          %3709 = vst [vmem:[%s354 + $0xe0] sm:$0xff] %v3677
          %3710 = vst [vmem:[%s354 + $0xe8] sm:$0xff] %v3678
          %3711 = vst [vmem:[%s354 + $0xf0] sm:$0xff] %v3679
          %3712 = vst [vmem:[%s354 + $0xf8] sm:$0xff] %v3680
        $region64: #{tpu_custom_call.1} parent=39 // pred_fallthru
          _
        %s3713 = sand.u32 %s168, 1
        %s3714 = scalar_lea.sflag [#allocation5], %s3713
        %s3715 = sand.u32 %s168, 1
        %s3716 = smul.addr %s3715, 256
        %s3717 = scalar_lea.vmem [#allocation11], %s3716
        // Predicated region
        $region65: #{tpu_custom_call.1} parent=39 // pred_check
          %p3718 = pneg %p178
        $region66: #{tpu_custom_call.1} parent=39 // pred_check_branch
          %3720 = sbr.rel (%p3718) target = $region68
        $region67: #{tpu_custom_call.1} parent=39 // pred_region
          %s3721 = smul.u32 32, %s32
          %3723 = vsyncadd %s3714, 0
          %s3724 = smul.addr %s3721, 8
          %s3725 = scalar_lea.hbm %s5, %s3724
          %s3726 = sshll.u32 %s3717, 4
          %s3727 = int_to_ptr.vmem [resolvable:$true] %s3726
          %s3728 = sshll.u32 %s3725, 4
          %s3729 = int_to_ptr.hbm [resolvable:$true] %s3728
          %3734 = dma.vmem_to_hbm [thread:$0]  %s3727, 4096, %s3729, %s3714, 128, 128, 8
        $region68: #{tpu_custom_call.1} parent=39 // pred_fallthru
          _
      $region40: #{tpu_custom_call.1} parent=5 // pred_fallthru
        _
      %p3735 = scmp.le.s32.totalorder 2, %s23
      // Predicated region
      $region69: #{tpu_custom_call.1} parent=5 // pred_check
        %p3736 = pneg %p3735
      $region70: #{tpu_custom_call.1} parent=5 // pred_check_branch
        %3738 = sbr.rel (%p3736) target = $region72
      $region71: #{tpu_custom_call.1} parent=5 // pred_region
        %s3739 = ssub.s32 %s23, 2
        // Predicated region
        $region73: #{tpu_custom_call.1} parent=71 // pred_check
          %p3740 = pneg %p184
        $region74: #{tpu_custom_call.1} parent=71 // pred_check_branch
          %3742 = sbr.rel (%p3740) target = $region76
        $region75: #{tpu_custom_call.1} parent=71 // pred_region
          %s3743 = sand.u32 %s169, 1
          %s3744 = scalar_lea.sflag [#allocation5], %s3743
          %s3745 = sand.u32 %s169, 1
          %s3746 = smul.addr %s3745, 256
          %s3747 = scalar_lea.vmem [#allocation11], %s3746
          %3749 = dma.done %s3744, 4096
        $region76: #{tpu_custom_call.1} parent=71 // pred_fallthru
          _
      $region72: #{tpu_custom_call.1} parent=5 // pred_fallthru
        _
    $region6: #{tpu_custom_call.1} parent=1 // loop_footer
      %s27 = sadd.s32 1, %s23
    $region7: #{tpu_custom_call.1} parent=1 // loop_footer_branch
      %22 = sbr.rel target = $region3
    $region8: #{tpu_custom_call.1} parent=1 // loop_exit
      _
    %3750 = vsyncpa [#allocation4], 1
    %s3751 = scalar_lea.sflag [#allocation4], 1
    %3752 = vsyncpa %s3751, 1
    %3753 = vsyncpa [#allocation7], 1
    %s3754 = scalar_lea.sflag [#allocation7], 1
    %3755 = vsyncpa %s3754, 1
    %3756 = vsyncpa [#allocation10], 1
    %s3757 = scalar_lea.sflag [#allocation10], 1
    %3758 = vsyncpa %s3757, 1
    %3759 = vsyncpa [#allocation5], 1
    %s3760 = scalar_lea.sflag [#allocation5], 1
    %3761 = vsyncpa %s3760, 1

</llo_original>
